<compile_context>
chip_gen: v7x
topology: tpu7x:2x2x1
jax: 0.10.0
libtpu: 0.0.40
codegen_flags: <defaults>
</compile_context>

<pallas_src>
import functools
import math

import jax
import jax.numpy as jnp
from jax.experimental import pallas as pl
from jax.experimental.pallas import tpu as pltpu

# ----------------------------- tiny-BERT config -----------------------------
VOCAB = 128
MAX_POS = 32
HIDDEN = 32
N_HEADS = 2
HEAD_DIM = HIDDEN // N_HEADS
INTER = 64
N_LAYERS = 2
NUM_LABELS = 3
C_PAD = 128            # classifier dim padded to a full lane-tile
B = 2
S = 8


# --------------------------- fused forward kernel ----------------------------
def _bert_fused_kernel(ids_ref, lbl_ref, mask_ref,
                       word_ref, pos_ref, typ_ref, embg_ref, embb_ref,
                       wqkv_ref, bqkv_ref, wo_ref, bo_ref, ln1g_ref, ln1b_ref,
                       wi_ref, bi_ref, wo2_ref, bo2_ref, ln2g_ref, ln2b_ref,
                       poolw_ref, poolb_ref, clsw_ref, clsb_ref,
                       logits_ref, loss_ref,
                       *, n_layers, n_heads, head_dim, batch, seq, hidden):
    M = batch * seq
    V = word_ref.shape[0]
    scale = 1.0 / math.sqrt(head_dim)

    def layernorm(x, g, b, eps=1e-12):
        mu = jnp.mean(x, axis=-1, keepdims=True)
        xc = x - mu
        var = jnp.mean(xc * xc, axis=-1, keepdims=True)
        return xc * jax.lax.rsqrt(var + eps) * g + b

    # ---- embeddings: gather as one-hot matmul on the MXU, fused with LN ----
    # TODO(synk): could use scalar-prefetch + pl.Element row gather instead; at
    # VOCAB=128 the one-hot matmul is one tiny MXU op and keeps everything fused.
    ids = ids_ref[...]                                              # [M, 1] int32
    iota_v = jax.lax.broadcasted_iota(jnp.int32, (M, V), 1)
    onehot = (ids == iota_v).astype(jnp.float32)                    # [M, V]
    emb = (jnp.dot(onehot, word_ref[...], preferred_element_type=jnp.float32)
           + pos_ref[...] + typ_ref[...])
    x = layernorm(emb, embg_ref[...], embb_ref[...])                # [M, H]

    mask = mask_ref[...]                                            # [B, S] additive

    # ---- encoder layers (unrolled; activations never leave VMEM/vregs) ----
    for l in range(n_layers):
        # fused QKV projection: one [M,H] x [H,3H] matmul, sliced in-kernel
        qkv = jnp.dot(x, wqkv_ref[l], preferred_element_type=jnp.float32) + bqkv_ref[l]
        q = qkv[:, 0:hidden]
        k = qkv[:, hidden:2 * hidden]
        v = qkv[:, 2 * hidden:3 * hidden]

        wo = wo_ref[l]                                              # [H, H]
        bo = bo_ref[l]                                              # [1, H]
        batch_outs = []
        for b in range(batch):                                      # unrolled (B=2)
            r0, r1 = b * seq, (b + 1) * seq
            qb, kb, vb = q[r0:r1, :], k[r0:r1, :], v[r0:r1, :]      # [S, H]
            mb = mask[b:b + 1, :]                                   # [1, S]
            out_b = jnp.zeros((seq, hidden), jnp.float32)
            for h in range(n_heads):                                # unrolled (2 heads)
                c0, c1 = h * head_dim, (h + 1) * head_dim
                s = jax.lax.dot_general(qb[:, c0:c1], kb[:, c0:c1],
                                        (((1,), (1,)), ((), ())),
                                        preferred_element_type=jnp.float32)
                s = s * scale + mb                                  # [S, S]
                s = s - jnp.max(s, axis=-1, keepdims=True)
                p = jnp.exp(s)
                p = p / jnp.sum(p, axis=-1, keepdims=True)
                ctx = jnp.dot(p, vb[:, c0:c1], preferred_element_type=jnp.float32)
                # head-merge fused into the output projection:
                #   attn_out += ctx_h @ Wo[h*dh:(h+1)*dh, :]
                out_b = out_b + jnp.dot(ctx, wo[c0:c1, :],
                                        preferred_element_type=jnp.float32)
            batch_outs.append(out_b + bo)
        attn_out = jnp.concatenate(batch_outs, axis=0)              # [M, H]
        x = layernorm(attn_out + x, ln1g_ref[l], ln1b_ref[l])       # post-LN w/ residual

        inter = jnp.dot(x, wi_ref[l], preferred_element_type=jnp.float32) + bi_ref[l]
        # TODO(synk): HF BERT uses exact erf-GELU; Mosaic has no erf, tanh approx here.
        c = math.sqrt(2.0 / math.pi)
        inter = 0.5 * inter * (1.0 + jnp.tanh(c * (inter + 0.044715 * inter * inter * inter)))
        ffn = jnp.dot(inter, wo2_ref[l], preferred_element_type=jnp.float32) + bo2_ref[l]
        x = layernorm(ffn + x, ln2g_ref[l], ln2b_ref[l])

    # ---- pooler ([CLS] token) + classifier (padded to 128 lanes) ----
    cls = jnp.concatenate([x[b * seq:b * seq + 1, :] for b in range(batch)], axis=0)
    pooled = jnp.tanh(jnp.dot(cls, poolw_ref[...], preferred_element_type=jnp.float32)
                      + poolb_ref[...])                             # [B, H]
    logits = jnp.dot(pooled, clsw_ref[...], preferred_element_type=jnp.float32) + clsb_ref[...]
    logits_ref[...] = logits                                        # [B, 128] lane-dense

    # ---- softmax cross-entropy (padded cols carry -1e30 bias -> exp underflows to 0) ----
    lbl = lbl_ref[...]                                              # [B, 1] int32
    mx = jnp.max(logits, axis=-1, keepdims=True)
    lse = jnp.log(jnp.sum(jnp.exp(logits - mx), axis=-1, keepdims=True)) + mx
    logp = logits - lse
    iota_c = jax.lax.broadcasted_iota(jnp.int32, logits.shape, 1)
    onehot_l = (lbl == iota_c).astype(jnp.float32)
    nll = -jnp.sum(onehot_l * logp, axis=-1, keepdims=True)         # [B, 1]
    loss_ref[0, 0] = jnp.sum(nll) * (1.0 / batch)                   # scalar -> SMEM


# ----------------------------- parameters ------------------------------------
def init_params(seed=0):
    keys = iter(jax.random.split(jax.random.PRNGKey(seed), 32))

    def nrm(shape):
        return 0.02 * jax.random.normal(next(keys), shape, dtype=jnp.float32)

    def zeros(shape):
        return jnp.zeros(shape, jnp.float32)

    def ones(shape):
        return jnp.ones(shape, jnp.float32)

    L, H, I = N_LAYERS, HIDDEN, INTER
    return {
        "word": nrm((VOCAB, H)),
        "pos": nrm((MAX_POS, H)),
        "type": nrm((2, H)),
        "emb_ln_g": ones((H,)), "emb_ln_b": zeros((H,)),
        # per-layer weights stored stacked over layers, QKV pre-concatenated
        "wqkv": nrm((L, H, 3 * H)), "bqkv": zeros((L, 3 * H)),
        "wo": nrm((L, H, H)), "bo": zeros((L, H)),
        "ln1_g": ones((L, H)), "ln1_b": zeros((L, H)),
        "wi": nrm((L, H, I)), "bi": zeros((L, I)),
        "wo2": nrm((L, I, H)), "bo2": zeros((L, H)),
        "ln2_g": ones((L, H)), "ln2_b": zeros((L, H)),
        "pool_w": nrm((H, H)), "pool_b": zeros((H,)),
        "cls_w": nrm((H, NUM_LABELS)), "cls_b": zeros((NUM_LABELS,)),
    }


# ----------------------------- forward (wrapper) ------------------------------
def classifier_forward(params, input_ids, attention_mask, labels):
    # TODO(synk): dropout layers treated as identity (inference-mode forward).
    Bn, Sn = input_ids.shape
    M = Bn * Sn
    H, L, I = HIDDEN, N_LAYERS, INTER

    ids = input_ids.reshape(M, 1).astype(jnp.int32)
    lbl = labels.reshape(Bn, 1).astype(jnp.int32)
    mask = (1.0 - attention_mask.astype(jnp.float32)) * -10000.0        # [B, S] additive
    pos = jnp.tile(params["pos"][:Sn], (Bn, 1))                         # [M, H]
    typ = params["type"][0:1]                                           # token_type_id == 0

    # pad classifier to 128 lanes: zero weight columns, -1e30 bias on padded logits
    cls_w_pad = jnp.pad(params["cls_w"], ((0, 0), (0, C_PAD - NUM_LABELS)))
    cls_b_pad = jnp.concatenate(
        [params["cls_b"], jnp.full((C_PAD - NUM_LABELS,), -1e30, jnp.float32)]
    ).reshape(1, C_PAD)

    def r2(a):  # [L, X] bias -> [L, 1, X]
        return a.reshape(a.shape[0], 1, a.shape[1])

    kernel = functools.partial(
        _bert_fused_kernel,
        n_layers=L, n_heads=N_HEADS, head_dim=HEAD_DIM,
        batch=Bn, seq=Sn, hidden=H)

    logits_pad, loss = pl.pallas_call(
        kernel,
        out_shape=(jax.ShapeDtypeStruct((Bn, C_PAD), jnp.float32),
                   jax.ShapeDtypeStruct((1, 1), jnp.float32)),
        grid=(1,),
        in_specs=[
            pl.BlockSpec((M, 1), lambda i: (0, 0)),                     # ids
            pl.BlockSpec((Bn, 1), lambda i: (0, 0)),                    # labels
            pl.BlockSpec((Bn, Sn), lambda i: (0, 0)),                   # additive mask
            pl.BlockSpec((VOCAB, H), lambda i: (0, 0)),                 # word table
            pl.BlockSpec((M, H), lambda i: (0, 0)),                     # pos (tiled)
            pl.BlockSpec((1, H), lambda i: (0, 0)),                     # type row
            pl.BlockSpec((1, H), lambda i: (0, 0)),                     # emb LN gamma
            pl.BlockSpec((1, H), lambda i: (0, 0)),                     # emb LN beta
            pl.BlockSpec((L, H, 3 * H), lambda i: (0, 0, 0)),           # wqkv
            pl.BlockSpec((L, 1, 3 * H), lambda i: (0, 0, 0)),           # bqkv
            pl.BlockSpec((L, H, H), lambda i: (0, 0, 0)),               # wo
            pl.BlockSpec((L, 1, H), lambda i: (0, 0, 0)),               # bo
            pl.BlockSpec((L, 1, H), lambda i: (0, 0, 0)),               # ln1 gamma
            pl.BlockSpec((L, 1, H), lambda i: (0, 0, 0)),               # ln1 beta
            pl.BlockSpec((L, H, I), lambda i: (0, 0, 0)),               # wi
            pl.BlockSpec((L, 1, I), lambda i: (0, 0, 0)),               # bi
            pl.BlockSpec((L, I, H), lambda i: (0, 0, 0)),               # wo2
            pl.BlockSpec((L, 1, H), lambda i: (0, 0, 0)),               # bo2
            pl.BlockSpec((L, 1, H), lambda i: (0, 0, 0)),               # ln2 gamma
            pl.BlockSpec((L, 1, H), lambda i: (0, 0, 0)),               # ln2 beta
            pl.BlockSpec((H, H), lambda i: (0, 0)),                     # pool_w
            pl.BlockSpec((1, H), lambda i: (0, 0)),                     # pool_b
            pl.BlockSpec((H, C_PAD), lambda i: (0, 0)),                 # cls_w (padded)
            pl.BlockSpec((1, C_PAD), lambda i: (0, 0)),                 # cls_b (padded)
        ],
        out_specs=(pl.BlockSpec((Bn, C_PAD), lambda i: (0, 0)),         # logits (padded)
                   pl.BlockSpec(memory_space=pltpu.MemorySpace.SMEM)),  # scalar loss
        compiler_params=pltpu.CompilerParams(dimension_semantics=("arbitrary",)),
    )(ids, lbl, mask,
      params["word"], pos, typ,
      params["emb_ln_g"].reshape(1, H), params["emb_ln_b"].reshape(1, H),
      params["wqkv"], r2(params["bqkv"]),
      params["wo"], r2(params["bo"]),
      r2(params["ln1_g"]), r2(params["ln1_b"]),
      params["wi"], r2(params["bi"]),
      params["wo2"], r2(params["bo2"]),
      r2(params["ln2_g"]), r2(params["ln2_b"]),
      params["pool_w"], params["pool_b"].reshape(1, H),
      cls_w_pad, cls_b_pad)

    logits = logits_pad[:, :NUM_LABELS]
    return loss[0, 0], logits


# ----------------------------------- main ------------------------------------
if __name__ == "__main__":
    params = init_params(seed=0)

    key = jax.random.PRNGKey(0)
    k_ids, k_lbl = jax.random.split(key)
    input_ids = jax.random.randint(k_ids, (B, S), 0, VOCAB, dtype=jnp.int32)
    attention_mask = jnp.ones((B, S), jnp.int32).at[1, -2:].set(0)   # pad last 2 of batch 1
    labels = jax.random.randint(k_lbl, (B,), 0, NUM_LABELS, dtype=jnp.int32)

    fwd = jax.jit(classifier_forward)
    loss, logits = fwd(params, input_ids, attention_mask, labels)
    jax.block_until_ready((loss, logits))

    assert logits.shape == (B, NUM_LABELS)
    assert bool(jnp.isfinite(loss)) and bool(jnp.all(jnp.isfinite(logits)))
    print("KERNEL_OK")
</pallas_src>

<mosaic_0001>
module attributes {stable_mosaic.version = 11 : i64} {
  func.func @_bert_fused_kernel(%arg0: i32, %arg1: memref<16x1xi32, #tpu.memory_space<vmem>>, %arg2: memref<2x1xi32, #tpu.memory_space<vmem>>, %arg3: memref<2x8xf32, #tpu.memory_space<vmem>>, %arg4: memref<128x32xf32, #tpu.memory_space<vmem>>, %arg5: memref<16x32xf32, #tpu.memory_space<vmem>>, %arg6: memref<1x32xf32, #tpu.memory_space<vmem>>, %arg7: memref<1x32xf32, #tpu.memory_space<vmem>>, %arg8: memref<1x32xf32, #tpu.memory_space<vmem>>, %arg9: memref<2x32x96xf32, #tpu.memory_space<vmem>>, %arg10: memref<2x1x96xf32, #tpu.memory_space<vmem>>, %arg11: memref<2x32x32xf32, #tpu.memory_space<vmem>>, %arg12: memref<2x1x32xf32, #tpu.memory_space<vmem>>, %arg13: memref<2x1x32xf32, #tpu.memory_space<vmem>>, %arg14: memref<2x1x32xf32, #tpu.memory_space<vmem>>, %arg15: memref<2x32x64xf32, #tpu.memory_space<vmem>>, %arg16: memref<2x1x64xf32, #tpu.memory_space<vmem>>, %arg17: memref<2x64x32xf32, #tpu.memory_space<vmem>>, %arg18: memref<2x1x32xf32, #tpu.memory_space<vmem>>, %arg19: memref<2x1x32xf32, #tpu.memory_space<vmem>>, %arg20: memref<2x1x32xf32, #tpu.memory_space<vmem>>, %arg21: memref<32x32xf32, #tpu.memory_space<vmem>>, %arg22: memref<1x32xf32, #tpu.memory_space<vmem>>, %arg23: memref<32x128xf32, #tpu.memory_space<vmem>>, %arg24: memref<1x128xf32, #tpu.memory_space<vmem>>, %arg25: memref<2x128xf32, #tpu.memory_space<vmem>>, %arg26: memref<1x1xf32, #tpu.memory_space<smem>>) attributes {dimension_semantics = [#tpu.dimension_semantics<arbitrary>], iteration_bounds = array<i64: 1>, scalar_prefetch = 0 : i64, scratch_operands = 0 : i64, tpu.core_type = #tpu.core_type<tc>, window_params = [{pipeline_mode = #tpu.pipeline_mode<synchronous>, transform_indices = @transform_0, window_bounds = array<i64: 16, 1>}, {pipeline_mode = #tpu.pipeline_mode<synchronous>, transform_indices = @transform_1, window_bounds = array<i64: 2, 1>}, {pipeline_mode = #tpu.pipeline_mode<synchronous>, transform_indices = @transform_2, window_bounds = array<i64: 2, 8>}, {pipeline_mode = #tpu.pipeline_mode<synchronous>, transform_indices = @transform_3, window_bounds = array<i64: 128, 32>}, {pipeline_mode = #tpu.pipeline_mode<synchronous>, transform_indices = @transform_4, window_bounds = array<i64: 16, 32>}, {pipeline_mode = #tpu.pipeline_mode<synchronous>, transform_indices = @transform_5, window_bounds = array<i64: 1, 32>}, {pipeline_mode = #tpu.pipeline_mode<synchronous>, transform_indices = @transform_6, window_bounds = array<i64: 1, 32>}, {pipeline_mode = #tpu.pipeline_mode<synchronous>, transform_indices = @transform_7, window_bounds = array<i64: 1, 32>}, {pipeline_mode = #tpu.pipeline_mode<synchronous>, transform_indices = @transform_8, window_bounds = array<i64: 2, 32, 96>}, {pipeline_mode = #tpu.pipeline_mode<synchronous>, transform_indices = @transform_9, window_bounds = array<i64: 2, 1, 96>}, {pipeline_mode = #tpu.pipeline_mode<synchronous>, transform_indices = @transform_10, window_bounds = array<i64: 2, 32, 32>}, {pipeline_mode = #tpu.pipeline_mode<synchronous>, transform_indices = @transform_11, window_bounds = array<i64: 2, 1, 32>}, {pipeline_mode = #tpu.pipeline_mode<synchronous>, transform_indices = @transform_12, window_bounds = array<i64: 2, 1, 32>}, {pipeline_mode = #tpu.pipeline_mode<synchronous>, transform_indices = @transform_13, window_bounds = array<i64: 2, 1, 32>}, {pipeline_mode = #tpu.pipeline_mode<synchronous>, transform_indices = @transform_14, window_bounds = array<i64: 2, 32, 64>}, {pipeline_mode = #tpu.pipeline_mode<synchronous>, transform_indices = @transform_15, window_bounds = array<i64: 2, 1, 64>}, {pipeline_mode = #tpu.pipeline_mode<synchronous>, transform_indices = @transform_16, window_bounds = array<i64: 2, 64, 32>}, {pipeline_mode = #tpu.pipeline_mode<synchronous>, transform_indices = @transform_17, window_bounds = array<i64: 2, 1, 32>}, {pipeline_mode = #tpu.pipeline_mode<synchronous>, transform_indices = @transform_18, window_bounds = array<i64: 2, 1, 32>}, {pipeline_mode = #tpu.pipeline_mode<synchronous>, transform_indices = @transform_19, window_bounds = array<i64: 2, 1, 32>}, {pipeline_mode = #tpu.pipeline_mode<synchronous>, transform_indices = @transform_20, window_bounds = array<i64: 32, 32>}, {pipeline_mode = #tpu.pipeline_mode<synchronous>, transform_indices = @transform_21, window_bounds = array<i64: 1, 32>}, {pipeline_mode = #tpu.pipeline_mode<synchronous>, transform_indices = @transform_22, window_bounds = array<i64: 32, 128>}, {pipeline_mode = #tpu.pipeline_mode<synchronous>, transform_indices = @transform_23, window_bounds = array<i64: 1, 128>}, {pipeline_mode = #tpu.pipeline_mode<synchronous>, transform_indices = @transform_24, window_bounds = array<i64: 2, 128>}, {transform_indices = @transform_25, window_bounds = array<i64: 1, 1>}]} {
    %c0 = arith.constant 0 : index
    %c0_0 = arith.constant 0 : index
    %0 = vector.load %arg1[%c0, %c0_0] : memref<16x1xi32, #tpu.memory_space<vmem>>, vector<16x1xi32>
    %1 = tpu.iota {dimensions = array<i32: 1>} : vector<16x128xi32>
    %2 = vector.broadcast %0 : vector<16x1xi32> to vector<16x128xi32>
    %3 = arith.cmpi eq, %2, %1 : vector<16x128xi32>
    %4 = arith.extui %3 : vector<16x128xi1> to vector<16x128xi32>
    %5 = arith.sitofp %4 : vector<16x128xi32> to vector<16x128xf32>
    %c0_1 = arith.constant 0 : index
    %c0_2 = arith.constant 0 : index
    %6 = vector.load %arg4[%c0_1, %c0_2] : memref<128x32xf32, #tpu.memory_space<vmem>>, vector<128x32xf32>
    %cst = arith.constant dense<0.000000e+00> : vector<16x32xf32>
    %7 = tpu.matmul %5, %6, %cst {dimension_numbers = #tpu.dot_dimension_numbers<[1], [0], [0], [1], [0, 0, 1, 1], [], []>} : vector<16x128xf32>, vector<128x32xf32>, vector<16x32xf32> -> vector<16x32xf32>
    %c0_3 = arith.constant 0 : index
    %c0_4 = arith.constant 0 : index
    %8 = vector.load %arg5[%c0_3, %c0_4] : memref<16x32xf32, #tpu.memory_space<vmem>>, vector<16x32xf32>
    %9 = arith.addf %7, %8 : vector<16x32xf32>
    %c0_5 = arith.constant 0 : index
    %c0_6 = arith.constant 0 : index
    %10 = vector.load %arg6[%c0_5, %c0_6] : memref<1x32xf32, #tpu.memory_space<vmem>>, vector<1x32xf32>
    %11 = vector.broadcast %10 : vector<1x32xf32> to vector<16x32xf32>
    %12 = arith.addf %9, %11 : vector<16x32xf32>
    %c0_7 = arith.constant 0 : index
    %c0_8 = arith.constant 0 : index
    %13 = vector.load %arg7[%c0_7, %c0_8] : memref<1x32xf32, #tpu.memory_space<vmem>>, vector<1x32xf32>
    %c0_9 = arith.constant 0 : index
    %c0_10 = arith.constant 0 : index
    %14 = vector.load %arg8[%c0_9, %c0_10] : memref<1x32xf32, #tpu.memory_space<vmem>>, vector<1x32xf32>
    %cst_11 = arith.constant dense<0.000000e+00> : vector<16xf32>
    %15 = vector.multi_reduction <add>, %12, %cst_11 [1] : vector<16x32xf32> to vector<16xf32>
    %16 = vector.shape_cast %15 : vector<16xf32> to vector<16x1xf32>
    %cst_12 = arith.constant 3.200000e+01 : f32
    %17 = vector.broadcast %cst_12 : f32 to vector<16x1xf32>
    %18 = arith.divf %16, %17 : vector<16x1xf32>
    %19 = vector.broadcast %18 : vector<16x1xf32> to vector<16x32xf32>
    %20 = arith.subf %12, %19 : vector<16x32xf32>
    %21 = arith.mulf %20, %20 : vector<16x32xf32>
    %cst_13 = arith.constant dense<0.000000e+00> : vector<16xf32>
    %22 = vector.multi_reduction <add>, %21, %cst_13 [1] : vector<16x32xf32> to vector<16xf32>
    %23 = vector.shape_cast %22 : vector<16xf32> to vector<16x1xf32>
    %cst_14 = arith.constant 3.200000e+01 : f32
    %24 = vector.broadcast %cst_14 : f32 to vector<16x1xf32>
    %25 = arith.divf %23, %24 : vector<16x1xf32>
    %cst_15 = arith.constant 9.99999996E-13 : f32
    %26 = vector.broadcast %cst_15 : f32 to vector<16x1xf32>
    %27 = arith.addf %25, %26 : vector<16x1xf32>
    %28 = math.rsqrt %27 : vector<16x1xf32>
    %29 = vector.broadcast %28 : vector<16x1xf32> to vector<16x32xf32>
    %30 = arith.mulf %20, %29 : vector<16x32xf32>
    %31 = vector.broadcast %13 : vector<1x32xf32> to vector<16x32xf32>
    %32 = arith.mulf %30, %31 : vector<16x32xf32>
    %33 = vector.broadcast %14 : vector<1x32xf32> to vector<16x32xf32>
    %34 = arith.addf %32, %33 : vector<16x32xf32>
    %c0_16 = arith.constant 0 : index
    %c0_17 = arith.constant 0 : index
    %35 = vector.load %arg3[%c0_16, %c0_17] : memref<2x8xf32, #tpu.memory_space<vmem>>, vector<2x8xf32>
    %c0_18 = arith.constant 0 : index
    %c0_19 = arith.constant 0 : index
    %c0_20 = arith.constant 0 : index
    %36 = vector.load %arg9[%c0_18, %c0_19, %c0_20] : memref<2x32x96xf32, #tpu.memory_space<vmem>>, vector<1x32x96xf32>
    %37 = vector.shape_cast %36 : vector<1x32x96xf32> to vector<32x96xf32>
    %cst_21 = arith.constant dense<0.000000e+00> : vector<16x96xf32>
    %38 = tpu.matmul %34, %37, %cst_21 {dimension_numbers = #tpu.dot_dimension_numbers<[1], [0], [0], [1], [0, 0, 1, 1], [], []>} : vector<16x32xf32>, vector<32x96xf32>, vector<16x96xf32> -> vector<16x96xf32>
    %c0_22 = arith.constant 0 : index
    %c0_23 = arith.constant 0 : index
    %c0_24 = arith.constant 0 : index
    %39 = vector.load %arg10[%c0_22, %c0_23, %c0_24] : memref<2x1x96xf32, #tpu.memory_space<vmem>>, vector<1x1x96xf32>
    %40 = vector.shape_cast %39 : vector<1x1x96xf32> to vector<1x96xf32>
    %41 = vector.broadcast %40 : vector<1x96xf32> to vector<16x96xf32>
    %42 = arith.addf %38, %41 : vector<16x96xf32>
    %43 = vector.extract_strided_slice %42 {offsets = [0, 0], sizes = [16, 32], strides = [1, 1]} : vector<16x96xf32> to vector<16x32xf32>
    %44 = vector.extract_strided_slice %42 {offsets = [0, 32], sizes = [16, 32], strides = [1, 1]} : vector<16x96xf32> to vector<16x32xf32>
    %45 = vector.extract_strided_slice %42 {offsets = [0, 64], sizes = [16, 32], strides = [1, 1]} : vector<16x96xf32> to vector<16x32xf32>
    %c0_25 = arith.constant 0 : index
    %c0_26 = arith.constant 0 : index
    %c0_27 = arith.constant 0 : index
    %46 = vector.load %arg11[%c0_25, %c0_26, %c0_27] : memref<2x32x32xf32, #tpu.memory_space<vmem>>, vector<1x32x32xf32>
    %47 = vector.shape_cast %46 : vector<1x32x32xf32> to vector<32x32xf32>
    %c0_28 = arith.constant 0 : index
    %c0_29 = arith.constant 0 : index
    %c0_30 = arith.constant 0 : index
    %48 = vector.load %arg12[%c0_28, %c0_29, %c0_30] : memref<2x1x32xf32, #tpu.memory_space<vmem>>, vector<1x1x32xf32>
    %49 = vector.shape_cast %48 : vector<1x1x32xf32> to vector<1x32xf32>
    %50 = vector.extract_strided_slice %43 {offsets = [0, 0], sizes = [8, 32], strides = [1, 1]} : vector<16x32xf32> to vector<8x32xf32>
    %51 = vector.extract_strided_slice %44 {offsets = [0, 0], sizes = [8, 32], strides = [1, 1]} : vector<16x32xf32> to vector<8x32xf32>
    %52 = vector.extract_strided_slice %45 {offsets = [0, 0], sizes = [8, 32], strides = [1, 1]} : vector<16x32xf32> to vector<8x32xf32>
    %53 = vector.extract_strided_slice %35 {offsets = [0, 0], sizes = [1, 8], strides = [1, 1]} : vector<2x8xf32> to vector<1x8xf32>
    %cst_31 = arith.constant 0.000000e+00 : f32
    %54 = vector.broadcast %cst_31 : f32 to vector<8x32xf32>
    %55 = vector.extract_strided_slice %50 {offsets = [0, 0], sizes = [8, 16], strides = [1, 1]} : vector<8x32xf32> to vector<8x16xf32>
    %56 = vector.extract_strided_slice %51 {offsets = [0, 0], sizes = [8, 16], strides = [1, 1]} : vector<8x32xf32> to vector<8x16xf32>
    %cst_32 = arith.constant dense<0.000000e+00> : vector<8x8xf32>
    %57 = tpu.matmul %55, %56, %cst_32 {dimension_numbers = #tpu.dot_dimension_numbers<[1], [1], [0], [0], [0, 0, 1, 0], [], []>} : vector<8x16xf32>, vector<8x16xf32>, vector<8x8xf32> -> vector<8x8xf32>
    %cst_33 = arith.constant 2.500000e-01 : f32
    %58 = vector.broadcast %cst_33 : f32 to vector<8x8xf32>
    %59 = arith.mulf %57, %58 : vector<8x8xf32>
    %60 = vector.broadcast %53 : vector<1x8xf32> to vector<8x8xf32>
    %61 = arith.addf %59, %60 : vector<8x8xf32>
    %cst_34 = arith.constant dense<0xFF800000> : vector<8xf32>
    %62 = vector.multi_reduction <maximumf>, %61, %cst_34 [1] : vector<8x8xf32> to vector<8xf32>
    %63 = vector.shape_cast %62 : vector<8xf32> to vector<8x1xf32>
    %64 = vector.broadcast %63 : vector<8x1xf32> to vector<8x8xf32>
    %65 = arith.subf %61, %64 : vector<8x8xf32>
    %66 = math.exp %65 : vector<8x8xf32>
    %cst_35 = arith.constant dense<0.000000e+00> : vector<8xf32>
    %67 = vector.multi_reduction <add>, %66, %cst_35 [1] : vector<8x8xf32> to vector<8xf32>
    %68 = vector.shape_cast %67 : vector<8xf32> to vector<8x1xf32>
    %69 = vector.broadcast %68 : vector<8x1xf32> to vector<8x8xf32>
    %70 = arith.divf %66, %69 : vector<8x8xf32>
    %71 = vector.extract_strided_slice %52 {offsets = [0, 0], sizes = [8, 16], strides = [1, 1]} : vector<8x32xf32> to vector<8x16xf32>
    %cst_36 = arith.constant dense<0.000000e+00> : vector<8x16xf32>
    %72 = tpu.matmul %70, %71, %cst_36 {dimension_numbers = #tpu.dot_dimension_numbers<[1], [0], [0], [1], [0, 0, 1, 1], [], []>} : vector<8x8xf32>, vector<8x16xf32>, vector<8x16xf32> -> vector<8x16xf32>
    %73 = vector.extract_strided_slice %47 {offsets = [0, 0], sizes = [16, 32], strides = [1, 1]} : vector<32x32xf32> to vector<16x32xf32>
    %cst_37 = arith.constant dense<0.000000e+00> : vector<8x32xf32>
    %74 = tpu.matmul %72, %73, %cst_37 {dimension_numbers = #tpu.dot_dimension_numbers<[1], [0], [0], [1], [0, 0, 1, 1], [], []>} : vector<8x16xf32>, vector<16x32xf32>, vector<8x32xf32> -> vector<8x32xf32>
    %75 = arith.addf %54, %74 : vector<8x32xf32>
    %76 = vector.extract_strided_slice %50 {offsets = [0, 16], sizes = [8, 16], strides = [1, 1]} : vector<8x32xf32> to vector<8x16xf32>
    %77 = vector.extract_strided_slice %51 {offsets = [0, 16], sizes = [8, 16], strides = [1, 1]} : vector<8x32xf32> to vector<8x16xf32>
    %cst_38 = arith.constant dense<0.000000e+00> : vector<8x8xf32>
    %78 = tpu.matmul %76, %77, %cst_38 {dimension_numbers = #tpu.dot_dimension_numbers<[1], [1], [0], [0], [0, 0, 1, 0], [], []>} : vector<8x16xf32>, vector<8x16xf32>, vector<8x8xf32> -> vector<8x8xf32>
    %cst_39 = arith.constant 2.500000e-01 : f32
    %79 = vector.broadcast %cst_39 : f32 to vector<8x8xf32>
    %80 = arith.mulf %78, %79 : vector<8x8xf32>
    %81 = vector.broadcast %53 : vector<1x8xf32> to vector<8x8xf32>
    %82 = arith.addf %80, %81 : vector<8x8xf32>
    %cst_40 = arith.constant dense<0xFF800000> : vector<8xf32>
    %83 = vector.multi_reduction <maximumf>, %82, %cst_40 [1] : vector<8x8xf32> to vector<8xf32>
    %84 = vector.shape_cast %83 : vector<8xf32> to vector<8x1xf32>
    %85 = vector.broadcast %84 : vector<8x1xf32> to vector<8x8xf32>
    %86 = arith.subf %82, %85 : vector<8x8xf32>
    %87 = math.exp %86 : vector<8x8xf32>
    %cst_41 = arith.constant dense<0.000000e+00> : vector<8xf32>
    %88 = vector.multi_reduction <add>, %87, %cst_41 [1] : vector<8x8xf32> to vector<8xf32>
    %89 = vector.shape_cast %88 : vector<8xf32> to vector<8x1xf32>
    %90 = vector.broadcast %89 : vector<8x1xf32> to vector<8x8xf32>
    %91 = arith.divf %87, %90 : vector<8x8xf32>
    %92 = vector.extract_strided_slice %52 {offsets = [0, 16], sizes = [8, 16], strides = [1, 1]} : vector<8x32xf32> to vector<8x16xf32>
    %cst_42 = arith.constant dense<0.000000e+00> : vector<8x16xf32>
    %93 = tpu.matmul %91, %92, %cst_42 {dimension_numbers = #tpu.dot_dimension_numbers<[1], [0], [0], [1], [0, 0, 1, 1], [], []>} : vector<8x8xf32>, vector<8x16xf32>, vector<8x16xf32> -> vector<8x16xf32>
    %94 = vector.extract_strided_slice %47 {offsets = [16, 0], sizes = [16, 32], strides = [1, 1]} : vector<32x32xf32> to vector<16x32xf32>
    %cst_43 = arith.constant dense<0.000000e+00> : vector<8x32xf32>
    %95 = tpu.matmul %93, %94, %cst_43 {dimension_numbers = #tpu.dot_dimension_numbers<[1], [0], [0], [1], [0, 0, 1, 1], [], []>} : vector<8x16xf32>, vector<16x32xf32>, vector<8x32xf32> -> vector<8x32xf32>
    %96 = arith.addf %75, %95 : vector<8x32xf32>
    %97 = vector.broadcast %49 : vector<1x32xf32> to vector<8x32xf32>
    %98 = arith.addf %96, %97 : vector<8x32xf32>
    %99 = vector.extract_strided_slice %43 {offsets = [8, 0], sizes = [8, 32], strides = [1, 1]} : vector<16x32xf32> to vector<8x32xf32>
    %100 = vector.extract_strided_slice %44 {offsets = [8, 0], sizes = [8, 32], strides = [1, 1]} : vector<16x32xf32> to vector<8x32xf32>
    %101 = vector.extract_strided_slice %45 {offsets = [8, 0], sizes = [8, 32], strides = [1, 1]} : vector<16x32xf32> to vector<8x32xf32>
    %102 = vector.extract_strided_slice %35 {offsets = [1, 0], sizes = [1, 8], strides = [1, 1]} : vector<2x8xf32> to vector<1x8xf32>
    %cst_44 = arith.constant 0.000000e+00 : f32
    %103 = vector.broadcast %cst_44 : f32 to vector<8x32xf32>
    %104 = vector.extract_strided_slice %99 {offsets = [0, 0], sizes = [8, 16], strides = [1, 1]} : vector<8x32xf32> to vector<8x16xf32>
    %105 = vector.extract_strided_slice %100 {offsets = [0, 0], sizes = [8, 16], strides = [1, 1]} : vector<8x32xf32> to vector<8x16xf32>
    %cst_45 = arith.constant dense<0.000000e+00> : vector<8x8xf32>
    %106 = tpu.matmul %104, %105, %cst_45 {dimension_numbers = #tpu.dot_dimension_numbers<[1], [1], [0], [0], [0, 0, 1, 0], [], []>} : vector<8x16xf32>, vector<8x16xf32>, vector<8x8xf32> -> vector<8x8xf32>
    %cst_46 = arith.constant 2.500000e-01 : f32
    %107 = vector.broadcast %cst_46 : f32 to vector<8x8xf32>
    %108 = arith.mulf %106, %107 : vector<8x8xf32>
    %109 = vector.broadcast %102 : vector<1x8xf32> to vector<8x8xf32>
    %110 = arith.addf %108, %109 : vector<8x8xf32>
    %cst_47 = arith.constant dense<0xFF800000> : vector<8xf32>
    %111 = vector.multi_reduction <maximumf>, %110, %cst_47 [1] : vector<8x8xf32> to vector<8xf32>
    %112 = vector.shape_cast %111 : vector<8xf32> to vector<8x1xf32>
    %113 = vector.broadcast %112 : vector<8x1xf32> to vector<8x8xf32>
    %114 = arith.subf %110, %113 : vector<8x8xf32>
    %115 = math.exp %114 : vector<8x8xf32>
    %cst_48 = arith.constant dense<0.000000e+00> : vector<8xf32>
    %116 = vector.multi_reduction <add>, %115, %cst_48 [1] : vector<8x8xf32> to vector<8xf32>
    %117 = vector.shape_cast %116 : vector<8xf32> to vector<8x1xf32>
    %118 = vector.broadcast %117 : vector<8x1xf32> to vector<8x8xf32>
    %119 = arith.divf %115, %118 : vector<8x8xf32>
    %120 = vector.extract_strided_slice %101 {offsets = [0, 0], sizes = [8, 16], strides = [1, 1]} : vector<8x32xf32> to vector<8x16xf32>
    %cst_49 = arith.constant dense<0.000000e+00> : vector<8x16xf32>
    %121 = tpu.matmul %119, %120, %cst_49 {dimension_numbers = #tpu.dot_dimension_numbers<[1], [0], [0], [1], [0, 0, 1, 1], [], []>} : vector<8x8xf32>, vector<8x16xf32>, vector<8x16xf32> -> vector<8x16xf32>
    %122 = vector.extract_strided_slice %47 {offsets = [0, 0], sizes = [16, 32], strides = [1, 1]} : vector<32x32xf32> to vector<16x32xf32>
    %cst_50 = arith.constant dense<0.000000e+00> : vector<8x32xf32>
    %123 = tpu.matmul %121, %122, %cst_50 {dimension_numbers = #tpu.dot_dimension_numbers<[1], [0], [0], [1], [0, 0, 1, 1], [], []>} : vector<8x16xf32>, vector<16x32xf32>, vector<8x32xf32> -> vector<8x32xf32>
    %124 = arith.addf %103, %123 : vector<8x32xf32>
    %125 = vector.extract_strided_slice %99 {offsets = [0, 16], sizes = [8, 16], strides = [1, 1]} : vector<8x32xf32> to vector<8x16xf32>
    %126 = vector.extract_strided_slice %100 {offsets = [0, 16], sizes = [8, 16], strides = [1, 1]} : vector<8x32xf32> to vector<8x16xf32>
    %cst_51 = arith.constant dense<0.000000e+00> : vector<8x8xf32>
    %127 = tpu.matmul %125, %126, %cst_51 {dimension_numbers = #tpu.dot_dimension_numbers<[1], [1], [0], [0], [0, 0, 1, 0], [], []>} : vector<8x16xf32>, vector<8x16xf32>, vector<8x8xf32> -> vector<8x8xf32>
    %cst_52 = arith.constant 2.500000e-01 : f32
    %128 = vector.broadcast %cst_52 : f32 to vector<8x8xf32>
    %129 = arith.mulf %127, %128 : vector<8x8xf32>
    %130 = vector.broadcast %102 : vector<1x8xf32> to vector<8x8xf32>
    %131 = arith.addf %129, %130 : vector<8x8xf32>
    %cst_53 = arith.constant dense<0xFF800000> : vector<8xf32>
    %132 = vector.multi_reduction <maximumf>, %131, %cst_53 [1] : vector<8x8xf32> to vector<8xf32>
    %133 = vector.shape_cast %132 : vector<8xf32> to vector<8x1xf32>
    %134 = vector.broadcast %133 : vector<8x1xf32> to vector<8x8xf32>
    %135 = arith.subf %131, %134 : vector<8x8xf32>
    %136 = math.exp %135 : vector<8x8xf32>
    %cst_54 = arith.constant dense<0.000000e+00> : vector<8xf32>
    %137 = vector.multi_reduction <add>, %136, %cst_54 [1] : vector<8x8xf32> to vector<8xf32>
    %138 = vector.shape_cast %137 : vector<8xf32> to vector<8x1xf32>
    %139 = vector.broadcast %138 : vector<8x1xf32> to vector<8x8xf32>
    %140 = arith.divf %136, %139 : vector<8x8xf32>
    %141 = vector.extract_strided_slice %101 {offsets = [0, 16], sizes = [8, 16], strides = [1, 1]} : vector<8x32xf32> to vector<8x16xf32>
    %cst_55 = arith.constant dense<0.000000e+00> : vector<8x16xf32>
    %142 = tpu.matmul %140, %141, %cst_55 {dimension_numbers = #tpu.dot_dimension_numbers<[1], [0], [0], [1], [0, 0, 1, 1], [], []>} : vector<8x8xf32>, vector<8x16xf32>, vector<8x16xf32> -> vector<8x16xf32>
    %143 = vector.extract_strided_slice %47 {offsets = [16, 0], sizes = [16, 32], strides = [1, 1]} : vector<32x32xf32> to vector<16x32xf32>
    %cst_56 = arith.constant dense<0.000000e+00> : vector<8x32xf32>
    %144 = tpu.matmul %142, %143, %cst_56 {dimension_numbers = #tpu.dot_dimension_numbers<[1], [0], [0], [1], [0, 0, 1, 1], [], []>} : vector<8x16xf32>, vector<16x32xf32>, vector<8x32xf32> -> vector<8x32xf32>
    %145 = arith.addf %124, %144 : vector<8x32xf32>
    %146 = vector.broadcast %49 : vector<1x32xf32> to vector<8x32xf32>
    %147 = arith.addf %145, %146 : vector<8x32xf32>
    %148 = tpu.concatenate %98, %147 in 0 : vector<8x32xf32>, vector<8x32xf32> -> vector<16x32xf32>
    %149 = arith.addf %148, %34 : vector<16x32xf32>
    %c0_57 = arith.constant 0 : index
    %c0_58 = arith.constant 0 : index
    %c0_59 = arith.constant 0 : index
    %150 = vector.load %arg13[%c0_57, %c0_58, %c0_59] : memref<2x1x32xf32, #tpu.memory_space<vmem>>, vector<1x1x32xf32>
    %151 = vector.shape_cast %150 : vector<1x1x32xf32> to vector<1x32xf32>
    %c0_60 = arith.constant 0 : index
    %c0_61 = arith.constant 0 : index
    %c0_62 = arith.constant 0 : index
    %152 = vector.load %arg14[%c0_60, %c0_61, %c0_62] : memref<2x1x32xf32, #tpu.memory_space<vmem>>, vector<1x1x32xf32>
    %153 = vector.shape_cast %152 : vector<1x1x32xf32> to vector<1x32xf32>
    %cst_63 = arith.constant dense<0.000000e+00> : vector<16xf32>
    %154 = vector.multi_reduction <add>, %149, %cst_63 [1] : vector<16x32xf32> to vector<16xf32>
    %155 = vector.shape_cast %154 : vector<16xf32> to vector<16x1xf32>
    %cst_64 = arith.constant 3.200000e+01 : f32
    %156 = vector.broadcast %cst_64 : f32 to vector<16x1xf32>
    %157 = arith.divf %155, %156 : vector<16x1xf32>
    %158 = vector.broadcast %157 : vector<16x1xf32> to vector<16x32xf32>
    %159 = arith.subf %149, %158 : vector<16x32xf32>
    %160 = arith.mulf %159, %159 : vector<16x32xf32>
    %cst_65 = arith.constant dense<0.000000e+00> : vector<16xf32>
    %161 = vector.multi_reduction <add>, %160, %cst_65 [1] : vector<16x32xf32> to vector<16xf32>
    %162 = vector.shape_cast %161 : vector<16xf32> to vector<16x1xf32>
    %cst_66 = arith.constant 3.200000e+01 : f32
    %163 = vector.broadcast %cst_66 : f32 to vector<16x1xf32>
    %164 = arith.divf %162, %163 : vector<16x1xf32>
    %cst_67 = arith.constant 9.99999996E-13 : f32
    %165 = vector.broadcast %cst_67 : f32 to vector<16x1xf32>
    %166 = arith.addf %164, %165 : vector<16x1xf32>
    %167 = math.rsqrt %166 : vector<16x1xf32>
    %168 = vector.broadcast %167 : vector<16x1xf32> to vector<16x32xf32>
    %169 = arith.mulf %159, %168 : vector<16x32xf32>
    %170 = vector.broadcast %151 : vector<1x32xf32> to vector<16x32xf32>
    %171 = arith.mulf %169, %170 : vector<16x32xf32>
    %172 = vector.broadcast %153 : vector<1x32xf32> to vector<16x32xf32>
    %173 = arith.addf %171, %172 : vector<16x32xf32>
    %c0_68 = arith.constant 0 : index
    %c0_69 = arith.constant 0 : index
    %c0_70 = arith.constant 0 : index
    %174 = vector.load %arg15[%c0_68, %c0_69, %c0_70] : memref<2x32x64xf32, #tpu.memory_space<vmem>>, vector<1x32x64xf32>
    %175 = vector.shape_cast %174 : vector<1x32x64xf32> to vector<32x64xf32>
    %cst_71 = arith.constant dense<0.000000e+00> : vector<16x64xf32>
    %176 = tpu.matmul %173, %175, %cst_71 {dimension_numbers = #tpu.dot_dimension_numbers<[1], [0], [0], [1], [0, 0, 1, 1], [], []>} : vector<16x32xf32>, vector<32x64xf32>, vector<16x64xf32> -> vector<16x64xf32>
    %c0_72 = arith.constant 0 : index
    %c0_73 = arith.constant 0 : index
    %c0_74 = arith.constant 0 : index
    %177 = vector.load %arg16[%c0_72, %c0_73, %c0_74] : memref<2x1x64xf32, #tpu.memory_space<vmem>>, vector<1x1x64xf32>
    %178 = vector.shape_cast %177 : vector<1x1x64xf32> to vector<1x64xf32>
    %179 = vector.broadcast %178 : vector<1x64xf32> to vector<16x64xf32>
    %180 = arith.addf %176, %179 : vector<16x64xf32>
    %cst_75 = arith.constant 5.000000e-01 : f32
    %181 = vector.broadcast %cst_75 : f32 to vector<16x64xf32>
    %182 = arith.mulf %181, %180 : vector<16x64xf32>
    %cst_76 = arith.constant 4.471500e-02 : f32
    %183 = vector.broadcast %cst_76 : f32 to vector<16x64xf32>
    %184 = arith.mulf %183, %180 : vector<16x64xf32>
    %185 = arith.mulf %184, %180 : vector<16x64xf32>
    %186 = arith.mulf %185, %180 : vector<16x64xf32>
    %187 = arith.addf %180, %186 : vector<16x64xf32>
    %cst_77 = arith.constant 0.797884583 : f32
    %188 = vector.broadcast %cst_77 : f32 to vector<16x64xf32>
    %189 = arith.mulf %188, %187 : vector<16x64xf32>
    %190 = math.tanh %189 : vector<16x64xf32>
    %cst_78 = arith.constant 1.000000e+00 : f32
    %191 = vector.broadcast %cst_78 : f32 to vector<16x64xf32>
    %192 = arith.addf %191, %190 : vector<16x64xf32>
    %193 = arith.mulf %182, %192 : vector<16x64xf32>
    %c0_79 = arith.constant 0 : index
    %c0_80 = arith.constant 0 : index
    %c0_81 = arith.constant 0 : index
    %194 = vector.load %arg17[%c0_79, %c0_80, %c0_81] : memref<2x64x32xf32, #tpu.memory_space<vmem>>, vector<1x64x32xf32>
    %195 = vector.shape_cast %194 : vector<1x64x32xf32> to vector<64x32xf32>
    %cst_82 = arith.constant dense<0.000000e+00> : vector<16x32xf32>
    %196 = tpu.matmul %193, %195, %cst_82 {dimension_numbers = #tpu.dot_dimension_numbers<[1], [0], [0], [1], [0, 0, 1, 1], [], []>} : vector<16x64xf32>, vector<64x32xf32>, vector<16x32xf32> -> vector<16x32xf32>
    %c0_83 = arith.constant 0 : index
    %c0_84 = arith.constant 0 : index
    %c0_85 = arith.constant 0 : index
    %197 = vector.load %arg18[%c0_83, %c0_84, %c0_85] : memref<2x1x32xf32, #tpu.memory_space<vmem>>, vector<1x1x32xf32>
    %198 = vector.shape_cast %197 : vector<1x1x32xf32> to vector<1x32xf32>
    %199 = vector.broadcast %198 : vector<1x32xf32> to vector<16x32xf32>
    %200 = arith.addf %196, %199 : vector<16x32xf32>
    %201 = arith.addf %200, %173 : vector<16x32xf32>
    %c0_86 = arith.constant 0 : index
    %c0_87 = arith.constant 0 : index
    %c0_88 = arith.constant 0 : index
    %202 = vector.load %arg19[%c0_86, %c0_87, %c0_88] : memref<2x1x32xf32, #tpu.memory_space<vmem>>, vector<1x1x32xf32>
    %203 = vector.shape_cast %202 : vector<1x1x32xf32> to vector<1x32xf32>
    %c0_89 = arith.constant 0 : index
    %c0_90 = arith.constant 0 : index
    %c0_91 = arith.constant 0 : index
    %204 = vector.load %arg20[%c0_89, %c0_90, %c0_91] : memref<2x1x32xf32, #tpu.memory_space<vmem>>, vector<1x1x32xf32>
    %205 = vector.shape_cast %204 : vector<1x1x32xf32> to vector<1x32xf32>
    %cst_92 = arith.constant dense<0.000000e+00> : vector<16xf32>
    %206 = vector.multi_reduction <add>, %201, %cst_92 [1] : vector<16x32xf32> to vector<16xf32>
    %207 = vector.shape_cast %206 : vector<16xf32> to vector<16x1xf32>
    %cst_93 = arith.constant 3.200000e+01 : f32
    %208 = vector.broadcast %cst_93 : f32 to vector<16x1xf32>
    %209 = arith.divf %207, %208 : vector<16x1xf32>
    %210 = vector.broadcast %209 : vector<16x1xf32> to vector<16x32xf32>
    %211 = arith.subf %201, %210 : vector<16x32xf32>
    %212 = arith.mulf %211, %211 : vector<16x32xf32>
    %cst_94 = arith.constant dense<0.000000e+00> : vector<16xf32>
    %213 = vector.multi_reduction <add>, %212, %cst_94 [1] : vector<16x32xf32> to vector<16xf32>
    %214 = vector.shape_cast %213 : vector<16xf32> to vector<16x1xf32>
    %cst_95 = arith.constant 3.200000e+01 : f32
    %215 = vector.broadcast %cst_95 : f32 to vector<16x1xf32>
    %216 = arith.divf %214, %215 : vector<16x1xf32>
    %cst_96 = arith.constant 9.99999996E-13 : f32
    %217 = vector.broadcast %cst_96 : f32 to vector<16x1xf32>
    %218 = arith.addf %216, %217 : vector<16x1xf32>
    %219 = math.rsqrt %218 : vector<16x1xf32>
    %220 = vector.broadcast %219 : vector<16x1xf32> to vector<16x32xf32>
    %221 = arith.mulf %211, %220 : vector<16x32xf32>
    %222 = vector.broadcast %203 : vector<1x32xf32> to vector<16x32xf32>
    %223 = arith.mulf %221, %222 : vector<16x32xf32>
    %224 = vector.broadcast %205 : vector<1x32xf32> to vector<16x32xf32>
    %225 = arith.addf %223, %224 : vector<16x32xf32>
    %c1 = arith.constant 1 : index
    %c0_97 = arith.constant 0 : index
    %c0_98 = arith.constant 0 : index
    %226 = vector.load %arg9[%c1, %c0_97, %c0_98] : memref<2x32x96xf32, #tpu.memory_space<vmem>>, vector<1x32x96xf32>
    %227 = vector.shape_cast %226 : vector<1x32x96xf32> to vector<32x96xf32>
    %cst_99 = arith.constant dense<0.000000e+00> : vector<16x96xf32>
    %228 = tpu.matmul %225, %227, %cst_99 {dimension_numbers = #tpu.dot_dimension_numbers<[1], [0], [0], [1], [0, 0, 1, 1], [], []>} : vector<16x32xf32>, vector<32x96xf32>, vector<16x96xf32> -> vector<16x96xf32>
    %c1_100 = arith.constant 1 : index
    %c0_101 = arith.constant 0 : index
    %c0_102 = arith.constant 0 : index
    %229 = vector.load %arg10[%c1_100, %c0_101, %c0_102] : memref<2x1x96xf32, #tpu.memory_space<vmem>>, vector<1x1x96xf32>
    %230 = vector.shape_cast %229 : vector<1x1x96xf32> to vector<1x96xf32>
    %231 = vector.broadcast %230 : vector<1x96xf32> to vector<16x96xf32>
    %232 = arith.addf %228, %231 : vector<16x96xf32>
    %233 = vector.extract_strided_slice %232 {offsets = [0, 0], sizes = [16, 32], strides = [1, 1]} : vector<16x96xf32> to vector<16x32xf32>
    %234 = vector.extract_strided_slice %232 {offsets = [0, 32], sizes = [16, 32], strides = [1, 1]} : vector<16x96xf32> to vector<16x32xf32>
    %235 = vector.extract_strided_slice %232 {offsets = [0, 64], sizes = [16, 32], strides = [1, 1]} : vector<16x96xf32> to vector<16x32xf32>
    %c1_103 = arith.constant 1 : index
    %c0_104 = arith.constant 0 : index
    %c0_105 = arith.constant 0 : index
    %236 = vector.load %arg11[%c1_103, %c0_104, %c0_105] : memref<2x32x32xf32, #tpu.memory_space<vmem>>, vector<1x32x32xf32>
    %237 = vector.shape_cast %236 : vector<1x32x32xf32> to vector<32x32xf32>
    %c1_106 = arith.constant 1 : index
    %c0_107 = arith.constant 0 : index
    %c0_108 = arith.constant 0 : index
    %238 = vector.load %arg12[%c1_106, %c0_107, %c0_108] : memref<2x1x32xf32, #tpu.memory_space<vmem>>, vector<1x1x32xf32>
    %239 = vector.shape_cast %238 : vector<1x1x32xf32> to vector<1x32xf32>
    %240 = vector.extract_strided_slice %233 {offsets = [0, 0], sizes = [8, 32], strides = [1, 1]} : vector<16x32xf32> to vector<8x32xf32>
    %241 = vector.extract_strided_slice %234 {offsets = [0, 0], sizes = [8, 32], strides = [1, 1]} : vector<16x32xf32> to vector<8x32xf32>
    %242 = vector.extract_strided_slice %235 {offsets = [0, 0], sizes = [8, 32], strides = [1, 1]} : vector<16x32xf32> to vector<8x32xf32>
    %243 = vector.extract_strided_slice %35 {offsets = [0, 0], sizes = [1, 8], strides = [1, 1]} : vector<2x8xf32> to vector<1x8xf32>
    %cst_109 = arith.constant 0.000000e+00 : f32
    %244 = vector.broadcast %cst_109 : f32 to vector<8x32xf32>
    %245 = vector.extract_strided_slice %240 {offsets = [0, 0], sizes = [8, 16], strides = [1, 1]} : vector<8x32xf32> to vector<8x16xf32>
    %246 = vector.extract_strided_slice %241 {offsets = [0, 0], sizes = [8, 16], strides = [1, 1]} : vector<8x32xf32> to vector<8x16xf32>
    %cst_110 = arith.constant dense<0.000000e+00> : vector<8x8xf32>
    %247 = tpu.matmul %245, %246, %cst_110 {dimension_numbers = #tpu.dot_dimension_numbers<[1], [1], [0], [0], [0, 0, 1, 0], [], []>} : vector<8x16xf32>, vector<8x16xf32>, vector<8x8xf32> -> vector<8x8xf32>
    %cst_111 = arith.constant 2.500000e-01 : f32
    %248 = vector.broadcast %cst_111 : f32 to vector<8x8xf32>
    %249 = arith.mulf %247, %248 : vector<8x8xf32>
    %250 = vector.broadcast %243 : vector<1x8xf32> to vector<8x8xf32>
    %251 = arith.addf %249, %250 : vector<8x8xf32>
    %cst_112 = arith.constant dense<0xFF800000> : vector<8xf32>
    %252 = vector.multi_reduction <maximumf>, %251, %cst_112 [1] : vector<8x8xf32> to vector<8xf32>
    %253 = vector.shape_cast %252 : vector<8xf32> to vector<8x1xf32>
    %254 = vector.broadcast %253 : vector<8x1xf32> to vector<8x8xf32>
    %255 = arith.subf %251, %254 : vector<8x8xf32>
    %256 = math.exp %255 : vector<8x8xf32>
    %cst_113 = arith.constant dense<0.000000e+00> : vector<8xf32>
    %257 = vector.multi_reduction <add>, %256, %cst_113 [1] : vector<8x8xf32> to vector<8xf32>
    %258 = vector.shape_cast %257 : vector<8xf32> to vector<8x1xf32>
    %259 = vector.broadcast %258 : vector<8x1xf32> to vector<8x8xf32>
    %260 = arith.divf %256, %259 : vector<8x8xf32>
    %261 = vector.extract_strided_slice %242 {offsets = [0, 0], sizes = [8, 16], strides = [1, 1]} : vector<8x32xf32> to vector<8x16xf32>
    %cst_114 = arith.constant dense<0.000000e+00> : vector<8x16xf32>
    %262 = tpu.matmul %260, %261, %cst_114 {dimension_numbers = #tpu.dot_dimension_numbers<[1], [0], [0], [1], [0, 0, 1, 1], [], []>} : vector<8x8xf32>, vector<8x16xf32>, vector<8x16xf32> -> vector<8x16xf32>
    %263 = vector.extract_strided_slice %237 {offsets = [0, 0], sizes = [16, 32], strides = [1, 1]} : vector<32x32xf32> to vector<16x32xf32>
    %cst_115 = arith.constant dense<0.000000e+00> : vector<8x32xf32>
    %264 = tpu.matmul %262, %263, %cst_115 {dimension_numbers = #tpu.dot_dimension_numbers<[1], [0], [0], [1], [0, 0, 1, 1], [], []>} : vector<8x16xf32>, vector<16x32xf32>, vector<8x32xf32> -> vector<8x32xf32>
    %265 = arith.addf %244, %264 : vector<8x32xf32>
    %266 = vector.extract_strided_slice %240 {offsets = [0, 16], sizes = [8, 16], strides = [1, 1]} : vector<8x32xf32> to vector<8x16xf32>
    %267 = vector.extract_strided_slice %241 {offsets = [0, 16], sizes = [8, 16], strides = [1, 1]} : vector<8x32xf32> to vector<8x16xf32>
    %cst_116 = arith.constant dense<0.000000e+00> : vector<8x8xf32>
    %268 = tpu.matmul %266, %267, %cst_116 {dimension_numbers = #tpu.dot_dimension_numbers<[1], [1], [0], [0], [0, 0, 1, 0], [], []>} : vector<8x16xf32>, vector<8x16xf32>, vector<8x8xf32> -> vector<8x8xf32>
    %cst_117 = arith.constant 2.500000e-01 : f32
    %269 = vector.broadcast %cst_117 : f32 to vector<8x8xf32>
    %270 = arith.mulf %268, %269 : vector<8x8xf32>
    %271 = vector.broadcast %243 : vector<1x8xf32> to vector<8x8xf32>
    %272 = arith.addf %270, %271 : vector<8x8xf32>
    %cst_118 = arith.constant dense<0xFF800000> : vector<8xf32>
    %273 = vector.multi_reduction <maximumf>, %272, %cst_118 [1] : vector<8x8xf32> to vector<8xf32>
    %274 = vector.shape_cast %273 : vector<8xf32> to vector<8x1xf32>
    %275 = vector.broadcast %274 : vector<8x1xf32> to vector<8x8xf32>
    %276 = arith.subf %272, %275 : vector<8x8xf32>
    %277 = math.exp %276 : vector<8x8xf32>
    %cst_119 = arith.constant dense<0.000000e+00> : vector<8xf32>
    %278 = vector.multi_reduction <add>, %277, %cst_119 [1] : vector<8x8xf32> to vector<8xf32>
    %279 = vector.shape_cast %278 : vector<8xf32> to vector<8x1xf32>
    %280 = vector.broadcast %279 : vector<8x1xf32> to vector<8x8xf32>
    %281 = arith.divf %277, %280 : vector<8x8xf32>
    %282 = vector.extract_strided_slice %242 {offsets = [0, 16], sizes = [8, 16], strides = [1, 1]} : vector<8x32xf32> to vector<8x16xf32>
    %cst_120 = arith.constant dense<0.000000e+00> : vector<8x16xf32>
    %283 = tpu.matmul %281, %282, %cst_120 {dimension_numbers = #tpu.dot_dimension_numbers<[1], [0], [0], [1], [0, 0, 1, 1], [], []>} : vector<8x8xf32>, vector<8x16xf32>, vector<8x16xf32> -> vector<8x16xf32>
    %284 = vector.extract_strided_slice %237 {offsets = [16, 0], sizes = [16, 32], strides = [1, 1]} : vector<32x32xf32> to vector<16x32xf32>
    %cst_121 = arith.constant dense<0.000000e+00> : vector<8x32xf32>
    %285 = tpu.matmul %283, %284, %cst_121 {dimension_numbers = #tpu.dot_dimension_numbers<[1], [0], [0], [1], [0, 0, 1, 1], [], []>} : vector<8x16xf32>, vector<16x32xf32>, vector<8x32xf32> -> vector<8x32xf32>
    %286 = arith.addf %265, %285 : vector<8x32xf32>
    %287 = vector.broadcast %239 : vector<1x32xf32> to vector<8x32xf32>
    %288 = arith.addf %286, %287 : vector<8x32xf32>
    %289 = vector.extract_strided_slice %233 {offsets = [8, 0], sizes = [8, 32], strides = [1, 1]} : vector<16x32xf32> to vector<8x32xf32>
    %290 = vector.extract_strided_slice %234 {offsets = [8, 0], sizes = [8, 32], strides = [1, 1]} : vector<16x32xf32> to vector<8x32xf32>
    %291 = vector.extract_strided_slice %235 {offsets = [8, 0], sizes = [8, 32], strides = [1, 1]} : vector<16x32xf32> to vector<8x32xf32>
    %292 = vector.extract_strided_slice %35 {offsets = [1, 0], sizes = [1, 8], strides = [1, 1]} : vector<2x8xf32> to vector<1x8xf32>
    %cst_122 = arith.constant 0.000000e+00 : f32
    %293 = vector.broadcast %cst_122 : f32 to vector<8x32xf32>
    %294 = vector.extract_strided_slice %289 {offsets = [0, 0], sizes = [8, 16], strides = [1, 1]} : vector<8x32xf32> to vector<8x16xf32>
    %295 = vector.extract_strided_slice %290 {offsets = [0, 0], sizes = [8, 16], strides = [1, 1]} : vector<8x32xf32> to vector<8x16xf32>
    %cst_123 = arith.constant dense<0.000000e+00> : vector<8x8xf32>
    %296 = tpu.matmul %294, %295, %cst_123 {dimension_numbers = #tpu.dot_dimension_numbers<[1], [1], [0], [0], [0, 0, 1, 0], [], []>} : vector<8x16xf32>, vector<8x16xf32>, vector<8x8xf32> -> vector<8x8xf32>
    %cst_124 = arith.constant 2.500000e-01 : f32
    %297 = vector.broadcast %cst_124 : f32 to vector<8x8xf32>
    %298 = arith.mulf %296, %297 : vector<8x8xf32>
    %299 = vector.broadcast %292 : vector<1x8xf32> to vector<8x8xf32>
    %300 = arith.addf %298, %299 : vector<8x8xf32>
    %cst_125 = arith.constant dense<0xFF800000> : vector<8xf32>
    %301 = vector.multi_reduction <maximumf>, %300, %cst_125 [1] : vector<8x8xf32> to vector<8xf32>
    %302 = vector.shape_cast %301 : vector<8xf32> to vector<8x1xf32>
    %303 = vector.broadcast %302 : vector<8x1xf32> to vector<8x8xf32>
    %304 = arith.subf %300, %303 : vector<8x8xf32>
    %305 = math.exp %304 : vector<8x8xf32>
    %cst_126 = arith.constant dense<0.000000e+00> : vector<8xf32>
    %306 = vector.multi_reduction <add>, %305, %cst_126 [1] : vector<8x8xf32> to vector<8xf32>
    %307 = vector.shape_cast %306 : vector<8xf32> to vector<8x1xf32>
    %308 = vector.broadcast %307 : vector<8x1xf32> to vector<8x8xf32>
    %309 = arith.divf %305, %308 : vector<8x8xf32>
    %310 = vector.extract_strided_slice %291 {offsets = [0, 0], sizes = [8, 16], strides = [1, 1]} : vector<8x32xf32> to vector<8x16xf32>
    %cst_127 = arith.constant dense<0.000000e+00> : vector<8x16xf32>
    %311 = tpu.matmul %309, %310, %cst_127 {dimension_numbers = #tpu.dot_dimension_numbers<[1], [0], [0], [1], [0, 0, 1, 1], [], []>} : vector<8x8xf32>, vector<8x16xf32>, vector<8x16xf32> -> vector<8x16xf32>
    %312 = vector.extract_strided_slice %237 {offsets = [0, 0], sizes = [16, 32], strides = [1, 1]} : vector<32x32xf32> to vector<16x32xf32>
    %cst_128 = arith.constant dense<0.000000e+00> : vector<8x32xf32>
    %313 = tpu.matmul %311, %312, %cst_128 {dimension_numbers = #tpu.dot_dimension_numbers<[1], [0], [0], [1], [0, 0, 1, 1], [], []>} : vector<8x16xf32>, vector<16x32xf32>, vector<8x32xf32> -> vector<8x32xf32>
    %314 = arith.addf %293, %313 : vector<8x32xf32>
    %315 = vector.extract_strided_slice %289 {offsets = [0, 16], sizes = [8, 16], strides = [1, 1]} : vector<8x32xf32> to vector<8x16xf32>
    %316 = vector.extract_strided_slice %290 {offsets = [0, 16], sizes = [8, 16], strides = [1, 1]} : vector<8x32xf32> to vector<8x16xf32>
    %cst_129 = arith.constant dense<0.000000e+00> : vector<8x8xf32>
    %317 = tpu.matmul %315, %316, %cst_129 {dimension_numbers = #tpu.dot_dimension_numbers<[1], [1], [0], [0], [0, 0, 1, 0], [], []>} : vector<8x16xf32>, vector<8x16xf32>, vector<8x8xf32> -> vector<8x8xf32>
    %cst_130 = arith.constant 2.500000e-01 : f32
    %318 = vector.broadcast %cst_130 : f32 to vector<8x8xf32>
    %319 = arith.mulf %317, %318 : vector<8x8xf32>
    %320 = vector.broadcast %292 : vector<1x8xf32> to vector<8x8xf32>
    %321 = arith.addf %319, %320 : vector<8x8xf32>
    %cst_131 = arith.constant dense<0xFF800000> : vector<8xf32>
    %322 = vector.multi_reduction <maximumf>, %321, %cst_131 [1] : vector<8x8xf32> to vector<8xf32>
    %323 = vector.shape_cast %322 : vector<8xf32> to vector<8x1xf32>
    %324 = vector.broadcast %323 : vector<8x1xf32> to vector<8x8xf32>
    %325 = arith.subf %321, %324 : vector<8x8xf32>
    %326 = math.exp %325 : vector<8x8xf32>
    %cst_132 = arith.constant dense<0.000000e+00> : vector<8xf32>
    %327 = vector.multi_reduction <add>, %326, %cst_132 [1] : vector<8x8xf32> to vector<8xf32>
    %328 = vector.shape_cast %327 : vector<8xf32> to vector<8x1xf32>
    %329 = vector.broadcast %328 : vector<8x1xf32> to vector<8x8xf32>
    %330 = arith.divf %326, %329 : vector<8x8xf32>
    %331 = vector.extract_strided_slice %291 {offsets = [0, 16], sizes = [8, 16], strides = [1, 1]} : vector<8x32xf32> to vector<8x16xf32>
    %cst_133 = arith.constant dense<0.000000e+00> : vector<8x16xf32>
    %332 = tpu.matmul %330, %331, %cst_133 {dimension_numbers = #tpu.dot_dimension_numbers<[1], [0], [0], [1], [0, 0, 1, 1], [], []>} : vector<8x8xf32>, vector<8x16xf32>, vector<8x16xf32> -> vector<8x16xf32>
    %333 = vector.extract_strided_slice %237 {offsets = [16, 0], sizes = [16, 32], strides = [1, 1]} : vector<32x32xf32> to vector<16x32xf32>
    %cst_134 = arith.constant dense<0.000000e+00> : vector<8x32xf32>
    %334 = tpu.matmul %332, %333, %cst_134 {dimension_numbers = #tpu.dot_dimension_numbers<[1], [0], [0], [1], [0, 0, 1, 1], [], []>} : vector<8x16xf32>, vector<16x32xf32>, vector<8x32xf32> -> vector<8x32xf32>
    %335 = arith.addf %314, %334 : vector<8x32xf32>
    %336 = vector.broadcast %239 : vector<1x32xf32> to vector<8x32xf32>
    %337 = arith.addf %335, %336 : vector<8x32xf32>
    %338 = tpu.concatenate %288, %337 in 0 : vector<8x32xf32>, vector<8x32xf32> -> vector<16x32xf32>
    %339 = arith.addf %338, %225 : vector<16x32xf32>
    %c1_135 = arith.constant 1 : index
    %c0_136 = arith.constant 0 : index
    %c0_137 = arith.constant 0 : index
    %340 = vector.load %arg13[%c1_135, %c0_136, %c0_137] : memref<2x1x32xf32, #tpu.memory_space<vmem>>, vector<1x1x32xf32>
    %341 = vector.shape_cast %340 : vector<1x1x32xf32> to vector<1x32xf32>
    %c1_138 = arith.constant 1 : index
    %c0_139 = arith.constant 0 : index
    %c0_140 = arith.constant 0 : index
    %342 = vector.load %arg14[%c1_138, %c0_139, %c0_140] : memref<2x1x32xf32, #tpu.memory_space<vmem>>, vector<1x1x32xf32>
    %343 = vector.shape_cast %342 : vector<1x1x32xf32> to vector<1x32xf32>
    %cst_141 = arith.constant dense<0.000000e+00> : vector<16xf32>
    %344 = vector.multi_reduction <add>, %339, %cst_141 [1] : vector<16x32xf32> to vector<16xf32>
    %345 = vector.shape_cast %344 : vector<16xf32> to vector<16x1xf32>
    %cst_142 = arith.constant 3.200000e+01 : f32
    %346 = vector.broadcast %cst_142 : f32 to vector<16x1xf32>
    %347 = arith.divf %345, %346 : vector<16x1xf32>
    %348 = vector.broadcast %347 : vector<16x1xf32> to vector<16x32xf32>
    %349 = arith.subf %339, %348 : vector<16x32xf32>
    %350 = arith.mulf %349, %349 : vector<16x32xf32>
    %cst_143 = arith.constant dense<0.000000e+00> : vector<16xf32>
    %351 = vector.multi_reduction <add>, %350, %cst_143 [1] : vector<16x32xf32> to vector<16xf32>
    %352 = vector.shape_cast %351 : vector<16xf32> to vector<16x1xf32>
    %cst_144 = arith.constant 3.200000e+01 : f32
    %353 = vector.broadcast %cst_144 : f32 to vector<16x1xf32>
    %354 = arith.divf %352, %353 : vector<16x1xf32>
    %cst_145 = arith.constant 9.99999996E-13 : f32
    %355 = vector.broadcast %cst_145 : f32 to vector<16x1xf32>
    %356 = arith.addf %354, %355 : vector<16x1xf32>
    %357 = math.rsqrt %356 : vector<16x1xf32>
    %358 = vector.broadcast %357 : vector<16x1xf32> to vector<16x32xf32>
    %359 = arith.mulf %349, %358 : vector<16x32xf32>
    %360 = vector.broadcast %341 : vector<1x32xf32> to vector<16x32xf32>
    %361 = arith.mulf %359, %360 : vector<16x32xf32>
    %362 = vector.broadcast %343 : vector<1x32xf32> to vector<16x32xf32>
    %363 = arith.addf %361, %362 : vector<16x32xf32>
    %c1_146 = arith.constant 1 : index
    %c0_147 = arith.constant 0 : index
    %c0_148 = arith.constant 0 : index
    %364 = vector.load %arg15[%c1_146, %c0_147, %c0_148] : memref<2x32x64xf32, #tpu.memory_space<vmem>>, vector<1x32x64xf32>
    %365 = vector.shape_cast %364 : vector<1x32x64xf32> to vector<32x64xf32>
    %cst_149 = arith.constant dense<0.000000e+00> : vector<16x64xf32>
    %366 = tpu.matmul %363, %365, %cst_149 {dimension_numbers = #tpu.dot_dimension_numbers<[1], [0], [0], [1], [0, 0, 1, 1], [], []>} : vector<16x32xf32>, vector<32x64xf32>, vector<16x64xf32> -> vector<16x64xf32>
    %c1_150 = arith.constant 1 : index
    %c0_151 = arith.constant 0 : index
    %c0_152 = arith.constant 0 : index
    %367 = vector.load %arg16[%c1_150, %c0_151, %c0_152] : memref<2x1x64xf32, #tpu.memory_space<vmem>>, vector<1x1x64xf32>
    %368 = vector.shape_cast %367 : vector<1x1x64xf32> to vector<1x64xf32>
    %369 = vector.broadcast %368 : vector<1x64xf32> to vector<16x64xf32>
    %370 = arith.addf %366, %369 : vector<16x64xf32>
    %cst_153 = arith.constant 5.000000e-01 : f32
    %371 = vector.broadcast %cst_153 : f32 to vector<16x64xf32>
    %372 = arith.mulf %371, %370 : vector<16x64xf32>
    %cst_154 = arith.constant 4.471500e-02 : f32
    %373 = vector.broadcast %cst_154 : f32 to vector<16x64xf32>
    %374 = arith.mulf %373, %370 : vector<16x64xf32>
    %375 = arith.mulf %374, %370 : vector<16x64xf32>
    %376 = arith.mulf %375, %370 : vector<16x64xf32>
    %377 = arith.addf %370, %376 : vector<16x64xf32>
    %cst_155 = arith.constant 0.797884583 : f32
    %378 = vector.broadcast %cst_155 : f32 to vector<16x64xf32>
    %379 = arith.mulf %378, %377 : vector<16x64xf32>
    %380 = math.tanh %379 : vector<16x64xf32>
    %cst_156 = arith.constant 1.000000e+00 : f32
    %381 = vector.broadcast %cst_156 : f32 to vector<16x64xf32>
    %382 = arith.addf %381, %380 : vector<16x64xf32>
    %383 = arith.mulf %372, %382 : vector<16x64xf32>
    %c1_157 = arith.constant 1 : index
    %c0_158 = arith.constant 0 : index
    %c0_159 = arith.constant 0 : index
    %384 = vector.load %arg17[%c1_157, %c0_158, %c0_159] : memref<2x64x32xf32, #tpu.memory_space<vmem>>, vector<1x64x32xf32>
    %385 = vector.shape_cast %384 : vector<1x64x32xf32> to vector<64x32xf32>
    %cst_160 = arith.constant dense<0.000000e+00> : vector<16x32xf32>
    %386 = tpu.matmul %383, %385, %cst_160 {dimension_numbers = #tpu.dot_dimension_numbers<[1], [0], [0], [1], [0, 0, 1, 1], [], []>} : vector<16x64xf32>, vector<64x32xf32>, vector<16x32xf32> -> vector<16x32xf32>
    %c1_161 = arith.constant 1 : index
    %c0_162 = arith.constant 0 : index
    %c0_163 = arith.constant 0 : index
    %387 = vector.load %arg18[%c1_161, %c0_162, %c0_163] : memref<2x1x32xf32, #tpu.memory_space<vmem>>, vector<1x1x32xf32>
    %388 = vector.shape_cast %387 : vector<1x1x32xf32> to vector<1x32xf32>
    %389 = vector.broadcast %388 : vector<1x32xf32> to vector<16x32xf32>
    %390 = arith.addf %386, %389 : vector<16x32xf32>
    %391 = arith.addf %390, %363 : vector<16x32xf32>
    %c1_164 = arith.constant 1 : index
    %c0_165 = arith.constant 0 : index
    %c0_166 = arith.constant 0 : index
    %392 = vector.load %arg19[%c1_164, %c0_165, %c0_166] : memref<2x1x32xf32, #tpu.memory_space<vmem>>, vector<1x1x32xf32>
    %393 = vector.shape_cast %392 : vector<1x1x32xf32> to vector<1x32xf32>
    %c1_167 = arith.constant 1 : index
    %c0_168 = arith.constant 0 : index
    %c0_169 = arith.constant 0 : index
    %394 = vector.load %arg20[%c1_167, %c0_168, %c0_169] : memref<2x1x32xf32, #tpu.memory_space<vmem>>, vector<1x1x32xf32>
    %395 = vector.shape_cast %394 : vector<1x1x32xf32> to vector<1x32xf32>
    %cst_170 = arith.constant dense<0.000000e+00> : vector<16xf32>
    %396 = vector.multi_reduction <add>, %391, %cst_170 [1] : vector<16x32xf32> to vector<16xf32>
    %397 = vector.shape_cast %396 : vector<16xf32> to vector<16x1xf32>
    %cst_171 = arith.constant 3.200000e+01 : f32
    %398 = vector.broadcast %cst_171 : f32 to vector<16x1xf32>
    %399 = arith.divf %397, %398 : vector<16x1xf32>
    %400 = vector.broadcast %399 : vector<16x1xf32> to vector<16x32xf32>
    %401 = arith.subf %391, %400 : vector<16x32xf32>
    %402 = arith.mulf %401, %401 : vector<16x32xf32>
    %cst_172 = arith.constant dense<0.000000e+00> : vector<16xf32>
    %403 = vector.multi_reduction <add>, %402, %cst_172 [1] : vector<16x32xf32> to vector<16xf32>
    %404 = vector.shape_cast %403 : vector<16xf32> to vector<16x1xf32>
    %cst_173 = arith.constant 3.200000e+01 : f32
    %405 = vector.broadcast %cst_173 : f32 to vector<16x1xf32>
    %406 = arith.divf %404, %405 : vector<16x1xf32>
    %cst_174 = arith.constant 9.99999996E-13 : f32
    %407 = vector.broadcast %cst_174 : f32 to vector<16x1xf32>
    %408 = arith.addf %406, %407 : vector<16x1xf32>
    %409 = math.rsqrt %408 : vector<16x1xf32>
    %410 = vector.broadcast %409 : vector<16x1xf32> to vector<16x32xf32>
    %411 = arith.mulf %401, %410 : vector<16x32xf32>
    %412 = vector.broadcast %393 : vector<1x32xf32> to vector<16x32xf32>
    %413 = arith.mulf %411, %412 : vector<16x32xf32>
    %414 = vector.broadcast %395 : vector<1x32xf32> to vector<16x32xf32>
    %415 = arith.addf %413, %414 : vector<16x32xf32>
    %416 = vector.extract_strided_slice %415 {offsets = [0, 0], sizes = [1, 32], strides = [1, 1]} : vector<16x32xf32> to vector<1x32xf32>
    %417 = vector.extract_strided_slice %415 {offsets = [8, 0], sizes = [1, 32], strides = [1, 1]} : vector<16x32xf32> to vector<1x32xf32>
    %418 = tpu.concatenate %416, %417 in 0 : vector<1x32xf32>, vector<1x32xf32> -> vector<2x32xf32>
    %c0_175 = arith.constant 0 : index
    %c0_176 = arith.constant 0 : index
    %419 = vector.load %arg21[%c0_175, %c0_176] : memref<32x32xf32, #tpu.memory_space<vmem>>, vector<32x32xf32>
    %cst_177 = arith.constant dense<0.000000e+00> : vector<2x32xf32>
    %420 = tpu.matmul %418, %419, %cst_177 {dimension_numbers = #tpu.dot_dimension_numbers<[1], [0], [0], [1], [0, 0, 1, 1], [], []>} : vector<2x32xf32>, vector<32x32xf32>, vector<2x32xf32> -> vector<2x32xf32>
    %c0_178 = arith.constant 0 : index
    %c0_179 = arith.constant 0 : index
    %421 = vector.load %arg22[%c0_178, %c0_179] : memref<1x32xf32, #tpu.memory_space<vmem>>, vector<1x32xf32>
    %422 = vector.broadcast %421 : vector<1x32xf32> to vector<2x32xf32>
    %423 = arith.addf %420, %422 : vector<2x32xf32>
    %424 = math.tanh %423 : vector<2x32xf32>
    %c0_180 = arith.constant 0 : index
    %c0_181 = arith.constant 0 : index
    %425 = vector.load %arg23[%c0_180, %c0_181] : memref<32x128xf32, #tpu.memory_space<vmem>>, vector<32x128xf32>
    %cst_182 = arith.constant dense<0.000000e+00> : vector<2x128xf32>
    %426 = tpu.matmul %424, %425, %cst_182 {dimension_numbers = #tpu.dot_dimension_numbers<[1], [0], [0], [1], [0, 0, 1, 1], [], []>} : vector<2x32xf32>, vector<32x128xf32>, vector<2x128xf32> -> vector<2x128xf32>
    %c0_183 = arith.constant 0 : index
    %c0_184 = arith.constant 0 : index
    %427 = vector.load %arg24[%c0_183, %c0_184] : memref<1x128xf32, #tpu.memory_space<vmem>>, vector<1x128xf32>
    %428 = vector.broadcast %427 : vector<1x128xf32> to vector<2x128xf32>
    %429 = arith.addf %426, %428 : vector<2x128xf32>
    %c0_185 = arith.constant 0 : index
    %c0_186 = arith.constant 0 : index
    %430 = vector.load %arg25[%c0_185, %c0_186] : memref<2x128xf32, #tpu.memory_space<vmem>>, vector<2x128xf32>
    tpu.vector_store %arg25[%c0_185, %c0_186], %429 {strides = array<i32>} : memref<2x128xf32, #tpu.memory_space<vmem>>, vector<2x128xf32>,
    %c0_187 = arith.constant 0 : index
    %c0_188 = arith.constant 0 : index
    %431 = vector.load %arg2[%c0_187, %c0_188] : memref<2x1xi32, #tpu.memory_space<vmem>>, vector<2x1xi32>
    %cst_189 = arith.constant dense<0xFF800000> : vector<2xf32>
    %432 = vector.multi_reduction <maximumf>, %429, %cst_189 [1] : vector<2x128xf32> to vector<2xf32>
    %433 = vector.shape_cast %432 : vector<2xf32> to vector<2x1xf32>
    %434 = vector.broadcast %433 : vector<2x1xf32> to vector<2x128xf32>
    %435 = arith.subf %429, %434 : vector<2x128xf32>
    %436 = math.exp %435 : vector<2x128xf32>
    %cst_190 = arith.constant dense<0.000000e+00> : vector<2xf32>
    %437 = vector.multi_reduction <add>, %436, %cst_190 [1] : vector<2x128xf32> to vector<2xf32>
    %438 = vector.shape_cast %437 : vector<2xf32> to vector<2x1xf32>
    %439 = math.log %438 : vector<2x1xf32>
    %440 = arith.addf %439, %433 : vector<2x1xf32>
    %441 = vector.broadcast %440 : vector<2x1xf32> to vector<2x128xf32>
    %442 = arith.subf %429, %441 : vector<2x128xf32>
    %443 = tpu.iota {dimensions = array<i32: 1>} : vector<2x128xi32>
    %444 = vector.broadcast %431 : vector<2x1xi32> to vector<2x128xi32>
    %445 = arith.cmpi eq, %444, %443 : vector<2x128xi32>
    %446 = arith.extui %445 : vector<2x128xi1> to vector<2x128xi32>
    %447 = arith.sitofp %446 : vector<2x128xi32> to vector<2x128xf32>
    %448 = arith.mulf %447, %442 : vector<2x128xf32>
    %cst_191 = arith.constant dense<0.000000e+00> : vector<2xf32>
    %449 = vector.multi_reduction <add>, %448, %cst_191 [1] : vector<2x128xf32> to vector<2xf32>
    %450 = vector.shape_cast %449 : vector<2xf32> to vector<2x1xf32>
    %cst_192 = arith.constant 0.000000e+00 : f32
    %451 = vector.broadcast %cst_192 : f32 to vector<2x1xf32>
    %452 = arith.subf %451, %450 : vector<2x1xf32>
    %453 = vector.shape_cast %452 : vector<2x1xf32> to vector<1x2x1xf32>
    %cst_193 = arith.constant dense<0.000000e+00> : vector<1xf32>
    %454 = vector.multi_reduction <add>, %453, %cst_193 [1, 2] : vector<1x2x1xf32> to vector<1xf32>
    %455 = vector.shape_cast %454 : vector<1xf32> to vector<1x1x1xf32>
    %456 = vector.extract %455[0, 0, 0] : f32 from vector<1x1x1xf32>
    %cst_194 = arith.constant 5.000000e-01 : f32
    %457 = arith.mulf %456, %cst_194 : f32
    %c0_195 = arith.constant 0 : index
    %c0_196 = arith.constant 0 : index
    %458 = memref.load %arg26[%c0_195, %c0_196] : memref<1x1xf32, #tpu.memory_space<smem>>
    memref.store %457, %arg26[%c0_195, %c0_196] : memref<1x1xf32, #tpu.memory_space<smem>>
    return
  }
  func.func @transform_0(%arg0: i32) -> (i32, i32) {
    %c0_i32 = arith.constant 0 : i32
    %c0_i32_0 = arith.constant 0 : i32
    %c0_i32_1 = arith.constant 0 : i32
    return %c0_i32, %c0_i32_0 : i32, i32
  }
  func.func @transform_1(%arg0: i32) -> (i32, i32) {
    %c0_i32 = arith.constant 0 : i32
    %c0_i32_0 = arith.constant 0 : i32
    %c0_i32_1 = arith.constant 0 : i32
    return %c0_i32, %c0_i32_0 : i32, i32
  }
  func.func @transform_2(%arg0: i32) -> (i32, i32) {
    %c0_i32 = arith.constant 0 : i32
    %c0_i32_0 = arith.constant 0 : i32
    %c0_i32_1 = arith.constant 0 : i32
    return %c0_i32, %c0_i32_0 : i32, i32
  }
  func.func @transform_3(%arg0: i32) -> (i32, i32) {
    %c0_i32 = arith.constant 0 : i32
    %c0_i32_0 = arith.constant 0 : i32
    %c0_i32_1 = arith.constant 0 : i32
    return %c0_i32, %c0_i32_0 : i32, i32
  }
  func.func @transform_4(%arg0: i32) -> (i32, i32) {
    %c0_i32 = arith.constant 0 : i32
    %c0_i32_0 = arith.constant 0 : i32
    %c0_i32_1 = arith.constant 0 : i32
    return %c0_i32, %c0_i32_0 : i32, i32
  }
  func.func @transform_5(%arg0: i32) -> (i32, i32) {
    %c0_i32 = arith.constant 0 : i32
    %c0_i32_0 = arith.constant 0 : i32
    %c0_i32_1 = arith.constant 0 : i32
    return %c0_i32, %c0_i32_0 : i32, i32
  }
  func.func @transform_6(%arg0: i32) -> (i32, i32) {
    %c0_i32 = arith.constant 0 : i32
    %c0_i32_0 = arith.constant 0 : i32
    %c0_i32_1 = arith.constant 0 : i32
    return %c0_i32, %c0_i32_0 : i32, i32
  }
  func.func @transform_7(%arg0: i32) -> (i32, i32) {
    %c0_i32 = arith.constant 0 : i32
    %c0_i32_0 = arith.constant 0 : i32
    %c0_i32_1 = arith.constant 0 : i32
    return %c0_i32, %c0_i32_0 : i32, i32
  }
  func.func @transform_8(%arg0: i32) -> (i32, i32, i32) {
    %c0_i32 = arith.constant 0 : i32
    %c0_i32_0 = arith.constant 0 : i32
    %c0_i32_1 = arith.constant 0 : i32
    %c0_i32_2 = arith.constant 0 : i32
    return %c0_i32, %c0_i32_0, %c0_i32_1 : i32, i32, i32
  }
  func.func @transform_9(%arg0: i32) -> (i32, i32, i32) {
    %c0_i32 = arith.constant 0 : i32
    %c0_i32_0 = arith.constant 0 : i32
    %c0_i32_1 = arith.constant 0 : i32
    %c0_i32_2 = arith.constant 0 : i32
    return %c0_i32, %c0_i32_0, %c0_i32_1 : i32, i32, i32
  }
  func.func @transform_10(%arg0: i32) -> (i32, i32, i32) {
    %c0_i32 = arith.constant 0 : i32
    %c0_i32_0 = arith.constant 0 : i32
    %c0_i32_1 = arith.constant 0 : i32
    %c0_i32_2 = arith.constant 0 : i32
    return %c0_i32, %c0_i32_0, %c0_i32_1 : i32, i32, i32
  }
  func.func @transform_11(%arg0: i32) -> (i32, i32, i32) {
    %c0_i32 = arith.constant 0 : i32
    %c0_i32_0 = arith.constant 0 : i32
    %c0_i32_1 = arith.constant 0 : i32
    %c0_i32_2 = arith.constant 0 : i32
    return %c0_i32, %c0_i32_0, %c0_i32_1 : i32, i32, i32
  }
  func.func @transform_12(%arg0: i32) -> (i32, i32, i32) {
    %c0_i32 = arith.constant 0 : i32
    %c0_i32_0 = arith.constant 0 : i32
    %c0_i32_1 = arith.constant 0 : i32
    %c0_i32_2 = arith.constant 0 : i32
    return %c0_i32, %c0_i32_0, %c0_i32_1 : i32, i32, i32
  }
  func.func @transform_13(%arg0: i32) -> (i32, i32, i32) {
    %c0_i32 = arith.constant 0 : i32
    %c0_i32_0 = arith.constant 0 : i32
    %c0_i32_1 = arith.constant 0 : i32
    %c0_i32_2 = arith.constant 0 : i32
    return %c0_i32, %c0_i32_0, %c0_i32_1 : i32, i32, i32
  }
  func.func @transform_14(%arg0: i32) -> (i32, i32, i32) {
    %c0_i32 = arith.constant 0 : i32
    %c0_i32_0 = arith.constant 0 : i32
    %c0_i32_1 = arith.constant 0 : i32
    %c0_i32_2 = arith.constant 0 : i32
    return %c0_i32, %c0_i32_0, %c0_i32_1 : i32, i32, i32
  }
  func.func @transform_15(%arg0: i32) -> (i32, i32, i32) {
    %c0_i32 = arith.constant 0 : i32
    %c0_i32_0 = arith.constant 0 : i32
    %c0_i32_1 = arith.constant 0 : i32
    %c0_i32_2 = arith.constant 0 : i32
    return %c0_i32, %c0_i32_0, %c0_i32_1 : i32, i32, i32
  }
  func.func @transform_16(%arg0: i32) -> (i32, i32, i32) {
    %c0_i32 = arith.constant 0 : i32
    %c0_i32_0 = arith.constant 0 : i32
    %c0_i32_1 = arith.constant 0 : i32
    %c0_i32_2 = arith.constant 0 : i32
    return %c0_i32, %c0_i32_0, %c0_i32_1 : i32, i32, i32
  }
  func.func @transform_17(%arg0: i32) -> (i32, i32, i32) {
    %c0_i32 = arith.constant 0 : i32
    %c0_i32_0 = arith.constant 0 : i32
    %c0_i32_1 = arith.constant 0 : i32
    %c0_i32_2 = arith.constant 0 : i32
    return %c0_i32, %c0_i32_0, %c0_i32_1 : i32, i32, i32
  }
  func.func @transform_18(%arg0: i32) -> (i32, i32, i32) {
    %c0_i32 = arith.constant 0 : i32
    %c0_i32_0 = arith.constant 0 : i32
    %c0_i32_1 = arith.constant 0 : i32
    %c0_i32_2 = arith.constant 0 : i32
    return %c0_i32, %c0_i32_0, %c0_i32_1 : i32, i32, i32
  }
  func.func @transform_19(%arg0: i32) -> (i32, i32, i32) {
    %c0_i32 = arith.constant 0 : i32
    %c0_i32_0 = arith.constant 0 : i32
    %c0_i32_1 = arith.constant 0 : i32
    %c0_i32_2 = arith.constant 0 : i32
    return %c0_i32, %c0_i32_0, %c0_i32_1 : i32, i32, i32
  }
  func.func @transform_20(%arg0: i32) -> (i32, i32) {
    %c0_i32 = arith.constant 0 : i32
    %c0_i32_0 = arith.constant 0 : i32
    %c0_i32_1 = arith.constant 0 : i32
    return %c0_i32, %c0_i32_0 : i32, i32
  }
  func.func @transform_21(%arg0: i32) -> (i32, i32) {
    %c0_i32 = arith.constant 0 : i32
    %c0_i32_0 = arith.constant 0 : i32
    %c0_i32_1 = arith.constant 0 : i32
    return %c0_i32, %c0_i32_0 : i32, i32
  }
  func.func @transform_22(%arg0: i32) -> (i32, i32) {
    %c0_i32 = arith.constant 0 : i32
    %c0_i32_0 = arith.constant 0 : i32
    %c0_i32_1 = arith.constant 0 : i32
    return %c0_i32, %c0_i32_0 : i32, i32
  }
  func.func @transform_23(%arg0: i32) -> (i32, i32) {
    %c0_i32 = arith.constant 0 : i32
    %c0_i32_0 = arith.constant 0 : i32
    %c0_i32_1 = arith.constant 0 : i32
    return %c0_i32, %c0_i32_0 : i32, i32
  }
  func.func @transform_24(%arg0: i32) -> (i32, i32) {
    %c0_i32 = arith.constant 0 : i32
    %c0_i32_0 = arith.constant 0 : i32
    %c0_i32_1 = arith.constant 0 : i32
    return %c0_i32, %c0_i32_0 : i32, i32
  }
  func.func @transform_25(%arg0: i32) -> (i32, i32) {
    %c0_i32 = arith.constant 0 : i32
    %c0_i32_0 = arith.constant 0 : i32
    %c0_i32_1 = arith.constant 0 : i32
    return %c0_i32, %c0_i32_0 : i32, i32
  }
}

</mosaic_0001>

<llo_original>
// kernel: classifier_forward.1
$region0: #{classifier_forward.1}
  #allocation0 [shape = 'u32[]', space=smem, size = 0x4, offset = 0x4, fixed_abs, tag = 'smem constant byte address 0x4 - core index']
  #allocation1 [shape = 'u32[144,128]{1,0:T(1,128)}', space=vmem, size = 0x12000, scoped, tag = 'internal scratch']
  %s0 = inlined_call_operand.vmem [shape: s32[16,1], index: 0, kind: input, shape index: {}]
  %s1 = inlined_call_operand.vmem [shape: s32[2,1], index: 1, kind: input, shape index: {}]
  %s2 = inlined_call_operand.vmem [shape: f32[2,8], index: 2, kind: input, shape index: {}]
  %s3 = inlined_call_operand.vmem [shape: f32[128,32], index: 3, kind: input, shape index: {}]
  %s4 = inlined_call_operand.vmem [shape: f32[16,32], index: 4, kind: input, shape index: {}]
  %s5 = inlined_call_operand.vmem [shape: f32[1,32], index: 5, kind: input, shape index: {}]
  %s6 = inlined_call_operand.vmem [shape: f32[1,32], index: 6, kind: input, shape index: {}]
  %s7 = inlined_call_operand.vmem [shape: f32[1,32], index: 7, kind: input, shape index: {}]
  %s8 = inlined_call_operand.vmem [shape: f32[2,32,96], index: 8, kind: input, shape index: {}]
  %s9 = inlined_call_operand.vmem [shape: f32[2,1,96], index: 9, kind: input, shape index: {}]
  %s10 = inlined_call_operand.vmem [shape: f32[2,32,32], index: 10, kind: input, shape index: {}]
  %s11 = inlined_call_operand.vmem [shape: f32[2,1,32], index: 11, kind: input, shape index: {}]
  %s12 = inlined_call_operand.vmem [shape: f32[2,1,32], index: 12, kind: input, shape index: {}]
  %s13 = inlined_call_operand.vmem [shape: f32[2,1,32], index: 13, kind: input, shape index: {}]
  %s14 = inlined_call_operand.vmem [shape: f32[2,32,64], index: 14, kind: input, shape index: {}]
  %s15 = inlined_call_operand.vmem [shape: f32[2,1,64], index: 15, kind: input, shape index: {}]
  %s16 = inlined_call_operand.vmem [shape: f32[2,64,32], index: 16, kind: input, shape index: {}]
  %s17 = inlined_call_operand.vmem [shape: f32[2,1,32], index: 17, kind: input, shape index: {}]
  %s18 = inlined_call_operand.vmem [shape: f32[2,1,32], index: 18, kind: input, shape index: {}]
  %s19 = inlined_call_operand.vmem [shape: f32[2,1,32], index: 19, kind: input, shape index: {}]
  %s20 = inlined_call_operand.vmem [shape: f32[32,32], index: 20, kind: input, shape index: {}]
  %s21 = inlined_call_operand.vmem [shape: f32[1,32], index: 21, kind: input, shape index: {}]
  %s22 = inlined_call_operand.vmem [shape: f32[32,128], index: 22, kind: input, shape index: {}]
  %s23 = inlined_call_operand.vmem [shape: f32[1,128], index: 23, kind: input, shape index: {}]
  %s24 = inlined_call_operand.hbm [shape: f32[2,128], index: 24, kind: output, shape index: {0}]
  %s25 = inlined_call_operand.hbm [shape: f32[1,1], index: 25, kind: output, shape index: {1}]
  %26 = xla_tuple %s24, %s25
  %s27 = sld [smem:[#allocation0]]
  $region114: #{classifier_forward.1} parent=0
    _
  %s29 = ssub.s32 1, %s27
  %s30 = scalar_select 0, %s29, %s27
  $region1: #{classifier_forward.1} parent=0
    #allocation2 [shape = 'u8[1024]{0}', space=vmem, size = 0x400, scoped, tag = 'output window, operand 0, single buffered']
    #allocation3 [shape = 's32[1]{0}', space=sflag, size = 0x4, scoped, tag = 'scoped memory for classifier_forward.1']
    #allocation4 [shape = 's32[1]{0}', space=sflag, size = 0x4, scoped, tag = 'scoped memory for classifier_forward.1']
    #allocation5 [shape = 'u8[512]{0}', space=smem, size = 0x200, scoped, tag = 'output window, operand 1, single buffered']
    %31 = vsyncpa [#allocation3], 0
    %32 = vsyncpa [#allocation4], 0
    // Predicated region
    $region2: #{classifier_forward.1} parent=1 // pred_check
      _
    $region3: #{classifier_forward.1} parent=1 // pred_check_branch
      %34 = sbr.rel (0) target = $region5
    $region4: #{classifier_forward.1} parent=1 // pred_region
      _
    $region5: #{classifier_forward.1} parent=1 // pred_fallthru
      _
    // Predicated region
    $region6: #{classifier_forward.1} parent=1 // pred_check
      _
    $region7: #{classifier_forward.1} parent=1 // pred_check_branch
      %36 = sbr.rel (0) target = $region9
    $region8: #{classifier_forward.1} parent=1 // pred_region
      _
    $region9: #{classifier_forward.1} parent=1 // pred_fallthru
      _
    // Predicated region
    $region10: #{classifier_forward.1} parent=1 // pred_check
      _
    $region11: #{classifier_forward.1} parent=1 // pred_check_branch
      %38 = sbr.rel (0) target = $region13
    $region12: #{classifier_forward.1} parent=1 // pred_region
      _
    $region13: #{classifier_forward.1} parent=1 // pred_fallthru
      _
    // Predicated region
    $region14: #{classifier_forward.1} parent=1 // pred_check
      _
    $region15: #{classifier_forward.1} parent=1 // pred_check_branch
      %40 = sbr.rel (0) target = $region17
    $region16: #{classifier_forward.1} parent=1 // pred_region
      _
    $region17: #{classifier_forward.1} parent=1 // pred_fallthru
      _
    // Predicated region
    $region18: #{classifier_forward.1} parent=1 // pred_check
      _
    $region19: #{classifier_forward.1} parent=1 // pred_check_branch
      %42 = sbr.rel (0) target = $region21
    $region20: #{classifier_forward.1} parent=1 // pred_region
      _
    $region21: #{classifier_forward.1} parent=1 // pred_fallthru
      _
    // Predicated region
    $region22: #{classifier_forward.1} parent=1 // pred_check
      _
    $region23: #{classifier_forward.1} parent=1 // pred_check_branch
      %44 = sbr.rel (0) target = $region25
    $region24: #{classifier_forward.1} parent=1 // pred_region
      _
    $region25: #{classifier_forward.1} parent=1 // pred_fallthru
      _
    // Predicated region
    $region26: #{classifier_forward.1} parent=1 // pred_check
      _
    $region27: #{classifier_forward.1} parent=1 // pred_check_branch
      %46 = sbr.rel (0) target = $region29
    $region28: #{classifier_forward.1} parent=1 // pred_region
      _
    $region29: #{classifier_forward.1} parent=1 // pred_fallthru
      _
    // Predicated region
    $region30: #{classifier_forward.1} parent=1 // pred_check
      _
    $region31: #{classifier_forward.1} parent=1 // pred_check_branch
      %48 = sbr.rel (0) target = $region33
    $region32: #{classifier_forward.1} parent=1 // pred_region
      _
    $region33: #{classifier_forward.1} parent=1 // pred_fallthru
      _
    // Predicated region
    $region34: #{classifier_forward.1} parent=1 // pred_check
      _
    $region35: #{classifier_forward.1} parent=1 // pred_check_branch
      %50 = sbr.rel (0) target = $region37
    $region36: #{classifier_forward.1} parent=1 // pred_region
      _
    $region37: #{classifier_forward.1} parent=1 // pred_fallthru
      _
    // Predicated region
    $region38: #{classifier_forward.1} parent=1 // pred_check
      _
    $region39: #{classifier_forward.1} parent=1 // pred_check_branch
      %52 = sbr.rel (0) target = $region41
    $region40: #{classifier_forward.1} parent=1 // pred_region
      _
    $region41: #{classifier_forward.1} parent=1 // pred_fallthru
      _
    // Predicated region
    $region42: #{classifier_forward.1} parent=1 // pred_check
      _
    $region43: #{classifier_forward.1} parent=1 // pred_check_branch
      %54 = sbr.rel (0) target = $region45
    $region44: #{classifier_forward.1} parent=1 // pred_region
      _
    $region45: #{classifier_forward.1} parent=1 // pred_fallthru
      _
    // Predicated region
    $region46: #{classifier_forward.1} parent=1 // pred_check
      _
    $region47: #{classifier_forward.1} parent=1 // pred_check_branch
      %56 = sbr.rel (0) target = $region49
    $region48: #{classifier_forward.1} parent=1 // pred_region
      _
    $region49: #{classifier_forward.1} parent=1 // pred_fallthru
      _
    // Predicated region
    $region50: #{classifier_forward.1} parent=1 // pred_check
      _
    $region51: #{classifier_forward.1} parent=1 // pred_check_branch
      %58 = sbr.rel (0) target = $region53
    $region52: #{classifier_forward.1} parent=1 // pred_region
      _
    $region53: #{classifier_forward.1} parent=1 // pred_fallthru
      _
    // Predicated region
    $region54: #{classifier_forward.1} parent=1 // pred_check
      _
    $region55: #{classifier_forward.1} parent=1 // pred_check_branch
      %60 = sbr.rel (0) target = $region57
    $region56: #{classifier_forward.1} parent=1 // pred_region
      _
    $region57: #{classifier_forward.1} parent=1 // pred_fallthru
      _
    // Predicated region
    $region58: #{classifier_forward.1} parent=1 // pred_check
      _
    $region59: #{classifier_forward.1} parent=1 // pred_check_branch
      %62 = sbr.rel (0) target = $region61
    $region60: #{classifier_forward.1} parent=1 // pred_region
      _
    $region61: #{classifier_forward.1} parent=1 // pred_fallthru
      _
    // Predicated region
    $region62: #{classifier_forward.1} parent=1 // pred_check
      _
    $region63: #{classifier_forward.1} parent=1 // pred_check_branch
      %64 = sbr.rel (0) target = $region65
    $region64: #{classifier_forward.1} parent=1 // pred_region
      _
    $region65: #{classifier_forward.1} parent=1 // pred_fallthru
      _
    // Predicated region
    $region66: #{classifier_forward.1} parent=1 // pred_check
      _
    $region67: #{classifier_forward.1} parent=1 // pred_check_branch
      %66 = sbr.rel (0) target = $region69
    $region68: #{classifier_forward.1} parent=1 // pred_region
      _
    $region69: #{classifier_forward.1} parent=1 // pred_fallthru
      _
    // Predicated region
    $region70: #{classifier_forward.1} parent=1 // pred_check
      _
    $region71: #{classifier_forward.1} parent=1 // pred_check_branch
      %68 = sbr.rel (0) target = $region73
    $region72: #{classifier_forward.1} parent=1 // pred_region
      _
    $region73: #{classifier_forward.1} parent=1 // pred_fallthru
      _
    // Predicated region
    $region74: #{classifier_forward.1} parent=1 // pred_check
      _
    $region75: #{classifier_forward.1} parent=1 // pred_check_branch
      %70 = sbr.rel (0) target = $region77
    $region76: #{classifier_forward.1} parent=1 // pred_region
      _
    $region77: #{classifier_forward.1} parent=1 // pred_fallthru
      _
    // Predicated region
    $region78: #{classifier_forward.1} parent=1 // pred_check
      _
    $region79: #{classifier_forward.1} parent=1 // pred_check_branch
      %72 = sbr.rel (0) target = $region81
    $region80: #{classifier_forward.1} parent=1 // pred_region
      _
    $region81: #{classifier_forward.1} parent=1 // pred_fallthru
      _
    // Predicated region
    $region82: #{classifier_forward.1} parent=1 // pred_check
      _
    $region83: #{classifier_forward.1} parent=1 // pred_check_branch
      %74 = sbr.rel (0) target = $region85
    $region84: #{classifier_forward.1} parent=1 // pred_region
      _
    $region85: #{classifier_forward.1} parent=1 // pred_fallthru
      _
    // Predicated region
    $region86: #{classifier_forward.1} parent=1 // pred_check
      _
    $region87: #{classifier_forward.1} parent=1 // pred_check_branch
      %76 = sbr.rel (0) target = $region89
    $region88: #{classifier_forward.1} parent=1 // pred_region
      _
    $region89: #{classifier_forward.1} parent=1 // pred_fallthru
      _
    // Predicated region
    $region90: #{classifier_forward.1} parent=1 // pred_check
      _
    $region91: #{classifier_forward.1} parent=1 // pred_check_branch
      %78 = sbr.rel (0) target = $region93
    $region92: #{classifier_forward.1} parent=1 // pred_region
      _
    $region93: #{classifier_forward.1} parent=1 // pred_fallthru
      _
    // Predicated region
    $region94: #{classifier_forward.1} parent=1 // pred_check
      _
    $region95: #{classifier_forward.1} parent=1 // pred_check_branch
      %80 = sbr.rel (0) target = $region97
    $region96: #{classifier_forward.1} parent=1 // pred_region
      _
    $region97: #{classifier_forward.1} parent=1 // pred_fallthru
      _
    %v81 = vld [vmem:[%s0] sm:$0xff]
    %v82 = vld [vmem:[%s0 + $0x8] sm:$0xff]
    %v83 = vlaneseq
    %v84 = vand.u32 %v83, 127
    %85 = vset.pattern.permute.xlu0 0
    %86 = vperm.xlu0 %85, %v81
    %v87 = vpop.permute.xlu0 %86
    %88 = vset.pattern.permute.xlu0 0
    %89 = vperm.xlu0 %88, %v82
    %v90 = vpop.permute.xlu0 %89
    %vm91 = vcmp.eq.s32.totalorder %v87, %v84
    %vm92 = vcmp.eq.s32.totalorder %v90, %v84
    %v93 = vsel %vm91, 1, 0
    %v94 = vsel %vm92, 1, 0
    %v95 = vcvt.s32.f32 %v93
    %v96 = vcvt.s32.f32 %v94
    %v97 = vld [vmem:[%s3] sm:$0xff]
    %v98 = vld [vmem:[%s3 + $0x8] sm:$0xff]
    %v99 = vld [vmem:[%s3 + $0x10] sm:$0xff]
    %v100 = vld [vmem:[%s3 + $0x18] sm:$0xff]
    %v101 = vld [vmem:[%s3 + $0x20] sm:$0xff]
    %v102 = vld [vmem:[%s3 + $0x28] sm:$0xff]
    %v103 = vld [vmem:[%s3 + $0x30] sm:$0xff]
    %v104 = vld [vmem:[%s3 + $0x38] sm:$0xff]
    %v105 = vld [vmem:[%s3 + $0x40] sm:$0xff]
    %v106 = vld [vmem:[%s3 + $0x48] sm:$0xff]
    %v107 = vld [vmem:[%s3 + $0x50] sm:$0xff]
    %v108 = vld [vmem:[%s3 + $0x58] sm:$0xff]
    %v109 = vld [vmem:[%s3 + $0x60] sm:$0xff]
    %v110 = vld [vmem:[%s3 + $0x68] sm:$0xff]
    %v111 = vld [vmem:[%s3 + $0x70] sm:$0xff]
    %v112 = vld [vmem:[%s3 + $0x78] sm:$0xff]
    %v113 = vld [vmem:[%s4] sm:$0xff]
    %v114 = vld [vmem:[%s4 + $0x8] sm:$0xff]
    %115 = vmatprep.subr.mxu0 0.0
    %116 = vmatpush1.msra.mxu0 %v97
    %117 = vmatprep.subr.mxu0 0.0
    %118 = vmatpush1.msra.mxu0 %v98
    %119 = vmatprep.subr.mxu0 0.0
    %120 = vmatpush1.msra.mxu0 %v99
    %121 = vmatprep.subr.mxu0 0.0
    %122 = vmatpush1.msra.mxu0 %v100
    %123 = vmatprep.subr.mxu0 0.0
    %124 = vmatpush1.msra.mxu0 %v101
    %125 = vmatprep.subr.mxu0 0.0
    %126 = vmatpush1.msra.mxu0 %v102
    %127 = vmatprep.subr.mxu0 0.0
    %128 = vmatpush1.msra.mxu0 %v103
    %129 = vmatprep.subr.mxu0 0.0
    %130 = vmatpush1.msra.mxu0 %v104
    %131 = vmatprep.subr.mxu0 0.0
    %132 = vmatpush1.msra.mxu0 %v105
    %133 = vmatprep.subr.mxu0 0.0
    %134 = vmatpush1.msra.mxu0 %v106
    %135 = vmatprep.subr.mxu0 0.0
    %136 = vmatpush1.msra.mxu0 %v107
    %137 = vmatprep.subr.mxu0 0.0
    %138 = vmatpush1.msra.mxu0 %v108
    %139 = vmatprep.subr.mxu0 0.0
    %140 = vmatpush1.msra.mxu0 %v109
    %141 = vmatprep.subr.mxu0 0.0
    %142 = vmatpush1.msra.mxu0 %v110
    %143 = vmatprep.subr.mxu0 0.0
    %144 = vmatpush1.msra.mxu0 %v111
    %145 = vmatprep.subr.mxu0 0.0
    %146 = vmatpush1.msra.mxu0 %v112
    %147 = vmatprep.subr.mxu0 0.0
    %148 = vmatpush1.msra.mxu0 0.0
    %149 = vmatprep.subr.mxu0 0.0
    %150 = vmatpush1.msra.mxu0 0.0
    %151 = vmatprep.subr.mxu0 0.0
    %152 = vmatpush1.msra.mxu0 0.0
    %153 = vmatprep.subr.mxu0 0.0
    %154 = vmatpush1.msra.mxu0 0.0
    %155 = vmatprep.subr.mxu0 0.0
    %156 = vmatpush1.msra.mxu0 0.0
    %157 = vmatprep.subr.mxu0 0.0
    %158 = vmatpush1.msra.mxu0 0.0
    %159 = vmatprep.subr.mxu0 0.0
    %160 = vmatpush1.msra.mxu0 0.0
    %161 = vmatprep.subr.mxu0 0.0
    %162 = vmatpush1.msra.mxu0 0.0
    %163 = vmatprep.subr.mxu0 0.0
    %164 = vmatpush1.msra.mxu0 0.0
    %165 = vmatprep.subr.mxu0 0.0
    %166 = vmatpush1.msra.mxu0 0.0
    %167 = vmatprep.subr.mxu0 0.0
    %168 = vmatpush1.msra.mxu0 0.0
    %169 = vmatprep.subr.mxu0 0.0
    %170 = vmatpush1.msra.mxu0 0.0
    %171 = vmatprep.subr.mxu0 0.0
    %172 = vmatpush1.msra.mxu0 0.0
    %173 = vmatprep.subr.mxu0 0.0
    %174 = vmatpush1.msra.mxu0 0.0
    %175 = vmatprep.subr.mxu0 0.0
    %176 = vmatpush1.msra.mxu0 0.0
    %177 = vmatprep.subr.mxu0 0.0
    %178 = vmatpush1.msra.mxu0 0.0
    %179 = vmatprep.mubr.f32.mxu0 0.0
    %180 = vmatmul.mubr.f32.gmra.mrb[0].mxu0 %v95
    %v181 = vpop.f32.mrb[0].mxu0
    %v182 = vadd.f32 %v113, %v181
    %v183 = vpop.f32.mrb[0].mxu0
    %184 = vmatprep.mubr.f32.mxu0 0.0
    %185 = vmatmul.mubr.f32.gmra.mrb[0].mxu0 %v96
    %v186 = vpop.f32.mrb[0].mxu0
    %v187 = vadd.f32 %v114, %v186
    %v188 = vpop.f32.mrb[0].mxu0
    %189 = vdwg.mxu0
    %v190 = vld [vmem:[%s5] sm:$0x1]
    %v192 = vlaneseq
    %v193 = vshrl.u32 %v192, 7
    %v194 = vsub.s32 0, %v193
    %v195 = vrot.slane %v190, %v194
    %v197 = vadd.f32 %v182, %v195
    %v198 = vadd.f32 %v187, %v195
    %v199 = vld [vmem:[%s6] sm:$0x1]
    %v200 = vld [vmem:[%s7] sm:$0x1]
    %vm201 = vcmask 261120
    %v202 = vsel %vm201, %v197, 0.0
    %203 = vadd.xlane.f32.xlu0 %v202
    %v204 = vpop.xlane.xlu0 %203
    %v205 = vsel %vm201, %v198, 0.0
    %206 = vadd.xlane.f32.xlu0 %v205
    %v207 = vpop.xlane.xlu0 %206
    %v208 = vrcp.pop 32.0
    %v209 = vmul.f32 %v204, %v208
    %v210 = vmul.f32 %v207, %v208
    %v211 = vsub.f32 %v197, %v209
    %v212 = vsub.f32 %v198, %v210
    %v213 = vmul.f32 %v211, %v211
    %v214 = vmul.f32 %v212, %v212
    %v215 = vsel %vm201, %v213, 0.0
    %216 = vadd.xlane.f32.xlu0 %v215
    %v217 = vpop.xlane.xlu0 %216
    %v218 = vsel %vm201, %v214, 0.0
    %219 = vadd.xlane.f32.xlu0 %v218
    %v220 = vpop.xlane.xlu0 %219
    %v221 = vmul.f32 %v217, %v208
    %v222 = vmul.f32 %v220, %v208
    %v223 = vadd.f32 %v221, 1e-12
    %v224 = vadd.f32 %v222, 1e-12
    %v225 = vrsqrt.pop %v223
    %v226 = vrsqrt.pop %v224
    %v227 = vmul.f32 %v211, %v225
    %v228 = vmul.f32 %v212, %v226
    %v230 = vlaneseq
    %v231 = vshrl.u32 %v230, 7
    %v232 = vsub.s32 0, %v231
    %v233 = vrot.slane %v199, %v232
    %v235 = vmul.f32 %v227, %v233
    %v236 = vmul.f32 %v228, %v233
    %v238 = vlaneseq
    %v239 = vshrl.u32 %v238, 7
    %v240 = vsub.s32 0, %v239
    %v241 = vrot.slane %v200, %v240
    %v243 = vadd.f32 %v235, %v241
    %v244 = vadd.f32 %v236, %v241
    %v245 = vld [vmem:[%s2] sm:$0x3]
    %v246 = vld [vmem:[%s8] sm:$0xff]
    %v247 = vld [vmem:[%s8 + $0x8] sm:$0xff]
    %v248 = vld [vmem:[%s8 + $0x10] sm:$0xff]
    %v249 = vld [vmem:[%s8 + $0x18] sm:$0xff]
    %v250 = vld [vmem:[%s9] sm:$0x1]
    %v252 = vlaneseq
    %v253 = vshrl.u32 %v252, 7
    %v254 = vsub.s32 0, %v253
    %v255 = vrot.slane %v250, %v254
    %v258 = vsel %vm201, %v243, 0
    %v261 = vsel %vm201, %v244, 0
    %263 = vmatprep.subr.mxu0 0.0
    %264 = vmatpush1.msra.mxu0 %v246
    %265 = vmatprep.subr.mxu0 0.0
    %266 = vmatpush1.msra.mxu0 %v247
    %267 = vmatprep.subr.mxu0 0.0
    %268 = vmatpush1.msra.mxu0 %v248
    %269 = vmatprep.subr.mxu0 0.0
    %270 = vmatpush1.msra.mxu0 %v249
    %271 = vmatprep.subr.mxu0 0.0
    %272 = vmatpush1.msra.mxu0 0.0
    %273 = vmatprep.subr.mxu0 0.0
    %274 = vmatpush1.msra.mxu0 0.0
    %275 = vmatprep.subr.mxu0 0.0
    %276 = vmatpush1.msra.mxu0 0.0
    %277 = vmatprep.subr.mxu0 0.0
    %278 = vmatpush1.msra.mxu0 0.0
    %279 = vmatprep.subr.mxu0 0.0
    %280 = vmatpush1.msra.mxu0 0.0
    %281 = vmatprep.subr.mxu0 0.0
    %282 = vmatpush1.msra.mxu0 0.0
    %283 = vmatprep.subr.mxu0 0.0
    %284 = vmatpush1.msra.mxu0 0.0
    %285 = vmatprep.subr.mxu0 0.0
    %286 = vmatpush1.msra.mxu0 0.0
    %287 = vmatprep.subr.mxu0 0.0
    %288 = vmatpush1.msra.mxu0 0.0
    %289 = vmatprep.subr.mxu0 0.0
    %290 = vmatpush1.msra.mxu0 0.0
    %291 = vmatprep.subr.mxu0 0.0
    %292 = vmatpush1.msra.mxu0 0.0
    %293 = vmatprep.subr.mxu0 0.0
    %294 = vmatpush1.msra.mxu0 0.0
    %295 = vmatprep.subr.mxu0 0.0
    %296 = vmatpush1.msra.mxu0 0.0
    %297 = vmatprep.subr.mxu0 0.0
    %298 = vmatpush1.msra.mxu0 0.0
    %299 = vmatprep.subr.mxu0 0.0
    %300 = vmatpush1.msra.mxu0 0.0
    %301 = vmatprep.subr.mxu0 0.0
    %302 = vmatpush1.msra.mxu0 0.0
    %303 = vmatprep.subr.mxu0 0.0
    %304 = vmatpush1.msra.mxu0 0.0
    %305 = vmatprep.subr.mxu0 0.0
    %306 = vmatpush1.msra.mxu0 0.0
    %307 = vmatprep.subr.mxu0 0.0
    %308 = vmatpush1.msra.mxu0 0.0
    %309 = vmatprep.subr.mxu0 0.0
    %310 = vmatpush1.msra.mxu0 0.0
    %311 = vmatprep.subr.mxu0 0.0
    %312 = vmatpush1.msra.mxu0 0.0
    %313 = vmatprep.subr.mxu0 0.0
    %314 = vmatpush1.msra.mxu0 0.0
    %315 = vmatprep.subr.mxu0 0.0
    %316 = vmatpush1.msra.mxu0 0.0
    %317 = vmatprep.subr.mxu0 0.0
    %318 = vmatpush1.msra.mxu0 0.0
    %319 = vmatprep.subr.mxu0 0.0
    %320 = vmatpush1.msra.mxu0 0.0
    %321 = vmatprep.subr.mxu0 0.0
    %322 = vmatpush1.msra.mxu0 0.0
    %323 = vmatprep.subr.mxu0 0.0
    %324 = vmatpush1.msra.mxu0 0.0
    %325 = vmatprep.subr.mxu0 0.0
    %326 = vmatpush1.msra.mxu0 0.0
    %327 = vmatprep.mubr.f32.mxu0 0.0
    %328 = vmatmul.mubr.f32.gmra.mrb[0].mxu0 %v258
    %v329 = vpop.f32.mrb[0].mxu0
    %v330 = vadd.f32 %v255, %v329
    %v331 = vpop.f32.mrb[0].mxu0
    %332 = vmatprep.mubr.f32.mxu0 0.0
    %333 = vmatmul.mubr.f32.gmra.mrb[0].mxu0 %v261
    %v334 = vpop.f32.mrb[0].mxu0
    %v335 = vadd.f32 %v255, %v334
    %v336 = vpop.f32.mrb[0].mxu0
    %337 = vdwg.mxu0
    %v338 = vld [vmem:[%s10] sm:$0xff]
    %v339 = vld [vmem:[%s10 + $0x8] sm:$0xff]
    %v340 = vld [vmem:[%s10 + $0x10] sm:$0xff]
    %v341 = vld [vmem:[%s10 + $0x18] sm:$0xff]
    %v342 = vld [vmem:[%s11] sm:$0x1]
    %344 = vrot.lane.b32.xlu0 %v330, 96
    %v345 = vpop.permute.xlu0 %344
    %vm346 = vcmask 130048
    %v347 = vsel %vm346, %v330, 0
    %v349 = vsel %vm346, %v345, 0
    %351 = vmatprep.subr.mxu0 0.0
    %352 = vmatpush1.xpose.msra.mxu0 %v349
    %353 = vmatprep.subr.mxu0 0.0
    %354 = vmatpush1.xpose.msra.mxu0 0.0
    %355 = vmatprep.subr.mxu0 0.0
    %356 = vmatpush1.xpose.msra.mxu0 0.0
    %357 = vmatprep.subr.mxu0 0.0
    %358 = vmatpush1.xpose.msra.mxu0 0.0
    %359 = vmatprep.subr.mxu0 0.0
    %360 = vmatpush1.xpose.msra.mxu0 0.0
    %361 = vmatprep.subr.mxu0 0.0
    %362 = vmatpush1.xpose.msra.mxu0 0.0
    %363 = vmatprep.subr.mxu0 0.0
    %364 = vmatpush1.xpose.msra.mxu0 0.0
    %365 = vmatprep.subr.mxu0 0.0
    %366 = vmatpush1.xpose.msra.mxu0 0.0
    %367 = vmatprep.subr.mxu0 0.0
    %368 = vmatpush1.xpose.msra.mxu0 0.0
    %369 = vmatprep.subr.mxu0 0.0
    %370 = vmatpush1.xpose.msra.mxu0 0.0
    %371 = vmatprep.subr.mxu0 0.0
    %372 = vmatpush1.xpose.msra.mxu0 0.0
    %373 = vmatprep.subr.mxu0 0.0
    %374 = vmatpush1.xpose.msra.mxu0 0.0
    %375 = vmatprep.subr.mxu0 0.0
    %376 = vmatpush1.xpose.msra.mxu0 0.0
    %377 = vmatprep.subr.mxu0 0.0
    %378 = vmatpush1.xpose.msra.mxu0 0.0
    %379 = vmatprep.subr.mxu0 0.0
    %380 = vmatpush1.xpose.msra.mxu0 0.0
    %381 = vmatprep.subr.mxu0 0.0
    %382 = vmatpush1.xpose.msra.mxu0 0.0
    %383 = vmatprep.subr.mxu0 0.0
    %384 = vmatpush1.xpose.msra.mxu0 0.0
    %385 = vmatprep.subr.mxu0 0.0
    %386 = vmatpush1.xpose.msra.mxu0 0.0
    %387 = vmatprep.subr.mxu0 0.0
    %388 = vmatpush1.xpose.msra.mxu0 0.0
    %389 = vmatprep.subr.mxu0 0.0
    %390 = vmatpush1.xpose.msra.mxu0 0.0
    %391 = vmatprep.subr.mxu0 0.0
    %392 = vmatpush1.xpose.msra.mxu0 0.0
    %393 = vmatprep.subr.mxu0 0.0
    %394 = vmatpush1.xpose.msra.mxu0 0.0
    %395 = vmatprep.subr.mxu0 0.0
    %396 = vmatpush1.xpose.msra.mxu0 0.0
    %397 = vmatprep.subr.mxu0 0.0
    %398 = vmatpush1.xpose.msra.mxu0 0.0
    %399 = vmatprep.subr.mxu0 0.0
    %400 = vmatpush1.xpose.msra.mxu0 0.0
    %401 = vmatprep.subr.mxu0 0.0
    %402 = vmatpush1.xpose.msra.mxu0 0.0
    %403 = vmatprep.subr.mxu0 0.0
    %404 = vmatpush1.xpose.msra.mxu0 0.0
    %405 = vmatprep.subr.mxu0 0.0
    %406 = vmatpush1.xpose.msra.mxu0 0.0
    %407 = vmatprep.subr.mxu0 0.0
    %408 = vmatpush1.xpose.msra.mxu0 0.0
    %409 = vmatprep.subr.mxu0 0.0
    %410 = vmatpush1.xpose.msra.mxu0 0.0
    %411 = vmatprep.subr.mxu0 0.0
    %412 = vmatpush1.xpose.msra.mxu0 0.0
    %413 = vmatprep.subr.mxu0 0.0
    %414 = vmatpush1.xpose.msra.mxu0 0.0
    %415 = vmatprep.mubr.f32.mxu0 0.0
    %416 = vmatmul.mubr.f32.gmra.mrb[0].mxu0 %v347
    %v417 = vpop.f32.mrb[0].mxu0
    %v418 = vadd.f32 0.0, %v417
    %v419 = vpop.f32.mrb[0].mxu0
    %420 = vdwg.mxu0
    %v421 = vmul.f32 %v418, 0.25
    %v422 = vlaneseq
    %v423 = vshrl.u32 %v422, 7
    %v424 = vsub.s32 0, %v423
    %v425 = vrot.slane %v245, %v424
    %v426 = vadd.f32 %v421, %v425
    %vm427 = vcmask 64512
    %v428 = vsel %vm427, %v426, -inf
    %429 = vmax.xlane.f32.xlu0 %v428
    %v430 = vpop.xlane.xlu0 %429
    %v431 = vsub.f32 %v426, %v430
    %v432 = vmul.f32 %v431, 1.442695
    %v433 = vpow.pop %v432
    %v434 = vsel %vm427, %v433, 0.0
    %435 = vadd.xlane.f32.xlu0 %v434
    %v436 = vpop.xlane.xlu0 %435
    %v437 = vrcp.pop %v436
    %v438 = vmul.f32 %v433, %v437
    %439 = vrot.lane.b32.xlu0 %v330, 64
    %v440 = vpop.permute.xlu0 %439
    %v443 = vsel %vm427, %v438, 0
    %445 = vmatprep.subr.mxu0 0.0
    %446 = vmatpush1.msra.mxu0 %v440
    %447 = vmatprep.subr.mxu0 0.0
    %448 = vmatpush1.msra.mxu0 0.0
    %449 = vmatprep.subr.mxu0 0.0
    %450 = vmatpush1.msra.mxu0 0.0
    %451 = vmatprep.subr.mxu0 0.0
    %452 = vmatpush1.msra.mxu0 0.0
    %453 = vmatprep.subr.mxu0 0.0
    %454 = vmatpush1.msra.mxu0 0.0
    %455 = vmatprep.subr.mxu0 0.0
    %456 = vmatpush1.msra.mxu0 0.0
    %457 = vmatprep.subr.mxu0 0.0
    %458 = vmatpush1.msra.mxu0 0.0
    %459 = vmatprep.subr.mxu0 0.0
    %460 = vmatpush1.msra.mxu0 0.0
    %461 = vmatprep.subr.mxu0 0.0
    %462 = vmatpush1.msra.mxu0 0.0
    %463 = vmatprep.subr.mxu0 0.0
    %464 = vmatpush1.msra.mxu0 0.0
    %465 = vmatprep.subr.mxu0 0.0
    %466 = vmatpush1.msra.mxu0 0.0
    %467 = vmatprep.subr.mxu0 0.0
    %468 = vmatpush1.msra.mxu0 0.0
    %469 = vmatprep.subr.mxu0 0.0
    %470 = vmatpush1.msra.mxu0 0.0
    %471 = vmatprep.subr.mxu0 0.0
    %472 = vmatpush1.msra.mxu0 0.0
    %473 = vmatprep.subr.mxu0 0.0
    %474 = vmatpush1.msra.mxu0 0.0
    %475 = vmatprep.subr.mxu0 0.0
    %476 = vmatpush1.msra.mxu0 0.0
    %477 = vmatprep.subr.mxu0 0.0
    %478 = vmatpush1.msra.mxu0 0.0
    %479 = vmatprep.subr.mxu0 0.0
    %480 = vmatpush1.msra.mxu0 0.0
    %481 = vmatprep.subr.mxu0 0.0
    %482 = vmatpush1.msra.mxu0 0.0
    %483 = vmatprep.subr.mxu0 0.0
    %484 = vmatpush1.msra.mxu0 0.0
    %485 = vmatprep.subr.mxu0 0.0
    %486 = vmatpush1.msra.mxu0 0.0
    %487 = vmatprep.subr.mxu0 0.0
    %488 = vmatpush1.msra.mxu0 0.0
    %489 = vmatprep.subr.mxu0 0.0
    %490 = vmatpush1.msra.mxu0 0.0
    %491 = vmatprep.subr.mxu0 0.0
    %492 = vmatpush1.msra.mxu0 0.0
    %493 = vmatprep.subr.mxu0 0.0
    %494 = vmatpush1.msra.mxu0 0.0
    %495 = vmatprep.subr.mxu0 0.0
    %496 = vmatpush1.msra.mxu0 0.0
    %497 = vmatprep.subr.mxu0 0.0
    %498 = vmatpush1.msra.mxu0 0.0
    %499 = vmatprep.subr.mxu0 0.0
    %500 = vmatpush1.msra.mxu0 0.0
    %501 = vmatprep.subr.mxu0 0.0
    %502 = vmatpush1.msra.mxu0 0.0
    %503 = vmatprep.subr.mxu0 0.0
    %504 = vmatpush1.msra.mxu0 0.0
    %505 = vmatprep.subr.mxu0 0.0
    %506 = vmatpush1.msra.mxu0 0.0
    %507 = vmatprep.subr.mxu0 0.0
    %508 = vmatpush1.msra.mxu0 0.0
    %509 = vmatprep.mubr.f32.mxu0 0.0
    %510 = vmatmul.mubr.f32.gmra.mrb[0].mxu0 %v443
    %v511 = vpop.f32.mrb[0].mxu0
    %v512 = vadd.f32 0.0, %v511
    %v513 = vpop.f32.mrb[0].mxu0
    %514 = vdwg.mxu0
    %515 = vrot.lane.b32.xlu0 %v330, 112
    %v516 = vpop.permute.xlu0 %515
    %517 = vrot.lane.b32.xlu0 %v330, 80
    %v518 = vpop.permute.xlu0 %517
    %v519 = vsel %vm346, %v516, 0
    %v521 = vsel %vm346, %v518, 0
    %523 = vmatprep.subr.mxu0 0.0
    %524 = vmatpush1.xpose.msra.mxu0 %v521
    %525 = vmatprep.subr.mxu0 0.0
    %526 = vmatpush1.xpose.msra.mxu0 0.0
    %527 = vmatprep.subr.mxu0 0.0
    %528 = vmatpush1.xpose.msra.mxu0 0.0
    %529 = vmatprep.subr.mxu0 0.0
    %530 = vmatpush1.xpose.msra.mxu0 0.0
    %531 = vmatprep.subr.mxu0 0.0
    %532 = vmatpush1.xpose.msra.mxu0 0.0
    %533 = vmatprep.subr.mxu0 0.0
    %534 = vmatpush1.xpose.msra.mxu0 0.0
    %535 = vmatprep.subr.mxu0 0.0
    %536 = vmatpush1.xpose.msra.mxu0 0.0
    %537 = vmatprep.subr.mxu0 0.0
    %538 = vmatpush1.xpose.msra.mxu0 0.0
    %539 = vmatprep.subr.mxu0 0.0
    %540 = vmatpush1.xpose.msra.mxu0 0.0
    %541 = vmatprep.subr.mxu0 0.0
    %542 = vmatpush1.xpose.msra.mxu0 0.0
    %543 = vmatprep.subr.mxu0 0.0
    %544 = vmatpush1.xpose.msra.mxu0 0.0
    %545 = vmatprep.subr.mxu0 0.0
    %546 = vmatpush1.xpose.msra.mxu0 0.0
    %547 = vmatprep.subr.mxu0 0.0
    %548 = vmatpush1.xpose.msra.mxu0 0.0
    %549 = vmatprep.subr.mxu0 0.0
    %550 = vmatpush1.xpose.msra.mxu0 0.0
    %551 = vmatprep.subr.mxu0 0.0
    %552 = vmatpush1.xpose.msra.mxu0 0.0
    %553 = vmatprep.subr.mxu0 0.0
    %554 = vmatpush1.xpose.msra.mxu0 0.0
    %555 = vmatprep.subr.mxu0 0.0
    %556 = vmatpush1.xpose.msra.mxu0 0.0
    %557 = vmatprep.subr.mxu0 0.0
    %558 = vmatpush1.xpose.msra.mxu0 0.0
    %559 = vmatprep.subr.mxu0 0.0
    %560 = vmatpush1.xpose.msra.mxu0 0.0
    %561 = vmatprep.subr.mxu0 0.0
    %562 = vmatpush1.xpose.msra.mxu0 0.0
    %563 = vmatprep.subr.mxu0 0.0
    %564 = vmatpush1.xpose.msra.mxu0 0.0
    %565 = vmatprep.subr.mxu0 0.0
    %566 = vmatpush1.xpose.msra.mxu0 0.0
    %567 = vmatprep.subr.mxu0 0.0
    %568 = vmatpush1.xpose.msra.mxu0 0.0
    %569 = vmatprep.subr.mxu0 0.0
    %570 = vmatpush1.xpose.msra.mxu0 0.0
    %571 = vmatprep.subr.mxu0 0.0
    %572 = vmatpush1.xpose.msra.mxu0 0.0
    %573 = vmatprep.subr.mxu0 0.0
    %574 = vmatpush1.xpose.msra.mxu0 0.0
    %575 = vmatprep.subr.mxu0 0.0
    %576 = vmatpush1.xpose.msra.mxu0 0.0
    %577 = vmatprep.subr.mxu0 0.0
    %578 = vmatpush1.xpose.msra.mxu0 0.0
    %579 = vmatprep.subr.mxu0 0.0
    %580 = vmatpush1.xpose.msra.mxu0 0.0
    %581 = vmatprep.subr.mxu0 0.0
    %582 = vmatpush1.xpose.msra.mxu0 0.0
    %583 = vmatprep.subr.mxu0 0.0
    %584 = vmatpush1.xpose.msra.mxu0 0.0
    %585 = vmatprep.subr.mxu0 0.0
    %586 = vmatpush1.xpose.msra.mxu0 0.0
    %587 = vmatprep.mubr.f32.mxu0 0.0
    %588 = vmatmul.mubr.f32.gmra.mrb[0].mxu0 %v519
    %v589 = vpop.f32.mrb[0].mxu0
    %v590 = vadd.f32 0.0, %v589
    %v591 = vpop.f32.mrb[0].mxu0
    %592 = vdwg.mxu0
    %v593 = vmul.f32 %v590, 0.25
    %v594 = vadd.f32 %v593, %v425
    %v595 = vsel %vm427, %v594, -inf
    %596 = vmax.xlane.f32.xlu0 %v595
    %v597 = vpop.xlane.xlu0 %596
    %v598 = vsub.f32 %v594, %v597
    %v599 = vmul.f32 %v598, 1.442695
    %v600 = vpow.pop %v599
    %v601 = vsel %vm427, %v600, 0.0
    %602 = vadd.xlane.f32.xlu0 %v601
    %v603 = vpop.xlane.xlu0 %602
    %v604 = vrcp.pop %v603
    %v605 = vmul.f32 %v600, %v604
    %606 = vrot.lane.b32.xlu0 %v330, 48
    %v607 = vpop.permute.xlu0 %606
    %v610 = vsel %vm427, %v605, 0
    %612 = vmatprep.subr.mxu0 0.0
    %613 = vmatpush1.msra.mxu0 %v607
    %614 = vmatprep.subr.mxu0 0.0
    %615 = vmatpush1.msra.mxu0 0.0
    %616 = vmatprep.subr.mxu0 0.0
    %617 = vmatpush1.msra.mxu0 0.0
    %618 = vmatprep.subr.mxu0 0.0
    %619 = vmatpush1.msra.mxu0 0.0
    %620 = vmatprep.subr.mxu0 0.0
    %621 = vmatpush1.msra.mxu0 0.0
    %622 = vmatprep.subr.mxu0 0.0
    %623 = vmatpush1.msra.mxu0 0.0
    %624 = vmatprep.subr.mxu0 0.0
    %625 = vmatpush1.msra.mxu0 0.0
    %626 = vmatprep.subr.mxu0 0.0
    %627 = vmatpush1.msra.mxu0 0.0
    %628 = vmatprep.subr.mxu0 0.0
    %629 = vmatpush1.msra.mxu0 0.0
    %630 = vmatprep.subr.mxu0 0.0
    %631 = vmatpush1.msra.mxu0 0.0
    %632 = vmatprep.subr.mxu0 0.0
    %633 = vmatpush1.msra.mxu0 0.0
    %634 = vmatprep.subr.mxu0 0.0
    %635 = vmatpush1.msra.mxu0 0.0
    %636 = vmatprep.subr.mxu0 0.0
    %637 = vmatpush1.msra.mxu0 0.0
    %638 = vmatprep.subr.mxu0 0.0
    %639 = vmatpush1.msra.mxu0 0.0
    %640 = vmatprep.subr.mxu0 0.0
    %641 = vmatpush1.msra.mxu0 0.0
    %642 = vmatprep.subr.mxu0 0.0
    %643 = vmatpush1.msra.mxu0 0.0
    %644 = vmatprep.subr.mxu0 0.0
    %645 = vmatpush1.msra.mxu0 0.0
    %646 = vmatprep.subr.mxu0 0.0
    %647 = vmatpush1.msra.mxu0 0.0
    %648 = vmatprep.subr.mxu0 0.0
    %649 = vmatpush1.msra.mxu0 0.0
    %650 = vmatprep.subr.mxu0 0.0
    %651 = vmatpush1.msra.mxu0 0.0
    %652 = vmatprep.subr.mxu0 0.0
    %653 = vmatpush1.msra.mxu0 0.0
    %654 = vmatprep.subr.mxu0 0.0
    %655 = vmatpush1.msra.mxu0 0.0
    %656 = vmatprep.subr.mxu0 0.0
    %657 = vmatpush1.msra.mxu0 0.0
    %658 = vmatprep.subr.mxu0 0.0
    %659 = vmatpush1.msra.mxu0 0.0
    %660 = vmatprep.subr.mxu0 0.0
    %661 = vmatpush1.msra.mxu0 0.0
    %662 = vmatprep.subr.mxu0 0.0
    %663 = vmatpush1.msra.mxu0 0.0
    %664 = vmatprep.subr.mxu0 0.0
    %665 = vmatpush1.msra.mxu0 0.0
    %666 = vmatprep.subr.mxu0 0.0
    %667 = vmatpush1.msra.mxu0 0.0
    %668 = vmatprep.subr.mxu0 0.0
    %669 = vmatpush1.msra.mxu0 0.0
    %670 = vmatprep.subr.mxu0 0.0
    %671 = vmatpush1.msra.mxu0 0.0
    %672 = vmatprep.subr.mxu0 0.0
    %673 = vmatpush1.msra.mxu0 0.0
    %674 = vmatprep.subr.mxu0 0.0
    %675 = vmatpush1.msra.mxu0 0.0
    %676 = vmatprep.mubr.f32.mxu0 0.0
    %677 = vmatmul.mubr.f32.gmra.mrb[0].mxu0 %v610
    %v678 = vpop.f32.mrb[0].mxu0
    %v679 = vadd.f32 0.0, %v678
    %v680 = vpop.f32.mrb[0].mxu0
    %681 = vdwg.mxu0
    %v683 = vsel %vm346, %v679, 0
    %685 = vmatprep.subr.mxu0 0.0
    %686 = vmatpush1.msra.mxu0 %v340
    %687 = vmatprep.subr.mxu0 0.0
    %688 = vmatpush1.msra.mxu0 %v341
    %689 = vmatprep.subr.mxu0 0.0
    %690 = vmatpush1.msra.mxu0 0.0
    %691 = vmatprep.subr.mxu0 0.0
    %692 = vmatpush1.msra.mxu0 0.0
    %693 = vmatprep.subr.mxu0 0.0
    %694 = vmatpush1.msra.mxu0 0.0
    %695 = vmatprep.subr.mxu0 0.0
    %696 = vmatpush1.msra.mxu0 0.0
    %697 = vmatprep.subr.mxu0 0.0
    %698 = vmatpush1.msra.mxu0 0.0
    %699 = vmatprep.subr.mxu0 0.0
    %700 = vmatpush1.msra.mxu0 0.0
    %701 = vmatprep.subr.mxu0 0.0
    %702 = vmatpush1.msra.mxu0 0.0
    %703 = vmatprep.subr.mxu0 0.0
    %704 = vmatpush1.msra.mxu0 0.0
    %705 = vmatprep.subr.mxu0 0.0
    %706 = vmatpush1.msra.mxu0 0.0
    %707 = vmatprep.subr.mxu0 0.0
    %708 = vmatpush1.msra.mxu0 0.0
    %709 = vmatprep.subr.mxu0 0.0
    %710 = vmatpush1.msra.mxu0 0.0
    %711 = vmatprep.subr.mxu0 0.0
    %712 = vmatpush1.msra.mxu0 0.0
    %713 = vmatprep.subr.mxu0 0.0
    %714 = vmatpush1.msra.mxu0 0.0
    %715 = vmatprep.subr.mxu0 0.0
    %716 = vmatpush1.msra.mxu0 0.0
    %717 = vmatprep.subr.mxu0 0.0
    %718 = vmatpush1.msra.mxu0 0.0
    %719 = vmatprep.subr.mxu0 0.0
    %720 = vmatpush1.msra.mxu0 0.0
    %721 = vmatprep.subr.mxu0 0.0
    %722 = vmatpush1.msra.mxu0 0.0
    %723 = vmatprep.subr.mxu0 0.0
    %724 = vmatpush1.msra.mxu0 0.0
    %725 = vmatprep.subr.mxu0 0.0
    %726 = vmatpush1.msra.mxu0 0.0
    %727 = vmatprep.subr.mxu0 0.0
    %728 = vmatpush1.msra.mxu0 0.0
    %729 = vmatprep.subr.mxu0 0.0
    %730 = vmatpush1.msra.mxu0 0.0
    %731 = vmatprep.subr.mxu0 0.0
    %732 = vmatpush1.msra.mxu0 0.0
    %733 = vmatprep.subr.mxu0 0.0
    %734 = vmatpush1.msra.mxu0 0.0
    %735 = vmatprep.subr.mxu0 0.0
    %736 = vmatpush1.msra.mxu0 0.0
    %737 = vmatprep.subr.mxu0 0.0
    %738 = vmatpush1.msra.mxu0 0.0
    %739 = vmatprep.subr.mxu0 0.0
    %740 = vmatpush1.msra.mxu0 0.0
    %741 = vmatprep.subr.mxu0 0.0
    %742 = vmatpush1.msra.mxu0 0.0
    %743 = vmatprep.subr.mxu0 0.0
    %744 = vmatpush1.msra.mxu0 0.0
    %745 = vmatprep.subr.mxu0 0.0
    %746 = vmatpush1.msra.mxu0 0.0
    %747 = vmatprep.subr.mxu0 0.0
    %748 = vmatpush1.msra.mxu0 0.0
    %749 = vmatprep.mubr.f32.mxu0 0.0
    %750 = vmatmul.mubr.f32.gmra.mrb[0].mxu0 %v683
    %v751 = vpop.f32.mrb[0].mxu0
    %v752 = vadd.f32 0.0, %v751
    %v753 = vpop.f32.mrb[0].mxu0
    %754 = vdwg.mxu0
    %v756 = vsel %vm346, %v512, 0
    %758 = vmatprep.subr.mxu0 0.0
    %759 = vmatpush1.msra.mxu0 %v338
    %760 = vmatprep.subr.mxu0 0.0
    %761 = vmatpush1.msra.mxu0 %v339
    %762 = vmatprep.subr.mxu0 0.0
    %763 = vmatpush1.msra.mxu0 0.0
    %764 = vmatprep.subr.mxu0 0.0
    %765 = vmatpush1.msra.mxu0 0.0
    %766 = vmatprep.subr.mxu0 0.0
    %767 = vmatpush1.msra.mxu0 0.0
    %768 = vmatprep.subr.mxu0 0.0
    %769 = vmatpush1.msra.mxu0 0.0
    %770 = vmatprep.subr.mxu0 0.0
    %771 = vmatpush1.msra.mxu0 0.0
    %772 = vmatprep.subr.mxu0 0.0
    %773 = vmatpush1.msra.mxu0 0.0
    %774 = vmatprep.subr.mxu0 0.0
    %775 = vmatpush1.msra.mxu0 0.0
    %776 = vmatprep.subr.mxu0 0.0
    %777 = vmatpush1.msra.mxu0 0.0
    %778 = vmatprep.subr.mxu0 0.0
    %779 = vmatpush1.msra.mxu0 0.0
    %780 = vmatprep.subr.mxu0 0.0
    %781 = vmatpush1.msra.mxu0 0.0
    %782 = vmatprep.subr.mxu0 0.0
    %783 = vmatpush1.msra.mxu0 0.0
    %784 = vmatprep.subr.mxu0 0.0
    %785 = vmatpush1.msra.mxu0 0.0
    %786 = vmatprep.subr.mxu0 0.0
    %787 = vmatpush1.msra.mxu0 0.0
    %788 = vmatprep.subr.mxu0 0.0
    %789 = vmatpush1.msra.mxu0 0.0
    %790 = vmatprep.subr.mxu0 0.0
    %791 = vmatpush1.msra.mxu0 0.0
    %792 = vmatprep.subr.mxu0 0.0
    %793 = vmatpush1.msra.mxu0 0.0
    %794 = vmatprep.subr.mxu0 0.0
    %795 = vmatpush1.msra.mxu0 0.0
    %796 = vmatprep.subr.mxu0 0.0
    %797 = vmatpush1.msra.mxu0 0.0
    %798 = vmatprep.subr.mxu0 0.0
    %799 = vmatpush1.msra.mxu0 0.0
    %800 = vmatprep.subr.mxu0 0.0
    %801 = vmatpush1.msra.mxu0 0.0
    %802 = vmatprep.subr.mxu0 0.0
    %803 = vmatpush1.msra.mxu0 0.0
    %804 = vmatprep.subr.mxu0 0.0
    %805 = vmatpush1.msra.mxu0 0.0
    %806 = vmatprep.subr.mxu0 0.0
    %807 = vmatpush1.msra.mxu0 0.0
    %808 = vmatprep.subr.mxu0 0.0
    %809 = vmatpush1.msra.mxu0 0.0
    %810 = vmatprep.subr.mxu0 0.0
    %811 = vmatpush1.msra.mxu0 0.0
    %812 = vmatprep.subr.mxu0 0.0
    %813 = vmatpush1.msra.mxu0 0.0
    %814 = vmatprep.subr.mxu0 0.0
    %815 = vmatpush1.msra.mxu0 0.0
    %816 = vmatprep.subr.mxu0 0.0
    %817 = vmatpush1.msra.mxu0 0.0
    %818 = vmatprep.subr.mxu0 0.0
    %819 = vmatpush1.msra.mxu0 0.0
    %820 = vmatprep.subr.mxu0 0.0
    %821 = vmatpush1.msra.mxu0 0.0
    %822 = vmatprep.mubr.f32.mxu0 0.0
    %823 = vmatmul.mubr.f32.gmra.mrb[0].mxu0 %v756
    %v824 = vpop.f32.mrb[0].mxu0
    %v825 = vadd.f32 %v752, %v824
    %v826 = vpop.f32.mrb[0].mxu0
    %827 = vdwg.mxu0
    %v829 = vlaneseq
    %v830 = vshrl.u32 %v829, 7
    %v831 = vsub.s32 0, %v830
    %v832 = vrot.slane %v342, %v831
    %v834 = vadd.f32 %v825, %v832
    %836 = vrot.lane.b32.xlu0 %v335, 96
    %v837 = vpop.permute.xlu0 %836
    %v838 = vsel %vm346, %v335, 0
    %v840 = vsel %vm346, %v837, 0
    %842 = vmatprep.subr.mxu0 0.0
    %843 = vmatpush1.xpose.msra.mxu0 %v840
    %844 = vmatprep.subr.mxu0 0.0
    %845 = vmatpush1.xpose.msra.mxu0 0.0
    %846 = vmatprep.subr.mxu0 0.0
    %847 = vmatpush1.xpose.msra.mxu0 0.0
    %848 = vmatprep.subr.mxu0 0.0
    %849 = vmatpush1.xpose.msra.mxu0 0.0
    %850 = vmatprep.subr.mxu0 0.0
    %851 = vmatpush1.xpose.msra.mxu0 0.0
    %852 = vmatprep.subr.mxu0 0.0
    %853 = vmatpush1.xpose.msra.mxu0 0.0
    %854 = vmatprep.subr.mxu0 0.0
    %855 = vmatpush1.xpose.msra.mxu0 0.0
    %856 = vmatprep.subr.mxu0 0.0
    %857 = vmatpush1.xpose.msra.mxu0 0.0
    %858 = vmatprep.subr.mxu0 0.0
    %859 = vmatpush1.xpose.msra.mxu0 0.0
    %860 = vmatprep.subr.mxu0 0.0
    %861 = vmatpush1.xpose.msra.mxu0 0.0
    %862 = vmatprep.subr.mxu0 0.0
    %863 = vmatpush1.xpose.msra.mxu0 0.0
    %864 = vmatprep.subr.mxu0 0.0
    %865 = vmatpush1.xpose.msra.mxu0 0.0
    %866 = vmatprep.subr.mxu0 0.0
    %867 = vmatpush1.xpose.msra.mxu0 0.0
    %868 = vmatprep.subr.mxu0 0.0
    %869 = vmatpush1.xpose.msra.mxu0 0.0
    %870 = vmatprep.subr.mxu0 0.0
    %871 = vmatpush1.xpose.msra.mxu0 0.0
    %872 = vmatprep.subr.mxu0 0.0
    %873 = vmatpush1.xpose.msra.mxu0 0.0
    %874 = vmatprep.subr.mxu0 0.0
    %875 = vmatpush1.xpose.msra.mxu0 0.0
    %876 = vmatprep.subr.mxu0 0.0
    %877 = vmatpush1.xpose.msra.mxu0 0.0
    %878 = vmatprep.subr.mxu0 0.0
    %879 = vmatpush1.xpose.msra.mxu0 0.0
    %880 = vmatprep.subr.mxu0 0.0
    %881 = vmatpush1.xpose.msra.mxu0 0.0
    %882 = vmatprep.subr.mxu0 0.0
    %883 = vmatpush1.xpose.msra.mxu0 0.0
    %884 = vmatprep.subr.mxu0 0.0
    %885 = vmatpush1.xpose.msra.mxu0 0.0
    %886 = vmatprep.subr.mxu0 0.0
    %887 = vmatpush1.xpose.msra.mxu0 0.0
    %888 = vmatprep.subr.mxu0 0.0
    %889 = vmatpush1.xpose.msra.mxu0 0.0
    %890 = vmatprep.subr.mxu0 0.0
    %891 = vmatpush1.xpose.msra.mxu0 0.0
    %892 = vmatprep.subr.mxu0 0.0
    %893 = vmatpush1.xpose.msra.mxu0 0.0
    %894 = vmatprep.subr.mxu0 0.0
    %895 = vmatpush1.xpose.msra.mxu0 0.0
    %896 = vmatprep.subr.mxu0 0.0
    %897 = vmatpush1.xpose.msra.mxu0 0.0
    %898 = vmatprep.subr.mxu0 0.0
    %899 = vmatpush1.xpose.msra.mxu0 0.0
    %900 = vmatprep.subr.mxu0 0.0
    %901 = vmatpush1.xpose.msra.mxu0 0.0
    %902 = vmatprep.subr.mxu0 0.0
    %903 = vmatpush1.xpose.msra.mxu0 0.0
    %904 = vmatprep.subr.mxu0 0.0
    %905 = vmatpush1.xpose.msra.mxu0 0.0
    %906 = vmatprep.mubr.f32.mxu0 0.0
    %907 = vmatmul.mubr.f32.gmra.mrb[0].mxu0 %v838
    %v908 = vpop.f32.mrb[0].mxu0
    %v909 = vadd.f32 0.0, %v908
    %v910 = vpop.f32.mrb[0].mxu0
    %911 = vdwg.mxu0
    %v912 = vmul.f32 %v909, 0.25
    %v913 = vlaneseq
    %v914 = vshrl.u32 %v913, 7
    %v915 = vsub.s32 1, %v914
    %v916 = vrot.slane %v245, %v915
    %v917 = vadd.f32 %v912, %v916
    %v918 = vsel %vm427, %v917, -inf
    %919 = vmax.xlane.f32.xlu0 %v918
    %v920 = vpop.xlane.xlu0 %919
    %v921 = vsub.f32 %v917, %v920
    %v922 = vmul.f32 %v921, 1.442695
    %v923 = vpow.pop %v922
    %v924 = vsel %vm427, %v923, 0.0
    %925 = vadd.xlane.f32.xlu0 %v924
    %v926 = vpop.xlane.xlu0 %925
    %v927 = vrcp.pop %v926
    %v928 = vmul.f32 %v923, %v927
    %929 = vrot.lane.b32.xlu0 %v335, 64
    %v930 = vpop.permute.xlu0 %929
    %v933 = vsel %vm427, %v928, 0
    %935 = vmatprep.subr.mxu0 0.0
    %936 = vmatpush1.msra.mxu0 %v930
    %937 = vmatprep.subr.mxu0 0.0
    %938 = vmatpush1.msra.mxu0 0.0
    %939 = vmatprep.subr.mxu0 0.0
    %940 = vmatpush1.msra.mxu0 0.0
    %941 = vmatprep.subr.mxu0 0.0
    %942 = vmatpush1.msra.mxu0 0.0
    %943 = vmatprep.subr.mxu0 0.0
    %944 = vmatpush1.msra.mxu0 0.0
    %945 = vmatprep.subr.mxu0 0.0
    %946 = vmatpush1.msra.mxu0 0.0
    %947 = vmatprep.subr.mxu0 0.0
    %948 = vmatpush1.msra.mxu0 0.0
    %949 = vmatprep.subr.mxu0 0.0
    %950 = vmatpush1.msra.mxu0 0.0
    %951 = vmatprep.subr.mxu0 0.0
    %952 = vmatpush1.msra.mxu0 0.0
    %953 = vmatprep.subr.mxu0 0.0
    %954 = vmatpush1.msra.mxu0 0.0
    %955 = vmatprep.subr.mxu0 0.0
    %956 = vmatpush1.msra.mxu0 0.0
    %957 = vmatprep.subr.mxu0 0.0
    %958 = vmatpush1.msra.mxu0 0.0
    %959 = vmatprep.subr.mxu0 0.0
    %960 = vmatpush1.msra.mxu0 0.0
    %961 = vmatprep.subr.mxu0 0.0
    %962 = vmatpush1.msra.mxu0 0.0
    %963 = vmatprep.subr.mxu0 0.0
    %964 = vmatpush1.msra.mxu0 0.0
    %965 = vmatprep.subr.mxu0 0.0
    %966 = vmatpush1.msra.mxu0 0.0
    %967 = vmatprep.subr.mxu0 0.0
    %968 = vmatpush1.msra.mxu0 0.0
    %969 = vmatprep.subr.mxu0 0.0
    %970 = vmatpush1.msra.mxu0 0.0
    %971 = vmatprep.subr.mxu0 0.0
    %972 = vmatpush1.msra.mxu0 0.0
    %973 = vmatprep.subr.mxu0 0.0
    %974 = vmatpush1.msra.mxu0 0.0
    %975 = vmatprep.subr.mxu0 0.0
    %976 = vmatpush1.msra.mxu0 0.0
    %977 = vmatprep.subr.mxu0 0.0
    %978 = vmatpush1.msra.mxu0 0.0
    %979 = vmatprep.subr.mxu0 0.0
    %980 = vmatpush1.msra.mxu0 0.0
    %981 = vmatprep.subr.mxu0 0.0
    %982 = vmatpush1.msra.mxu0 0.0
    %983 = vmatprep.subr.mxu0 0.0
    %984 = vmatpush1.msra.mxu0 0.0
    %985 = vmatprep.subr.mxu0 0.0
    %986 = vmatpush1.msra.mxu0 0.0
    %987 = vmatprep.subr.mxu0 0.0
    %988 = vmatpush1.msra.mxu0 0.0
    %989 = vmatprep.subr.mxu0 0.0
    %990 = vmatpush1.msra.mxu0 0.0
    %991 = vmatprep.subr.mxu0 0.0
    %992 = vmatpush1.msra.mxu0 0.0
    %993 = vmatprep.subr.mxu0 0.0
    %994 = vmatpush1.msra.mxu0 0.0
    %995 = vmatprep.subr.mxu0 0.0
    %996 = vmatpush1.msra.mxu0 0.0
    %997 = vmatprep.subr.mxu0 0.0
    %998 = vmatpush1.msra.mxu0 0.0
    %999 = vmatprep.mubr.f32.mxu0 0.0
    %1000 = vmatmul.mubr.f32.gmra.mrb[0].mxu0 %v933
    %v1001 = vpop.f32.mrb[0].mxu0
    %v1002 = vadd.f32 0.0, %v1001
    %v1003 = vpop.f32.mrb[0].mxu0
    %1004 = vdwg.mxu0
    %1005 = vrot.lane.b32.xlu0 %v335, 112
    %v1006 = vpop.permute.xlu0 %1005
    %1007 = vrot.lane.b32.xlu0 %v335, 80
    %v1008 = vpop.permute.xlu0 %1007
    %v1009 = vsel %vm346, %v1006, 0
    %v1011 = vsel %vm346, %v1008, 0
    %1013 = vmatprep.subr.mxu0 0.0
    %1014 = vmatpush1.xpose.msra.mxu0 %v1011
    %1015 = vmatprep.subr.mxu0 0.0
    %1016 = vmatpush1.xpose.msra.mxu0 0.0
    %1017 = vmatprep.subr.mxu0 0.0
    %1018 = vmatpush1.xpose.msra.mxu0 0.0
    %1019 = vmatprep.subr.mxu0 0.0
    %1020 = vmatpush1.xpose.msra.mxu0 0.0
    %1021 = vmatprep.subr.mxu0 0.0
    %1022 = vmatpush1.xpose.msra.mxu0 0.0
    %1023 = vmatprep.subr.mxu0 0.0
    %1024 = vmatpush1.xpose.msra.mxu0 0.0
    %1025 = vmatprep.subr.mxu0 0.0
    %1026 = vmatpush1.xpose.msra.mxu0 0.0
    %1027 = vmatprep.subr.mxu0 0.0
    %1028 = vmatpush1.xpose.msra.mxu0 0.0
    %1029 = vmatprep.subr.mxu0 0.0
    %1030 = vmatpush1.xpose.msra.mxu0 0.0
    %1031 = vmatprep.subr.mxu0 0.0
    %1032 = vmatpush1.xpose.msra.mxu0 0.0
    %1033 = vmatprep.subr.mxu0 0.0
    %1034 = vmatpush1.xpose.msra.mxu0 0.0
    %1035 = vmatprep.subr.mxu0 0.0
    %1036 = vmatpush1.xpose.msra.mxu0 0.0
    %1037 = vmatprep.subr.mxu0 0.0
    %1038 = vmatpush1.xpose.msra.mxu0 0.0
    %1039 = vmatprep.subr.mxu0 0.0
    %1040 = vmatpush1.xpose.msra.mxu0 0.0
    %1041 = vmatprep.subr.mxu0 0.0
    %1042 = vmatpush1.xpose.msra.mxu0 0.0
    %1043 = vmatprep.subr.mxu0 0.0
    %1044 = vmatpush1.xpose.msra.mxu0 0.0
    %1045 = vmatprep.subr.mxu0 0.0
    %1046 = vmatpush1.xpose.msra.mxu0 0.0
    %1047 = vmatprep.subr.mxu0 0.0
    %1048 = vmatpush1.xpose.msra.mxu0 0.0
    %1049 = vmatprep.subr.mxu0 0.0
    %1050 = vmatpush1.xpose.msra.mxu0 0.0
    %1051 = vmatprep.subr.mxu0 0.0
    %1052 = vmatpush1.xpose.msra.mxu0 0.0
    %1053 = vmatprep.subr.mxu0 0.0
    %1054 = vmatpush1.xpose.msra.mxu0 0.0
    %1055 = vmatprep.subr.mxu0 0.0
    %1056 = vmatpush1.xpose.msra.mxu0 0.0
    %1057 = vmatprep.subr.mxu0 0.0
    %1058 = vmatpush1.xpose.msra.mxu0 0.0
    %1059 = vmatprep.subr.mxu0 0.0
    %1060 = vmatpush1.xpose.msra.mxu0 0.0
    %1061 = vmatprep.subr.mxu0 0.0
    %1062 = vmatpush1.xpose.msra.mxu0 0.0
    %1063 = vmatprep.subr.mxu0 0.0
    %1064 = vmatpush1.xpose.msra.mxu0 0.0
    %1065 = vmatprep.subr.mxu0 0.0
    %1066 = vmatpush1.xpose.msra.mxu0 0.0
    %1067 = vmatprep.subr.mxu0 0.0
    %1068 = vmatpush1.xpose.msra.mxu0 0.0
    %1069 = vmatprep.subr.mxu0 0.0
    %1070 = vmatpush1.xpose.msra.mxu0 0.0
    %1071 = vmatprep.subr.mxu0 0.0
    %1072 = vmatpush1.xpose.msra.mxu0 0.0
    %1073 = vmatprep.subr.mxu0 0.0
    %1074 = vmatpush1.xpose.msra.mxu0 0.0
    %1075 = vmatprep.subr.mxu0 0.0
    %1076 = vmatpush1.xpose.msra.mxu0 0.0
    %1077 = vmatprep.mubr.f32.mxu0 0.0
    %1078 = vmatmul.mubr.f32.gmra.mrb[0].mxu0 %v1009
    %v1079 = vpop.f32.mrb[0].mxu0
    %v1080 = vadd.f32 0.0, %v1079
    %v1081 = vpop.f32.mrb[0].mxu0
    %1082 = vdwg.mxu0
    %v1083 = vmul.f32 %v1080, 0.25
    %v1084 = vadd.f32 %v1083, %v916
    %v1085 = vsel %vm427, %v1084, -inf
    %1086 = vmax.xlane.f32.xlu0 %v1085
    %v1087 = vpop.xlane.xlu0 %1086
    %v1088 = vsub.f32 %v1084, %v1087
    %v1089 = vmul.f32 %v1088, 1.442695
    %v1090 = vpow.pop %v1089
    %v1091 = vsel %vm427, %v1090, 0.0
    %1092 = vadd.xlane.f32.xlu0 %v1091
    %v1093 = vpop.xlane.xlu0 %1092
    %v1094 = vrcp.pop %v1093
    %v1095 = vmul.f32 %v1090, %v1094
    %1096 = vrot.lane.b32.xlu0 %v335, 48
    %v1097 = vpop.permute.xlu0 %1096
    %v1100 = vsel %vm427, %v1095, 0
    %1102 = vmatprep.subr.mxu0 0.0
    %1103 = vmatpush1.msra.mxu0 %v1097
    %1104 = vmatprep.subr.mxu0 0.0
    %1105 = vmatpush1.msra.mxu0 0.0
    %1106 = vmatprep.subr.mxu0 0.0
    %1107 = vmatpush1.msra.mxu0 0.0
    %1108 = vmatprep.subr.mxu0 0.0
    %1109 = vmatpush1.msra.mxu0 0.0
    %1110 = vmatprep.subr.mxu0 0.0
    %1111 = vmatpush1.msra.mxu0 0.0
    %1112 = vmatprep.subr.mxu0 0.0
    %1113 = vmatpush1.msra.mxu0 0.0
    %1114 = vmatprep.subr.mxu0 0.0
    %1115 = vmatpush1.msra.mxu0 0.0
    %1116 = vmatprep.subr.mxu0 0.0
    %1117 = vmatpush1.msra.mxu0 0.0
    %1118 = vmatprep.subr.mxu0 0.0
    %1119 = vmatpush1.msra.mxu0 0.0
    %1120 = vmatprep.subr.mxu0 0.0
    %1121 = vmatpush1.msra.mxu0 0.0
    %1122 = vmatprep.subr.mxu0 0.0
    %1123 = vmatpush1.msra.mxu0 0.0
    %1124 = vmatprep.subr.mxu0 0.0
    %1125 = vmatpush1.msra.mxu0 0.0
    %1126 = vmatprep.subr.mxu0 0.0
    %1127 = vmatpush1.msra.mxu0 0.0
    %1128 = vmatprep.subr.mxu0 0.0
    %1129 = vmatpush1.msra.mxu0 0.0
    %1130 = vmatprep.subr.mxu0 0.0
    %1131 = vmatpush1.msra.mxu0 0.0
    %1132 = vmatprep.subr.mxu0 0.0
    %1133 = vmatpush1.msra.mxu0 0.0
    %1134 = vmatprep.subr.mxu0 0.0
    %1135 = vmatpush1.msra.mxu0 0.0
    %1136 = vmatprep.subr.mxu0 0.0
    %1137 = vmatpush1.msra.mxu0 0.0
    %1138 = vmatprep.subr.mxu0 0.0
    %1139 = vmatpush1.msra.mxu0 0.0
    %1140 = vmatprep.subr.mxu0 0.0
    %1141 = vmatpush1.msra.mxu0 0.0
    %1142 = vmatprep.subr.mxu0 0.0
    %1143 = vmatpush1.msra.mxu0 0.0
    %1144 = vmatprep.subr.mxu0 0.0
    %1145 = vmatpush1.msra.mxu0 0.0
    %1146 = vmatprep.subr.mxu0 0.0
    %1147 = vmatpush1.msra.mxu0 0.0
    %1148 = vmatprep.subr.mxu0 0.0
    %1149 = vmatpush1.msra.mxu0 0.0
    %1150 = vmatprep.subr.mxu0 0.0
    %1151 = vmatpush1.msra.mxu0 0.0
    %1152 = vmatprep.subr.mxu0 0.0
    %1153 = vmatpush1.msra.mxu0 0.0
    %1154 = vmatprep.subr.mxu0 0.0
    %1155 = vmatpush1.msra.mxu0 0.0
    %1156 = vmatprep.subr.mxu0 0.0
    %1157 = vmatpush1.msra.mxu0 0.0
    %1158 = vmatprep.subr.mxu0 0.0
    %1159 = vmatpush1.msra.mxu0 0.0
    %1160 = vmatprep.subr.mxu0 0.0
    %1161 = vmatpush1.msra.mxu0 0.0
    %1162 = vmatprep.subr.mxu0 0.0
    %1163 = vmatpush1.msra.mxu0 0.0
    %1164 = vmatprep.subr.mxu0 0.0
    %1165 = vmatpush1.msra.mxu0 0.0
    %1166 = vmatprep.mubr.f32.mxu0 0.0
    %1167 = vmatmul.mubr.f32.gmra.mrb[0].mxu0 %v1100
    %v1168 = vpop.f32.mrb[0].mxu0
    %v1169 = vadd.f32 0.0, %v1168
    %v1170 = vpop.f32.mrb[0].mxu0
    %1171 = vdwg.mxu0
    %v1173 = vsel %vm346, %v1169, 0
    %1175 = vmatprep.subr.mxu0 0.0
    %1176 = vmatpush1.msra.mxu0 %v340
    %1177 = vmatprep.subr.mxu0 0.0
    %1178 = vmatpush1.msra.mxu0 %v341
    %1179 = vmatprep.subr.mxu0 0.0
    %1180 = vmatpush1.msra.mxu0 0.0
    %1181 = vmatprep.subr.mxu0 0.0
    %1182 = vmatpush1.msra.mxu0 0.0
    %1183 = vmatprep.subr.mxu0 0.0
    %1184 = vmatpush1.msra.mxu0 0.0
    %1185 = vmatprep.subr.mxu0 0.0
    %1186 = vmatpush1.msra.mxu0 0.0
    %1187 = vmatprep.subr.mxu0 0.0
    %1188 = vmatpush1.msra.mxu0 0.0
    %1189 = vmatprep.subr.mxu0 0.0
    %1190 = vmatpush1.msra.mxu0 0.0
    %1191 = vmatprep.subr.mxu0 0.0
    %1192 = vmatpush1.msra.mxu0 0.0
    %1193 = vmatprep.subr.mxu0 0.0
    %1194 = vmatpush1.msra.mxu0 0.0
    %1195 = vmatprep.subr.mxu0 0.0
    %1196 = vmatpush1.msra.mxu0 0.0
    %1197 = vmatprep.subr.mxu0 0.0
    %1198 = vmatpush1.msra.mxu0 0.0
    %1199 = vmatprep.subr.mxu0 0.0
    %1200 = vmatpush1.msra.mxu0 0.0
    %1201 = vmatprep.subr.mxu0 0.0
    %1202 = vmatpush1.msra.mxu0 0.0
    %1203 = vmatprep.subr.mxu0 0.0
    %1204 = vmatpush1.msra.mxu0 0.0
    %1205 = vmatprep.subr.mxu0 0.0
    %1206 = vmatpush1.msra.mxu0 0.0
    %1207 = vmatprep.subr.mxu0 0.0
    %1208 = vmatpush1.msra.mxu0 0.0
    %1209 = vmatprep.subr.mxu0 0.0
    %1210 = vmatpush1.msra.mxu0 0.0
    %1211 = vmatprep.subr.mxu0 0.0
    %1212 = vmatpush1.msra.mxu0 0.0
    %1213 = vmatprep.subr.mxu0 0.0
    %1214 = vmatpush1.msra.mxu0 0.0
    %1215 = vmatprep.subr.mxu0 0.0
    %1216 = vmatpush1.msra.mxu0 0.0
    %1217 = vmatprep.subr.mxu0 0.0
    %1218 = vmatpush1.msra.mxu0 0.0
    %1219 = vmatprep.subr.mxu0 0.0
    %1220 = vmatpush1.msra.mxu0 0.0
    %1221 = vmatprep.subr.mxu0 0.0
    %1222 = vmatpush1.msra.mxu0 0.0
    %1223 = vmatprep.subr.mxu0 0.0
    %1224 = vmatpush1.msra.mxu0 0.0
    %1225 = vmatprep.subr.mxu0 0.0
    %1226 = vmatpush1.msra.mxu0 0.0
    %1227 = vmatprep.subr.mxu0 0.0
    %1228 = vmatpush1.msra.mxu0 0.0
    %1229 = vmatprep.subr.mxu0 0.0
    %1230 = vmatpush1.msra.mxu0 0.0
    %1231 = vmatprep.subr.mxu0 0.0
    %1232 = vmatpush1.msra.mxu0 0.0
    %1233 = vmatprep.subr.mxu0 0.0
    %1234 = vmatpush1.msra.mxu0 0.0
    %1235 = vmatprep.subr.mxu0 0.0
    %1236 = vmatpush1.msra.mxu0 0.0
    %1237 = vmatprep.subr.mxu0 0.0
    %1238 = vmatpush1.msra.mxu0 0.0
    %1239 = vmatprep.mubr.f32.mxu0 0.0
    %1240 = vmatmul.mubr.f32.gmra.mrb[0].mxu0 %v1173
    %v1241 = vpop.f32.mrb[0].mxu0
    %v1242 = vadd.f32 0.0, %v1241
    %v1243 = vpop.f32.mrb[0].mxu0
    %1244 = vdwg.mxu0
    %v1246 = vsel %vm346, %v1002, 0
    %1248 = vmatprep.subr.mxu0 0.0
    %1249 = vmatpush1.msra.mxu0 %v338
    %1250 = vmatprep.subr.mxu0 0.0
    %1251 = vmatpush1.msra.mxu0 %v339
    %1252 = vmatprep.subr.mxu0 0.0
    %1253 = vmatpush1.msra.mxu0 0.0
    %1254 = vmatprep.subr.mxu0 0.0
    %1255 = vmatpush1.msra.mxu0 0.0
    %1256 = vmatprep.subr.mxu0 0.0
    %1257 = vmatpush1.msra.mxu0 0.0
    %1258 = vmatprep.subr.mxu0 0.0
    %1259 = vmatpush1.msra.mxu0 0.0
    %1260 = vmatprep.subr.mxu0 0.0
    %1261 = vmatpush1.msra.mxu0 0.0
    %1262 = vmatprep.subr.mxu0 0.0
    %1263 = vmatpush1.msra.mxu0 0.0
    %1264 = vmatprep.subr.mxu0 0.0
    %1265 = vmatpush1.msra.mxu0 0.0
    %1266 = vmatprep.subr.mxu0 0.0
    %1267 = vmatpush1.msra.mxu0 0.0
    %1268 = vmatprep.subr.mxu0 0.0
    %1269 = vmatpush1.msra.mxu0 0.0
    %1270 = vmatprep.subr.mxu0 0.0
    %1271 = vmatpush1.msra.mxu0 0.0
    %1272 = vmatprep.subr.mxu0 0.0
    %1273 = vmatpush1.msra.mxu0 0.0
    %1274 = vmatprep.subr.mxu0 0.0
    %1275 = vmatpush1.msra.mxu0 0.0
    %1276 = vmatprep.subr.mxu0 0.0
    %1277 = vmatpush1.msra.mxu0 0.0
    %1278 = vmatprep.subr.mxu0 0.0
    %1279 = vmatpush1.msra.mxu0 0.0
    %1280 = vmatprep.subr.mxu0 0.0
    %1281 = vmatpush1.msra.mxu0 0.0
    %1282 = vmatprep.subr.mxu0 0.0
    %1283 = vmatpush1.msra.mxu0 0.0
    %1284 = vmatprep.subr.mxu0 0.0
    %1285 = vmatpush1.msra.mxu0 0.0
    %1286 = vmatprep.subr.mxu0 0.0
    %1287 = vmatpush1.msra.mxu0 0.0
    %1288 = vmatprep.subr.mxu0 0.0
    %1289 = vmatpush1.msra.mxu0 0.0
    %1290 = vmatprep.subr.mxu0 0.0
    %1291 = vmatpush1.msra.mxu0 0.0
    %1292 = vmatprep.subr.mxu0 0.0
    %1293 = vmatpush1.msra.mxu0 0.0
    %1294 = vmatprep.subr.mxu0 0.0
    %1295 = vmatpush1.msra.mxu0 0.0
    %1296 = vmatprep.subr.mxu0 0.0
    %1297 = vmatpush1.msra.mxu0 0.0
    %1298 = vmatprep.subr.mxu0 0.0
    %1299 = vmatpush1.msra.mxu0 0.0
    %1300 = vmatprep.subr.mxu0 0.0
    %1301 = vmatpush1.msra.mxu0 0.0
    %1302 = vmatprep.subr.mxu0 0.0
    %1303 = vmatpush1.msra.mxu0 0.0
    %1304 = vmatprep.subr.mxu0 0.0
    %1305 = vmatpush1.msra.mxu0 0.0
    %1306 = vmatprep.subr.mxu0 0.0
    %1307 = vmatpush1.msra.mxu0 0.0
    %1308 = vmatprep.subr.mxu0 0.0
    %1309 = vmatpush1.msra.mxu0 0.0
    %1310 = vmatprep.subr.mxu0 0.0
    %1311 = vmatpush1.msra.mxu0 0.0
    %1312 = vmatprep.mubr.f32.mxu0 0.0
    %1313 = vmatmul.mubr.f32.gmra.mrb[0].mxu0 %v1246
    %v1314 = vpop.f32.mrb[0].mxu0
    %v1315 = vadd.f32 %v1242, %v1314
    %v1316 = vpop.f32.mrb[0].mxu0
    %1317 = vdwg.mxu0
    %v1318 = vadd.f32 %v1315, %v832
    %v1319 = vadd.f32 %v834, %v243
    %v1320 = vadd.f32 %v1318, %v244
    %v1321 = vld [vmem:[%s12] sm:$0x1]
    %v1322 = vld [vmem:[%s13] sm:$0x1]
    %v1323 = vsel %vm201, %v1319, 0.0
    %1324 = vadd.xlane.f32.xlu0 %v1323
    %v1325 = vpop.xlane.xlu0 %1324
    %v1326 = vsel %vm201, %v1320, 0.0
    %1327 = vadd.xlane.f32.xlu0 %v1326
    %v1328 = vpop.xlane.xlu0 %1327
    %v1329 = vmul.f32 %v1325, %v208
    %v1330 = vmul.f32 %v1328, %v208
    %v1331 = vsub.f32 %v1319, %v1329
    %v1332 = vsub.f32 %v1320, %v1330
    %v1333 = vmul.f32 %v1331, %v1331
    %v1334 = vmul.f32 %v1332, %v1332
    %v1335 = vsel %vm201, %v1333, 0.0
    %1336 = vadd.xlane.f32.xlu0 %v1335
    %v1337 = vpop.xlane.xlu0 %1336
    %v1338 = vsel %vm201, %v1334, 0.0
    %1339 = vadd.xlane.f32.xlu0 %v1338
    %v1340 = vpop.xlane.xlu0 %1339
    %v1341 = vmul.f32 %v1337, %v208
    %v1342 = vmul.f32 %v1340, %v208
    %v1343 = vadd.f32 %v1341, 1e-12
    %v1344 = vadd.f32 %v1342, 1e-12
    %v1345 = vrsqrt.pop %v1343
    %v1346 = vrsqrt.pop %v1344
    %v1347 = vmul.f32 %v1331, %v1345
    %v1348 = vmul.f32 %v1332, %v1346
    %v1350 = vlaneseq
    %v1351 = vshrl.u32 %v1350, 7
    %v1352 = vsub.s32 0, %v1351
    %v1353 = vrot.slane %v1321, %v1352
    %v1355 = vmul.f32 %v1347, %v1353
    %v1356 = vmul.f32 %v1348, %v1353
    %v1358 = vlaneseq
    %v1359 = vshrl.u32 %v1358, 7
    %v1360 = vsub.s32 0, %v1359
    %v1361 = vrot.slane %v1322, %v1360
    %v1363 = vadd.f32 %v1355, %v1361
    %v1364 = vadd.f32 %v1356, %v1361
    %v1365 = vld [vmem:[%s14] sm:$0xff]
    %v1366 = vld [vmem:[%s14 + $0x8] sm:$0xff]
    %v1367 = vld [vmem:[%s14 + $0x10] sm:$0xff]
    %v1368 = vld [vmem:[%s14 + $0x18] sm:$0xff]
    %v1369 = vld [vmem:[%s15] sm:$0x1]
    %v1371 = vlaneseq
    %v1372 = vshrl.u32 %v1371, 7
    %v1373 = vsub.s32 0, %v1372
    %v1374 = vrot.slane %v1369, %v1373
    %v1377 = vsel %vm201, %v1363, 0
    %v1380 = vsel %vm201, %v1364, 0
    %1382 = vmatprep.subr.mxu0 0.0
    %1383 = vmatpush1.msra.mxu0 %v1365
    %1384 = vmatprep.subr.mxu0 0.0
    %1385 = vmatpush1.msra.mxu0 %v1366
    %1386 = vmatprep.subr.mxu0 0.0
    %1387 = vmatpush1.msra.mxu0 %v1367
    %1388 = vmatprep.subr.mxu0 0.0
    %1389 = vmatpush1.msra.mxu0 %v1368
    %1390 = vmatprep.subr.mxu0 0.0
    %1391 = vmatpush1.msra.mxu0 0.0
    %1392 = vmatprep.subr.mxu0 0.0
    %1393 = vmatpush1.msra.mxu0 0.0
    %1394 = vmatprep.subr.mxu0 0.0
    %1395 = vmatpush1.msra.mxu0 0.0
    %1396 = vmatprep.subr.mxu0 0.0
    %1397 = vmatpush1.msra.mxu0 0.0
    %1398 = vmatprep.subr.mxu0 0.0
    %1399 = vmatpush1.msra.mxu0 0.0
    %1400 = vmatprep.subr.mxu0 0.0
    %1401 = vmatpush1.msra.mxu0 0.0
    %1402 = vmatprep.subr.mxu0 0.0
    %1403 = vmatpush1.msra.mxu0 0.0
    %1404 = vmatprep.subr.mxu0 0.0
    %1405 = vmatpush1.msra.mxu0 0.0
    %1406 = vmatprep.subr.mxu0 0.0
    %1407 = vmatpush1.msra.mxu0 0.0
    %1408 = vmatprep.subr.mxu0 0.0
    %1409 = vmatpush1.msra.mxu0 0.0
    %1410 = vmatprep.subr.mxu0 0.0
    %1411 = vmatpush1.msra.mxu0 0.0
    %1412 = vmatprep.subr.mxu0 0.0
    %1413 = vmatpush1.msra.mxu0 0.0
    %1414 = vmatprep.subr.mxu0 0.0
    %1415 = vmatpush1.msra.mxu0 0.0
    %1416 = vmatprep.subr.mxu0 0.0
    %1417 = vmatpush1.msra.mxu0 0.0
    %1418 = vmatprep.subr.mxu0 0.0
    %1419 = vmatpush1.msra.mxu0 0.0
    %1420 = vmatprep.subr.mxu0 0.0
    %1421 = vmatpush1.msra.mxu0 0.0
    %1422 = vmatprep.subr.mxu0 0.0
    %1423 = vmatpush1.msra.mxu0 0.0
    %1424 = vmatprep.subr.mxu0 0.0
    %1425 = vmatpush1.msra.mxu0 0.0
    %1426 = vmatprep.subr.mxu0 0.0
    %1427 = vmatpush1.msra.mxu0 0.0
    %1428 = vmatprep.subr.mxu0 0.0
    %1429 = vmatpush1.msra.mxu0 0.0
    %1430 = vmatprep.subr.mxu0 0.0
    %1431 = vmatpush1.msra.mxu0 0.0
    %1432 = vmatprep.subr.mxu0 0.0
    %1433 = vmatpush1.msra.mxu0 0.0
    %1434 = vmatprep.subr.mxu0 0.0
    %1435 = vmatpush1.msra.mxu0 0.0
    %1436 = vmatprep.subr.mxu0 0.0
    %1437 = vmatpush1.msra.mxu0 0.0
    %1438 = vmatprep.subr.mxu0 0.0
    %1439 = vmatpush1.msra.mxu0 0.0
    %1440 = vmatprep.subr.mxu0 0.0
    %1441 = vmatpush1.msra.mxu0 0.0
    %1442 = vmatprep.subr.mxu0 0.0
    %1443 = vmatpush1.msra.mxu0 0.0
    %1444 = vmatprep.subr.mxu0 0.0
    %1445 = vmatpush1.msra.mxu0 0.0
    %1446 = vmatprep.mubr.f32.mxu0 0.0
    %1447 = vmatmul.mubr.f32.gmra.mrb[0].mxu0 %v1377
    %v1448 = vpop.f32.mrb[0].mxu0
    %v1449 = vadd.f32 %v1374, %v1448
    %v1450 = vpop.f32.mrb[0].mxu0
    %1451 = vmatprep.mubr.f32.mxu0 0.0
    %1452 = vmatmul.mubr.f32.gmra.mrb[0].mxu0 %v1380
    %v1453 = vpop.f32.mrb[0].mxu0
    %v1454 = vadd.f32 %v1374, %v1453
    %v1455 = vpop.f32.mrb[0].mxu0
    %1456 = vdwg.mxu0
    %v1457 = vmul.f32 %v1449, 0.5
    %v1458 = vmul.f32 %v1454, 0.5
    %v1459 = vmul.f32 %v1449, 0.044715
    %v1460 = vmul.f32 %v1454, 0.044715
    %v1461 = vmul.f32 %v1459, %v1449
    %v1462 = vmul.f32 %v1460, %v1454
    %v1463 = vmul.f32 %v1461, %v1449
    %v1464 = vmul.f32 %v1462, %v1454
    %v1465 = vadd.f32 %v1449, %v1463
    %v1466 = vadd.f32 %v1454, %v1464
    %v1467 = vmul.f32 %v1465, 0.7978846
    %v1468 = vmul.f32 %v1466, 0.7978846
    %v1469 = vtanh.pop %v1467
    %v1470 = vtanh.pop %v1468
    %v1471 = vadd.f32 %v1469, 1.0
    %v1472 = vadd.f32 %v1470, 1.0
    %v1473 = vmul.f32 %v1457, %v1471
    %v1474 = vmul.f32 %v1458, %v1472
    %v1475 = vld [vmem:[%s16] sm:$0xff]
    %v1476 = vld [vmem:[%s16 + $0x8] sm:$0xff]
    %v1477 = vld [vmem:[%s16 + $0x10] sm:$0xff]
    %v1478 = vld [vmem:[%s16 + $0x18] sm:$0xff]
    %v1479 = vld [vmem:[%s16 + $0x20] sm:$0xff]
    %v1480 = vld [vmem:[%s16 + $0x28] sm:$0xff]
    %v1481 = vld [vmem:[%s16 + $0x30] sm:$0xff]
    %v1482 = vld [vmem:[%s16 + $0x38] sm:$0xff]
    %v1483 = vld [vmem:[%s17] sm:$0x1]
    %v1485 = vlaneseq
    %v1486 = vshrl.u32 %v1485, 7
    %v1487 = vsub.s32 0, %v1486
    %v1488 = vrot.slane %v1483, %v1487
    %vm1490 = vcmask 523264
    %v1492 = vsel %vm1490, %v1473, 0
    %v1495 = vsel %vm1490, %v1474, 0
    %1497 = vmatprep.subr.mxu0 0.0
    %1498 = vmatpush1.msra.mxu0 %v1475
    %1499 = vmatprep.subr.mxu0 0.0
    %1500 = vmatpush1.msra.mxu0 %v1476
    %1501 = vmatprep.subr.mxu0 0.0
    %1502 = vmatpush1.msra.mxu0 %v1477
    %1503 = vmatprep.subr.mxu0 0.0
    %1504 = vmatpush1.msra.mxu0 %v1478
    %1505 = vmatprep.subr.mxu0 0.0
    %1506 = vmatpush1.msra.mxu0 %v1479
    %1507 = vmatprep.subr.mxu0 0.0
    %1508 = vmatpush1.msra.mxu0 %v1480
    %1509 = vmatprep.subr.mxu0 0.0
    %1510 = vmatpush1.msra.mxu0 %v1481
    %1511 = vmatprep.subr.mxu0 0.0
    %1512 = vmatpush1.msra.mxu0 %v1482
    %1513 = vmatprep.subr.mxu0 0.0
    %1514 = vmatpush1.msra.mxu0 0.0
    %1515 = vmatprep.subr.mxu0 0.0
    %1516 = vmatpush1.msra.mxu0 0.0
    %1517 = vmatprep.subr.mxu0 0.0
    %1518 = vmatpush1.msra.mxu0 0.0
    %1519 = vmatprep.subr.mxu0 0.0
    %1520 = vmatpush1.msra.mxu0 0.0
    %1521 = vmatprep.subr.mxu0 0.0
    %1522 = vmatpush1.msra.mxu0 0.0
    %1523 = vmatprep.subr.mxu0 0.0
    %1524 = vmatpush1.msra.mxu0 0.0
    %1525 = vmatprep.subr.mxu0 0.0
    %1526 = vmatpush1.msra.mxu0 0.0
    %1527 = vmatprep.subr.mxu0 0.0
    %1528 = vmatpush1.msra.mxu0 0.0
    %1529 = vmatprep.subr.mxu0 0.0
    %1530 = vmatpush1.msra.mxu0 0.0
    %1531 = vmatprep.subr.mxu0 0.0
    %1532 = vmatpush1.msra.mxu0 0.0
    %1533 = vmatprep.subr.mxu0 0.0
    %1534 = vmatpush1.msra.mxu0 0.0
    %1535 = vmatprep.subr.mxu0 0.0
    %1536 = vmatpush1.msra.mxu0 0.0
    %1537 = vmatprep.subr.mxu0 0.0
    %1538 = vmatpush1.msra.mxu0 0.0
    %1539 = vmatprep.subr.mxu0 0.0
    %1540 = vmatpush1.msra.mxu0 0.0
    %1541 = vmatprep.subr.mxu0 0.0
    %1542 = vmatpush1.msra.mxu0 0.0
    %1543 = vmatprep.subr.mxu0 0.0
    %1544 = vmatpush1.msra.mxu0 0.0
    %1545 = vmatprep.subr.mxu0 0.0
    %1546 = vmatpush1.msra.mxu0 0.0
    %1547 = vmatprep.subr.mxu0 0.0
    %1548 = vmatpush1.msra.mxu0 0.0
    %1549 = vmatprep.subr.mxu0 0.0
    %1550 = vmatpush1.msra.mxu0 0.0
    %1551 = vmatprep.subr.mxu0 0.0
    %1552 = vmatpush1.msra.mxu0 0.0
    %1553 = vmatprep.subr.mxu0 0.0
    %1554 = vmatpush1.msra.mxu0 0.0
    %1555 = vmatprep.subr.mxu0 0.0
    %1556 = vmatpush1.msra.mxu0 0.0
    %1557 = vmatprep.subr.mxu0 0.0
    %1558 = vmatpush1.msra.mxu0 0.0
    %1559 = vmatprep.subr.mxu0 0.0
    %1560 = vmatpush1.msra.mxu0 0.0
    %1561 = vmatprep.mubr.f32.mxu0 0.0
    %1562 = vmatmul.mubr.f32.gmra.mrb[0].mxu0 %v1492
    %v1563 = vpop.f32.mrb[0].mxu0
    %v1564 = vadd.f32 %v1488, %v1563
    %v1565 = vpop.f32.mrb[0].mxu0
    %1566 = vmatprep.mubr.f32.mxu0 0.0
    %1567 = vmatmul.mubr.f32.gmra.mrb[0].mxu0 %v1495
    %v1568 = vpop.f32.mrb[0].mxu0
    %v1569 = vadd.f32 %v1488, %v1568
    %v1570 = vpop.f32.mrb[0].mxu0
    %1571 = vdwg.mxu0
    %v1572 = vadd.f32 %v1564, %v1363
    %v1573 = vadd.f32 %v1569, %v1364
    %v1574 = vld [vmem:[%s18] sm:$0x1]
    %v1575 = vld [vmem:[%s19] sm:$0x1]
    %v1576 = vsel %vm201, %v1572, 0.0
    %1577 = vadd.xlane.f32.xlu0 %v1576
    %v1578 = vpop.xlane.xlu0 %1577
    %v1579 = vsel %vm201, %v1573, 0.0
    %1580 = vadd.xlane.f32.xlu0 %v1579
    %v1581 = vpop.xlane.xlu0 %1580
    %v1582 = vmul.f32 %v1578, %v208
    %v1583 = vmul.f32 %v1581, %v208
    %v1584 = vsub.f32 %v1572, %v1582
    %v1585 = vsub.f32 %v1573, %v1583
    %v1586 = vmul.f32 %v1584, %v1584
    %v1587 = vmul.f32 %v1585, %v1585
    %v1588 = vsel %vm201, %v1586, 0.0
    %1589 = vadd.xlane.f32.xlu0 %v1588
    %v1590 = vpop.xlane.xlu0 %1589
    %v1591 = vsel %vm201, %v1587, 0.0
    %1592 = vadd.xlane.f32.xlu0 %v1591
    %v1593 = vpop.xlane.xlu0 %1592
    %v1594 = vmul.f32 %v1590, %v208
    %v1595 = vmul.f32 %v1593, %v208
    %v1596 = vadd.f32 %v1594, 1e-12
    %v1597 = vadd.f32 %v1595, 1e-12
    %v1598 = vrsqrt.pop %v1596
    %v1599 = vrsqrt.pop %v1597
    %v1600 = vmul.f32 %v1584, %v1598
    %v1601 = vmul.f32 %v1585, %v1599
    %v1603 = vlaneseq
    %v1604 = vshrl.u32 %v1603, 7
    %v1605 = vsub.s32 0, %v1604
    %v1606 = vrot.slane %v1574, %v1605
    %v1608 = vmul.f32 %v1600, %v1606
    %v1609 = vmul.f32 %v1601, %v1606
    %v1611 = vlaneseq
    %v1612 = vshrl.u32 %v1611, 7
    %v1613 = vsub.s32 0, %v1612
    %v1614 = vrot.slane %v1575, %v1613
    %v1616 = vadd.f32 %v1608, %v1614
    %v1617 = vadd.f32 %v1609, %v1614
    %s1618 = scalar_lea.vmem %s8, 32
    %v1619 = vld [vmem:[%s1618] sm:$0xff]
    %v1620 = vld [vmem:[%s1618 + $0x8] sm:$0xff]
    %v1621 = vld [vmem:[%s1618 + $0x10] sm:$0xff]
    %v1622 = vld [vmem:[%s1618 + $0x18] sm:$0xff]
    %s1623 = scalar_lea.vmem %s9, 1
    %v1624 = vld [vmem:[%s1623] sm:$0x1]
    %v1626 = vlaneseq
    %v1627 = vshrl.u32 %v1626, 7
    %v1628 = vsub.s32 0, %v1627
    %v1629 = vrot.slane %v1624, %v1628
    %v1632 = vsel %vm201, %v1616, 0
    %v1635 = vsel %vm201, %v1617, 0
    %1637 = vmatprep.subr.mxu0 0.0
    %1638 = vmatpush1.msra.mxu0 %v1619
    %1639 = vmatprep.subr.mxu0 0.0
    %1640 = vmatpush1.msra.mxu0 %v1620
    %1641 = vmatprep.subr.mxu0 0.0
    %1642 = vmatpush1.msra.mxu0 %v1621
    %1643 = vmatprep.subr.mxu0 0.0
    %1644 = vmatpush1.msra.mxu0 %v1622
    %1645 = vmatprep.subr.mxu0 0.0
    %1646 = vmatpush1.msra.mxu0 0.0
    %1647 = vmatprep.subr.mxu0 0.0
    %1648 = vmatpush1.msra.mxu0 0.0
    %1649 = vmatprep.subr.mxu0 0.0
    %1650 = vmatpush1.msra.mxu0 0.0
    %1651 = vmatprep.subr.mxu0 0.0
    %1652 = vmatpush1.msra.mxu0 0.0
    %1653 = vmatprep.subr.mxu0 0.0
    %1654 = vmatpush1.msra.mxu0 0.0
    %1655 = vmatprep.subr.mxu0 0.0
    %1656 = vmatpush1.msra.mxu0 0.0
    %1657 = vmatprep.subr.mxu0 0.0
    %1658 = vmatpush1.msra.mxu0 0.0
    %1659 = vmatprep.subr.mxu0 0.0
    %1660 = vmatpush1.msra.mxu0 0.0
    %1661 = vmatprep.subr.mxu0 0.0
    %1662 = vmatpush1.msra.mxu0 0.0
    %1663 = vmatprep.subr.mxu0 0.0
    %1664 = vmatpush1.msra.mxu0 0.0
    %1665 = vmatprep.subr.mxu0 0.0
    %1666 = vmatpush1.msra.mxu0 0.0
    %1667 = vmatprep.subr.mxu0 0.0
    %1668 = vmatpush1.msra.mxu0 0.0
    %1669 = vmatprep.subr.mxu0 0.0
    %1670 = vmatpush1.msra.mxu0 0.0
    %1671 = vmatprep.subr.mxu0 0.0
    %1672 = vmatpush1.msra.mxu0 0.0
    %1673 = vmatprep.subr.mxu0 0.0
    %1674 = vmatpush1.msra.mxu0 0.0
    %1675 = vmatprep.subr.mxu0 0.0
    %1676 = vmatpush1.msra.mxu0 0.0
    %1677 = vmatprep.subr.mxu0 0.0
    %1678 = vmatpush1.msra.mxu0 0.0
    %1679 = vmatprep.subr.mxu0 0.0
    %1680 = vmatpush1.msra.mxu0 0.0
    %1681 = vmatprep.subr.mxu0 0.0
    %1682 = vmatpush1.msra.mxu0 0.0
    %1683 = vmatprep.subr.mxu0 0.0
    %1684 = vmatpush1.msra.mxu0 0.0
    %1685 = vmatprep.subr.mxu0 0.0
    %1686 = vmatpush1.msra.mxu0 0.0
    %1687 = vmatprep.subr.mxu0 0.0
    %1688 = vmatpush1.msra.mxu0 0.0
    %1689 = vmatprep.subr.mxu0 0.0
    %1690 = vmatpush1.msra.mxu0 0.0
    %1691 = vmatprep.subr.mxu0 0.0
    %1692 = vmatpush1.msra.mxu0 0.0
    %1693 = vmatprep.subr.mxu0 0.0
    %1694 = vmatpush1.msra.mxu0 0.0
    %1695 = vmatprep.subr.mxu0 0.0
    %1696 = vmatpush1.msra.mxu0 0.0
    %1697 = vmatprep.subr.mxu0 0.0
    %1698 = vmatpush1.msra.mxu0 0.0
    %1699 = vmatprep.subr.mxu0 0.0
    %1700 = vmatpush1.msra.mxu0 0.0
    %1701 = vmatprep.mubr.f32.mxu0 0.0
    %1702 = vmatmul.mubr.f32.gmra.mrb[0].mxu0 %v1632
    %v1703 = vpop.f32.mrb[0].mxu0
    %v1704 = vadd.f32 %v1629, %v1703
    %v1705 = vpop.f32.mrb[0].mxu0
    %1706 = vmatprep.mubr.f32.mxu0 0.0
    %1707 = vmatmul.mubr.f32.gmra.mrb[0].mxu0 %v1635
    %v1708 = vpop.f32.mrb[0].mxu0
    %v1709 = vadd.f32 %v1629, %v1708
    %v1710 = vpop.f32.mrb[0].mxu0
    %1711 = vdwg.mxu0
    %s1712 = scalar_lea.vmem %s10, 32
    %v1713 = vld [vmem:[%s1712] sm:$0xff]
    %v1714 = vld [vmem:[%s1712 + $0x8] sm:$0xff]
    %v1715 = vld [vmem:[%s1712 + $0x10] sm:$0xff]
    %v1716 = vld [vmem:[%s1712 + $0x18] sm:$0xff]
    %s1717 = scalar_lea.vmem %s11, 1
    %v1718 = vld [vmem:[%s1717] sm:$0x1]
    %1720 = vrot.lane.b32.xlu0 %v1704, 96
    %v1721 = vpop.permute.xlu0 %1720
    %v1722 = vsel %vm346, %v1704, 0
    %v1724 = vsel %vm346, %v1721, 0
    %1726 = vmatprep.subr.mxu0 0.0
    %1727 = vmatpush1.xpose.msra.mxu0 %v1724
    %1728 = vmatprep.subr.mxu0 0.0
    %1729 = vmatpush1.xpose.msra.mxu0 0.0
    %1730 = vmatprep.subr.mxu0 0.0
    %1731 = vmatpush1.xpose.msra.mxu0 0.0
    %1732 = vmatprep.subr.mxu0 0.0
    %1733 = vmatpush1.xpose.msra.mxu0 0.0
    %1734 = vmatprep.subr.mxu0 0.0
    %1735 = vmatpush1.xpose.msra.mxu0 0.0
    %1736 = vmatprep.subr.mxu0 0.0
    %1737 = vmatpush1.xpose.msra.mxu0 0.0
    %1738 = vmatprep.subr.mxu0 0.0
    %1739 = vmatpush1.xpose.msra.mxu0 0.0
    %1740 = vmatprep.subr.mxu0 0.0
    %1741 = vmatpush1.xpose.msra.mxu0 0.0
    %1742 = vmatprep.subr.mxu0 0.0
    %1743 = vmatpush1.xpose.msra.mxu0 0.0
    %1744 = vmatprep.subr.mxu0 0.0
    %1745 = vmatpush1.xpose.msra.mxu0 0.0
    %1746 = vmatprep.subr.mxu0 0.0
    %1747 = vmatpush1.xpose.msra.mxu0 0.0
    %1748 = vmatprep.subr.mxu0 0.0
    %1749 = vmatpush1.xpose.msra.mxu0 0.0
    %1750 = vmatprep.subr.mxu0 0.0
    %1751 = vmatpush1.xpose.msra.mxu0 0.0
    %1752 = vmatprep.subr.mxu0 0.0
    %1753 = vmatpush1.xpose.msra.mxu0 0.0
    %1754 = vmatprep.subr.mxu0 0.0
    %1755 = vmatpush1.xpose.msra.mxu0 0.0
    %1756 = vmatprep.subr.mxu0 0.0
    %1757 = vmatpush1.xpose.msra.mxu0 0.0
    %1758 = vmatprep.subr.mxu0 0.0
    %1759 = vmatpush1.xpose.msra.mxu0 0.0
    %1760 = vmatprep.subr.mxu0 0.0
    %1761 = vmatpush1.xpose.msra.mxu0 0.0
    %1762 = vmatprep.subr.mxu0 0.0
    %1763 = vmatpush1.xpose.msra.mxu0 0.0
    %1764 = vmatprep.subr.mxu0 0.0
    %1765 = vmatpush1.xpose.msra.mxu0 0.0
    %1766 = vmatprep.subr.mxu0 0.0
    %1767 = vmatpush1.xpose.msra.mxu0 0.0
    %1768 = vmatprep.subr.mxu0 0.0
    %1769 = vmatpush1.xpose.msra.mxu0 0.0
    %1770 = vmatprep.subr.mxu0 0.0
    %1771 = vmatpush1.xpose.msra.mxu0 0.0
    %1772 = vmatprep.subr.mxu0 0.0
    %1773 = vmatpush1.xpose.msra.mxu0 0.0
    %1774 = vmatprep.subr.mxu0 0.0
    %1775 = vmatpush1.xpose.msra.mxu0 0.0
    %1776 = vmatprep.subr.mxu0 0.0
    %1777 = vmatpush1.xpose.msra.mxu0 0.0
    %1778 = vmatprep.subr.mxu0 0.0
    %1779 = vmatpush1.xpose.msra.mxu0 0.0
    %1780 = vmatprep.subr.mxu0 0.0
    %1781 = vmatpush1.xpose.msra.mxu0 0.0
    %1782 = vmatprep.subr.mxu0 0.0
    %1783 = vmatpush1.xpose.msra.mxu0 0.0
    %1784 = vmatprep.subr.mxu0 0.0
    %1785 = vmatpush1.xpose.msra.mxu0 0.0
    %1786 = vmatprep.subr.mxu0 0.0
    %1787 = vmatpush1.xpose.msra.mxu0 0.0
    %1788 = vmatprep.subr.mxu0 0.0
    %1789 = vmatpush1.xpose.msra.mxu0 0.0
    %1790 = vmatprep.mubr.f32.mxu0 0.0
    %1791 = vmatmul.mubr.f32.gmra.mrb[0].mxu0 %v1722
    %v1792 = vpop.f32.mrb[0].mxu0
    %v1793 = vadd.f32 0.0, %v1792
    %v1794 = vpop.f32.mrb[0].mxu0
    %1795 = vdwg.mxu0
    %v1796 = vmul.f32 %v1793, 0.25
    %v1797 = vadd.f32 %v1796, %v425
    %v1798 = vsel %vm427, %v1797, -inf
    %1799 = vmax.xlane.f32.xlu0 %v1798
    %v1800 = vpop.xlane.xlu0 %1799
    %v1801 = vsub.f32 %v1797, %v1800
    %v1802 = vmul.f32 %v1801, 1.442695
    %v1803 = vpow.pop %v1802
    %v1804 = vsel %vm427, %v1803, 0.0
    %1805 = vadd.xlane.f32.xlu0 %v1804
    %v1806 = vpop.xlane.xlu0 %1805
    %v1807 = vrcp.pop %v1806
    %v1808 = vmul.f32 %v1803, %v1807
    %1809 = vrot.lane.b32.xlu0 %v1704, 64
    %v1810 = vpop.permute.xlu0 %1809
    %v1813 = vsel %vm427, %v1808, 0
    %1815 = vmatprep.subr.mxu0 0.0
    %1816 = vmatpush1.msra.mxu0 %v1810
    %1817 = vmatprep.subr.mxu0 0.0
    %1818 = vmatpush1.msra.mxu0 0.0
    %1819 = vmatprep.subr.mxu0 0.0
    %1820 = vmatpush1.msra.mxu0 0.0
    %1821 = vmatprep.subr.mxu0 0.0
    %1822 = vmatpush1.msra.mxu0 0.0
    %1823 = vmatprep.subr.mxu0 0.0
    %1824 = vmatpush1.msra.mxu0 0.0
    %1825 = vmatprep.subr.mxu0 0.0
    %1826 = vmatpush1.msra.mxu0 0.0
    %1827 = vmatprep.subr.mxu0 0.0
    %1828 = vmatpush1.msra.mxu0 0.0
    %1829 = vmatprep.subr.mxu0 0.0
    %1830 = vmatpush1.msra.mxu0 0.0
    %1831 = vmatprep.subr.mxu0 0.0
    %1832 = vmatpush1.msra.mxu0 0.0
    %1833 = vmatprep.subr.mxu0 0.0
    %1834 = vmatpush1.msra.mxu0 0.0
    %1835 = vmatprep.subr.mxu0 0.0
    %1836 = vmatpush1.msra.mxu0 0.0
    %1837 = vmatprep.subr.mxu0 0.0
    %1838 = vmatpush1.msra.mxu0 0.0
    %1839 = vmatprep.subr.mxu0 0.0
    %1840 = vmatpush1.msra.mxu0 0.0
    %1841 = vmatprep.subr.mxu0 0.0
    %1842 = vmatpush1.msra.mxu0 0.0
    %1843 = vmatprep.subr.mxu0 0.0
    %1844 = vmatpush1.msra.mxu0 0.0
    %1845 = vmatprep.subr.mxu0 0.0
    %1846 = vmatpush1.msra.mxu0 0.0
    %1847 = vmatprep.subr.mxu0 0.0
    %1848 = vmatpush1.msra.mxu0 0.0
    %1849 = vmatprep.subr.mxu0 0.0
    %1850 = vmatpush1.msra.mxu0 0.0
    %1851 = vmatprep.subr.mxu0 0.0
    %1852 = vmatpush1.msra.mxu0 0.0
    %1853 = vmatprep.subr.mxu0 0.0
    %1854 = vmatpush1.msra.mxu0 0.0
    %1855 = vmatprep.subr.mxu0 0.0
    %1856 = vmatpush1.msra.mxu0 0.0
    %1857 = vmatprep.subr.mxu0 0.0
    %1858 = vmatpush1.msra.mxu0 0.0
    %1859 = vmatprep.subr.mxu0 0.0
    %1860 = vmatpush1.msra.mxu0 0.0
    %1861 = vmatprep.subr.mxu0 0.0
    %1862 = vmatpush1.msra.mxu0 0.0
    %1863 = vmatprep.subr.mxu0 0.0
    %1864 = vmatpush1.msra.mxu0 0.0
    %1865 = vmatprep.subr.mxu0 0.0
    %1866 = vmatpush1.msra.mxu0 0.0
    %1867 = vmatprep.subr.mxu0 0.0
    %1868 = vmatpush1.msra.mxu0 0.0
    %1869 = vmatprep.subr.mxu0 0.0
    %1870 = vmatpush1.msra.mxu0 0.0
    %1871 = vmatprep.subr.mxu0 0.0
    %1872 = vmatpush1.msra.mxu0 0.0
    %1873 = vmatprep.subr.mxu0 0.0
    %1874 = vmatpush1.msra.mxu0 0.0
    %1875 = vmatprep.subr.mxu0 0.0
    %1876 = vmatpush1.msra.mxu0 0.0
    %1877 = vmatprep.subr.mxu0 0.0
    %1878 = vmatpush1.msra.mxu0 0.0
    %1879 = vmatprep.mubr.f32.mxu0 0.0
    %1880 = vmatmul.mubr.f32.gmra.mrb[0].mxu0 %v1813
    %v1881 = vpop.f32.mrb[0].mxu0
    %v1882 = vadd.f32 0.0, %v1881
    %v1883 = vpop.f32.mrb[0].mxu0
    %1884 = vdwg.mxu0
    %1885 = vrot.lane.b32.xlu0 %v1704, 112
    %v1886 = vpop.permute.xlu0 %1885
    %1887 = vrot.lane.b32.xlu0 %v1704, 80
    %v1888 = vpop.permute.xlu0 %1887
    %v1889 = vsel %vm346, %v1886, 0
    %v1891 = vsel %vm346, %v1888, 0
    %1893 = vmatprep.subr.mxu0 0.0
    %1894 = vmatpush1.xpose.msra.mxu0 %v1891
    %1895 = vmatprep.subr.mxu0 0.0
    %1896 = vmatpush1.xpose.msra.mxu0 0.0
    %1897 = vmatprep.subr.mxu0 0.0
    %1898 = vmatpush1.xpose.msra.mxu0 0.0
    %1899 = vmatprep.subr.mxu0 0.0
    %1900 = vmatpush1.xpose.msra.mxu0 0.0
    %1901 = vmatprep.subr.mxu0 0.0
    %1902 = vmatpush1.xpose.msra.mxu0 0.0
    %1903 = vmatprep.subr.mxu0 0.0
    %1904 = vmatpush1.xpose.msra.mxu0 0.0
    %1905 = vmatprep.subr.mxu0 0.0
    %1906 = vmatpush1.xpose.msra.mxu0 0.0
    %1907 = vmatprep.subr.mxu0 0.0
    %1908 = vmatpush1.xpose.msra.mxu0 0.0
    %1909 = vmatprep.subr.mxu0 0.0
    %1910 = vmatpush1.xpose.msra.mxu0 0.0
    %1911 = vmatprep.subr.mxu0 0.0
    %1912 = vmatpush1.xpose.msra.mxu0 0.0
    %1913 = vmatprep.subr.mxu0 0.0
    %1914 = vmatpush1.xpose.msra.mxu0 0.0
    %1915 = vmatprep.subr.mxu0 0.0
    %1916 = vmatpush1.xpose.msra.mxu0 0.0
    %1917 = vmatprep.subr.mxu0 0.0
    %1918 = vmatpush1.xpose.msra.mxu0 0.0
    %1919 = vmatprep.subr.mxu0 0.0
    %1920 = vmatpush1.xpose.msra.mxu0 0.0
    %1921 = vmatprep.subr.mxu0 0.0
    %1922 = vmatpush1.xpose.msra.mxu0 0.0
    %1923 = vmatprep.subr.mxu0 0.0
    %1924 = vmatpush1.xpose.msra.mxu0 0.0
    %1925 = vmatprep.subr.mxu0 0.0
    %1926 = vmatpush1.xpose.msra.mxu0 0.0
    %1927 = vmatprep.subr.mxu0 0.0
    %1928 = vmatpush1.xpose.msra.mxu0 0.0
    %1929 = vmatprep.subr.mxu0 0.0
    %1930 = vmatpush1.xpose.msra.mxu0 0.0
    %1931 = vmatprep.subr.mxu0 0.0
    %1932 = vmatpush1.xpose.msra.mxu0 0.0
    %1933 = vmatprep.subr.mxu0 0.0
    %1934 = vmatpush1.xpose.msra.mxu0 0.0
    %1935 = vmatprep.subr.mxu0 0.0
    %1936 = vmatpush1.xpose.msra.mxu0 0.0
    %1937 = vmatprep.subr.mxu0 0.0
    %1938 = vmatpush1.xpose.msra.mxu0 0.0
    %1939 = vmatprep.subr.mxu0 0.0
    %1940 = vmatpush1.xpose.msra.mxu0 0.0
    %1941 = vmatprep.subr.mxu0 0.0
    %1942 = vmatpush1.xpose.msra.mxu0 0.0
    %1943 = vmatprep.subr.mxu0 0.0
    %1944 = vmatpush1.xpose.msra.mxu0 0.0
    %1945 = vmatprep.subr.mxu0 0.0
    %1946 = vmatpush1.xpose.msra.mxu0 0.0
    %1947 = vmatprep.subr.mxu0 0.0
    %1948 = vmatpush1.xpose.msra.mxu0 0.0
    %1949 = vmatprep.subr.mxu0 0.0
    %1950 = vmatpush1.xpose.msra.mxu0 0.0
    %1951 = vmatprep.subr.mxu0 0.0
    %1952 = vmatpush1.xpose.msra.mxu0 0.0
    %1953 = vmatprep.subr.mxu0 0.0
    %1954 = vmatpush1.xpose.msra.mxu0 0.0
    %1955 = vmatprep.subr.mxu0 0.0
    %1956 = vmatpush1.xpose.msra.mxu0 0.0
    %1957 = vmatprep.mubr.f32.mxu0 0.0
    %1958 = vmatmul.mubr.f32.gmra.mrb[0].mxu0 %v1889
    %v1959 = vpop.f32.mrb[0].mxu0
    %v1960 = vadd.f32 0.0, %v1959
    %v1961 = vpop.f32.mrb[0].mxu0
    %1962 = vdwg.mxu0
    %v1963 = vmul.f32 %v1960, 0.25
    %v1964 = vadd.f32 %v1963, %v425
    %v1965 = vsel %vm427, %v1964, -inf
    %1966 = vmax.xlane.f32.xlu0 %v1965
    %v1967 = vpop.xlane.xlu0 %1966
    %v1968 = vsub.f32 %v1964, %v1967
    %v1969 = vmul.f32 %v1968, 1.442695
    %v1970 = vpow.pop %v1969
    %v1971 = vsel %vm427, %v1970, 0.0
    %1972 = vadd.xlane.f32.xlu0 %v1971
    %v1973 = vpop.xlane.xlu0 %1972
    %v1974 = vrcp.pop %v1973
    %v1975 = vmul.f32 %v1970, %v1974
    %1976 = vrot.lane.b32.xlu0 %v1704, 48
    %v1977 = vpop.permute.xlu0 %1976
    %v1980 = vsel %vm427, %v1975, 0
    %1982 = vmatprep.subr.mxu0 0.0
    %1983 = vmatpush1.msra.mxu0 %v1977
    %1984 = vmatprep.subr.mxu0 0.0
    %1985 = vmatpush1.msra.mxu0 0.0
    %1986 = vmatprep.subr.mxu0 0.0
    %1987 = vmatpush1.msra.mxu0 0.0
    %1988 = vmatprep.subr.mxu0 0.0
    %1989 = vmatpush1.msra.mxu0 0.0
    %1990 = vmatprep.subr.mxu0 0.0
    %1991 = vmatpush1.msra.mxu0 0.0
    %1992 = vmatprep.subr.mxu0 0.0
    %1993 = vmatpush1.msra.mxu0 0.0
    %1994 = vmatprep.subr.mxu0 0.0
    %1995 = vmatpush1.msra.mxu0 0.0
    %1996 = vmatprep.subr.mxu0 0.0
    %1997 = vmatpush1.msra.mxu0 0.0
    %1998 = vmatprep.subr.mxu0 0.0
    %1999 = vmatpush1.msra.mxu0 0.0
    %2000 = vmatprep.subr.mxu0 0.0
    %2001 = vmatpush1.msra.mxu0 0.0
    %2002 = vmatprep.subr.mxu0 0.0
    %2003 = vmatpush1.msra.mxu0 0.0
    %2004 = vmatprep.subr.mxu0 0.0
    %2005 = vmatpush1.msra.mxu0 0.0
    %2006 = vmatprep.subr.mxu0 0.0
    %2007 = vmatpush1.msra.mxu0 0.0
    %2008 = vmatprep.subr.mxu0 0.0
    %2009 = vmatpush1.msra.mxu0 0.0
    %2010 = vmatprep.subr.mxu0 0.0
    %2011 = vmatpush1.msra.mxu0 0.0
    %2012 = vmatprep.subr.mxu0 0.0
    %2013 = vmatpush1.msra.mxu0 0.0
    %2014 = vmatprep.subr.mxu0 0.0
    %2015 = vmatpush1.msra.mxu0 0.0
    %2016 = vmatprep.subr.mxu0 0.0
    %2017 = vmatpush1.msra.mxu0 0.0
    %2018 = vmatprep.subr.mxu0 0.0
    %2019 = vmatpush1.msra.mxu0 0.0
    %2020 = vmatprep.subr.mxu0 0.0
    %2021 = vmatpush1.msra.mxu0 0.0
    %2022 = vmatprep.subr.mxu0 0.0
    %2023 = vmatpush1.msra.mxu0 0.0
    %2024 = vmatprep.subr.mxu0 0.0
    %2025 = vmatpush1.msra.mxu0 0.0
    %2026 = vmatprep.subr.mxu0 0.0
    %2027 = vmatpush1.msra.mxu0 0.0
    %2028 = vmatprep.subr.mxu0 0.0
    %2029 = vmatpush1.msra.mxu0 0.0
    %2030 = vmatprep.subr.mxu0 0.0
    %2031 = vmatpush1.msra.mxu0 0.0
    %2032 = vmatprep.subr.mxu0 0.0
    %2033 = vmatpush1.msra.mxu0 0.0
    %2034 = vmatprep.subr.mxu0 0.0
    %2035 = vmatpush1.msra.mxu0 0.0
    %2036 = vmatprep.subr.mxu0 0.0
    %2037 = vmatpush1.msra.mxu0 0.0
    %2038 = vmatprep.subr.mxu0 0.0
    %2039 = vmatpush1.msra.mxu0 0.0
    %2040 = vmatprep.subr.mxu0 0.0
    %2041 = vmatpush1.msra.mxu0 0.0
    %2042 = vmatprep.subr.mxu0 0.0
    %2043 = vmatpush1.msra.mxu0 0.0
    %2044 = vmatprep.subr.mxu0 0.0
    %2045 = vmatpush1.msra.mxu0 0.0
    %2046 = vmatprep.mubr.f32.mxu0 0.0
    %2047 = vmatmul.mubr.f32.gmra.mrb[0].mxu0 %v1980
    %v2048 = vpop.f32.mrb[0].mxu0
    %v2049 = vadd.f32 0.0, %v2048
    %v2050 = vpop.f32.mrb[0].mxu0
    %2051 = vdwg.mxu0
    %v2053 = vsel %vm346, %v2049, 0
    %2055 = vmatprep.subr.mxu0 0.0
    %2056 = vmatpush1.msra.mxu0 %v1715
    %2057 = vmatprep.subr.mxu0 0.0
    %2058 = vmatpush1.msra.mxu0 %v1716
    %2059 = vmatprep.subr.mxu0 0.0
    %2060 = vmatpush1.msra.mxu0 0.0
    %2061 = vmatprep.subr.mxu0 0.0
    %2062 = vmatpush1.msra.mxu0 0.0
    %2063 = vmatprep.subr.mxu0 0.0
    %2064 = vmatpush1.msra.mxu0 0.0
    %2065 = vmatprep.subr.mxu0 0.0
    %2066 = vmatpush1.msra.mxu0 0.0
    %2067 = vmatprep.subr.mxu0 0.0
    %2068 = vmatpush1.msra.mxu0 0.0
    %2069 = vmatprep.subr.mxu0 0.0
    %2070 = vmatpush1.msra.mxu0 0.0
    %2071 = vmatprep.subr.mxu0 0.0
    %2072 = vmatpush1.msra.mxu0 0.0
    %2073 = vmatprep.subr.mxu0 0.0
    %2074 = vmatpush1.msra.mxu0 0.0
    %2075 = vmatprep.subr.mxu0 0.0
    %2076 = vmatpush1.msra.mxu0 0.0
    %2077 = vmatprep.subr.mxu0 0.0
    %2078 = vmatpush1.msra.mxu0 0.0
    %2079 = vmatprep.subr.mxu0 0.0
    %2080 = vmatpush1.msra.mxu0 0.0
    %2081 = vmatprep.subr.mxu0 0.0
    %2082 = vmatpush1.msra.mxu0 0.0
    %2083 = vmatprep.subr.mxu0 0.0
    %2084 = vmatpush1.msra.mxu0 0.0
    %2085 = vmatprep.subr.mxu0 0.0
    %2086 = vmatpush1.msra.mxu0 0.0
    %2087 = vmatprep.subr.mxu0 0.0
    %2088 = vmatpush1.msra.mxu0 0.0
    %2089 = vmatprep.subr.mxu0 0.0
    %2090 = vmatpush1.msra.mxu0 0.0
    %2091 = vmatprep.subr.mxu0 0.0
    %2092 = vmatpush1.msra.mxu0 0.0
    %2093 = vmatprep.subr.mxu0 0.0
    %2094 = vmatpush1.msra.mxu0 0.0
    %2095 = vmatprep.subr.mxu0 0.0
    %2096 = vmatpush1.msra.mxu0 0.0
    %2097 = vmatprep.subr.mxu0 0.0
    %2098 = vmatpush1.msra.mxu0 0.0
    %2099 = vmatprep.subr.mxu0 0.0
    %2100 = vmatpush1.msra.mxu0 0.0
    %2101 = vmatprep.subr.mxu0 0.0
    %2102 = vmatpush1.msra.mxu0 0.0
    %2103 = vmatprep.subr.mxu0 0.0
    %2104 = vmatpush1.msra.mxu0 0.0
    %2105 = vmatprep.subr.mxu0 0.0
    %2106 = vmatpush1.msra.mxu0 0.0
    %2107 = vmatprep.subr.mxu0 0.0
    %2108 = vmatpush1.msra.mxu0 0.0
    %2109 = vmatprep.subr.mxu0 0.0
    %2110 = vmatpush1.msra.mxu0 0.0
    %2111 = vmatprep.subr.mxu0 0.0
    %2112 = vmatpush1.msra.mxu0 0.0
    %2113 = vmatprep.subr.mxu0 0.0
    %2114 = vmatpush1.msra.mxu0 0.0
    %2115 = vmatprep.subr.mxu0 0.0
    %2116 = vmatpush1.msra.mxu0 0.0
    %2117 = vmatprep.subr.mxu0 0.0
    %2118 = vmatpush1.msra.mxu0 0.0
    %2119 = vmatprep.mubr.f32.mxu0 0.0
    %2120 = vmatmul.mubr.f32.gmra.mrb[0].mxu0 %v2053
    %v2121 = vpop.f32.mrb[0].mxu0
    %v2122 = vadd.f32 0.0, %v2121
    %v2123 = vpop.f32.mrb[0].mxu0
    %2124 = vdwg.mxu0
    %v2126 = vsel %vm346, %v1882, 0
    %2128 = vmatprep.subr.mxu0 0.0
    %2129 = vmatpush1.msra.mxu0 %v1713
    %2130 = vmatprep.subr.mxu0 0.0
    %2131 = vmatpush1.msra.mxu0 %v1714
    %2132 = vmatprep.subr.mxu0 0.0
    %2133 = vmatpush1.msra.mxu0 0.0
    %2134 = vmatprep.subr.mxu0 0.0
    %2135 = vmatpush1.msra.mxu0 0.0
    %2136 = vmatprep.subr.mxu0 0.0
    %2137 = vmatpush1.msra.mxu0 0.0
    %2138 = vmatprep.subr.mxu0 0.0
    %2139 = vmatpush1.msra.mxu0 0.0
    %2140 = vmatprep.subr.mxu0 0.0
    %2141 = vmatpush1.msra.mxu0 0.0
    %2142 = vmatprep.subr.mxu0 0.0
    %2143 = vmatpush1.msra.mxu0 0.0
    %2144 = vmatprep.subr.mxu0 0.0
    %2145 = vmatpush1.msra.mxu0 0.0
    %2146 = vmatprep.subr.mxu0 0.0
    %2147 = vmatpush1.msra.mxu0 0.0
    %2148 = vmatprep.subr.mxu0 0.0
    %2149 = vmatpush1.msra.mxu0 0.0
    %2150 = vmatprep.subr.mxu0 0.0
    %2151 = vmatpush1.msra.mxu0 0.0
    %2152 = vmatprep.subr.mxu0 0.0
    %2153 = vmatpush1.msra.mxu0 0.0
    %2154 = vmatprep.subr.mxu0 0.0
    %2155 = vmatpush1.msra.mxu0 0.0
    %2156 = vmatprep.subr.mxu0 0.0
    %2157 = vmatpush1.msra.mxu0 0.0
    %2158 = vmatprep.subr.mxu0 0.0
    %2159 = vmatpush1.msra.mxu0 0.0
    %2160 = vmatprep.subr.mxu0 0.0
    %2161 = vmatpush1.msra.mxu0 0.0
    %2162 = vmatprep.subr.mxu0 0.0
    %2163 = vmatpush1.msra.mxu0 0.0
    %2164 = vmatprep.subr.mxu0 0.0
    %2165 = vmatpush1.msra.mxu0 0.0
    %2166 = vmatprep.subr.mxu0 0.0
    %2167 = vmatpush1.msra.mxu0 0.0
    %2168 = vmatprep.subr.mxu0 0.0
    %2169 = vmatpush1.msra.mxu0 0.0
    %2170 = vmatprep.subr.mxu0 0.0
    %2171 = vmatpush1.msra.mxu0 0.0
    %2172 = vmatprep.subr.mxu0 0.0
    %2173 = vmatpush1.msra.mxu0 0.0
    %2174 = vmatprep.subr.mxu0 0.0
    %2175 = vmatpush1.msra.mxu0 0.0
    %2176 = vmatprep.subr.mxu0 0.0
    %2177 = vmatpush1.msra.mxu0 0.0
    %2178 = vmatprep.subr.mxu0 0.0
    %2179 = vmatpush1.msra.mxu0 0.0
    %2180 = vmatprep.subr.mxu0 0.0
    %2181 = vmatpush1.msra.mxu0 0.0
    %2182 = vmatprep.subr.mxu0 0.0
    %2183 = vmatpush1.msra.mxu0 0.0
    %2184 = vmatprep.subr.mxu0 0.0
    %2185 = vmatpush1.msra.mxu0 0.0
    %2186 = vmatprep.subr.mxu0 0.0
    %2187 = vmatpush1.msra.mxu0 0.0
    %2188 = vmatprep.subr.mxu0 0.0
    %2189 = vmatpush1.msra.mxu0 0.0
    %2190 = vmatprep.subr.mxu0 0.0
    %2191 = vmatpush1.msra.mxu0 0.0
    %2192 = vmatprep.mubr.f32.mxu0 0.0
    %2193 = vmatmul.mubr.f32.gmra.mrb[0].mxu0 %v2126
    %v2194 = vpop.f32.mrb[0].mxu0
    %v2195 = vadd.f32 %v2122, %v2194
    %v2196 = vpop.f32.mrb[0].mxu0
    %2197 = vdwg.mxu0
    %v2199 = vlaneseq
    %v2200 = vshrl.u32 %v2199, 7
    %v2201 = vsub.s32 0, %v2200
    %v2202 = vrot.slane %v1718, %v2201
    %v2204 = vadd.f32 %v2195, %v2202
    %2206 = vrot.lane.b32.xlu0 %v1709, 96
    %v2207 = vpop.permute.xlu0 %2206
    %v2208 = vsel %vm346, %v1709, 0
    %v2210 = vsel %vm346, %v2207, 0
    %2212 = vmatprep.subr.mxu0 0.0
    %2213 = vmatpush1.xpose.msra.mxu0 %v2210
    %2214 = vmatprep.subr.mxu0 0.0
    %2215 = vmatpush1.xpose.msra.mxu0 0.0
    %2216 = vmatprep.subr.mxu0 0.0
    %2217 = vmatpush1.xpose.msra.mxu0 0.0
    %2218 = vmatprep.subr.mxu0 0.0
    %2219 = vmatpush1.xpose.msra.mxu0 0.0
    %2220 = vmatprep.subr.mxu0 0.0
    %2221 = vmatpush1.xpose.msra.mxu0 0.0
    %2222 = vmatprep.subr.mxu0 0.0
    %2223 = vmatpush1.xpose.msra.mxu0 0.0
    %2224 = vmatprep.subr.mxu0 0.0
    %2225 = vmatpush1.xpose.msra.mxu0 0.0
    %2226 = vmatprep.subr.mxu0 0.0
    %2227 = vmatpush1.xpose.msra.mxu0 0.0
    %2228 = vmatprep.subr.mxu0 0.0
    %2229 = vmatpush1.xpose.msra.mxu0 0.0
    %2230 = vmatprep.subr.mxu0 0.0
    %2231 = vmatpush1.xpose.msra.mxu0 0.0
    %2232 = vmatprep.subr.mxu0 0.0
    %2233 = vmatpush1.xpose.msra.mxu0 0.0
    %2234 = vmatprep.subr.mxu0 0.0
    %2235 = vmatpush1.xpose.msra.mxu0 0.0
    %2236 = vmatprep.subr.mxu0 0.0
    %2237 = vmatpush1.xpose.msra.mxu0 0.0
    %2238 = vmatprep.subr.mxu0 0.0
    %2239 = vmatpush1.xpose.msra.mxu0 0.0
    %2240 = vmatprep.subr.mxu0 0.0
    %2241 = vmatpush1.xpose.msra.mxu0 0.0
    %2242 = vmatprep.subr.mxu0 0.0
    %2243 = vmatpush1.xpose.msra.mxu0 0.0
    %2244 = vmatprep.subr.mxu0 0.0
    %2245 = vmatpush1.xpose.msra.mxu0 0.0
    %2246 = vmatprep.subr.mxu0 0.0
    %2247 = vmatpush1.xpose.msra.mxu0 0.0
    %2248 = vmatprep.subr.mxu0 0.0
    %2249 = vmatpush1.xpose.msra.mxu0 0.0
    %2250 = vmatprep.subr.mxu0 0.0
    %2251 = vmatpush1.xpose.msra.mxu0 0.0
    %2252 = vmatprep.subr.mxu0 0.0
    %2253 = vmatpush1.xpose.msra.mxu0 0.0
    %2254 = vmatprep.subr.mxu0 0.0
    %2255 = vmatpush1.xpose.msra.mxu0 0.0
    %2256 = vmatprep.subr.mxu0 0.0
    %2257 = vmatpush1.xpose.msra.mxu0 0.0
    %2258 = vmatprep.subr.mxu0 0.0
    %2259 = vmatpush1.xpose.msra.mxu0 0.0
    %2260 = vmatprep.subr.mxu0 0.0
    %2261 = vmatpush1.xpose.msra.mxu0 0.0
    %2262 = vmatprep.subr.mxu0 0.0
    %2263 = vmatpush1.xpose.msra.mxu0 0.0
    %2264 = vmatprep.subr.mxu0 0.0
    %2265 = vmatpush1.xpose.msra.mxu0 0.0
    %2266 = vmatprep.subr.mxu0 0.0
    %2267 = vmatpush1.xpose.msra.mxu0 0.0
    %2268 = vmatprep.subr.mxu0 0.0
    %2269 = vmatpush1.xpose.msra.mxu0 0.0
    %2270 = vmatprep.subr.mxu0 0.0
    %2271 = vmatpush1.xpose.msra.mxu0 0.0
    %2272 = vmatprep.subr.mxu0 0.0
    %2273 = vmatpush1.xpose.msra.mxu0 0.0
    %2274 = vmatprep.subr.mxu0 0.0
    %2275 = vmatpush1.xpose.msra.mxu0 0.0
    %2276 = vmatprep.mubr.f32.mxu0 0.0
    %2277 = vmatmul.mubr.f32.gmra.mrb[0].mxu0 %v2208
    %v2278 = vpop.f32.mrb[0].mxu0
    %v2279 = vadd.f32 0.0, %v2278
    %v2280 = vpop.f32.mrb[0].mxu0
    %2281 = vdwg.mxu0
    %v2282 = vmul.f32 %v2279, 0.25
    %v2283 = vadd.f32 %v2282, %v916
    %v2284 = vsel %vm427, %v2283, -inf
    %2285 = vmax.xlane.f32.xlu0 %v2284
    %v2286 = vpop.xlane.xlu0 %2285
    %v2287 = vsub.f32 %v2283, %v2286
    %v2288 = vmul.f32 %v2287, 1.442695
    %v2289 = vpow.pop %v2288
    %v2290 = vsel %vm427, %v2289, 0.0
    %2291 = vadd.xlane.f32.xlu0 %v2290
    %v2292 = vpop.xlane.xlu0 %2291
    %v2293 = vrcp.pop %v2292
    %v2294 = vmul.f32 %v2289, %v2293
    %2295 = vrot.lane.b32.xlu0 %v1709, 64
    %v2296 = vpop.permute.xlu0 %2295
    %v2299 = vsel %vm427, %v2294, 0
    %2301 = vmatprep.subr.mxu0 0.0
    %2302 = vmatpush1.msra.mxu0 %v2296
    %2303 = vmatprep.subr.mxu0 0.0
    %2304 = vmatpush1.msra.mxu0 0.0
    %2305 = vmatprep.subr.mxu0 0.0
    %2306 = vmatpush1.msra.mxu0 0.0
    %2307 = vmatprep.subr.mxu0 0.0
    %2308 = vmatpush1.msra.mxu0 0.0
    %2309 = vmatprep.subr.mxu0 0.0
    %2310 = vmatpush1.msra.mxu0 0.0
    %2311 = vmatprep.subr.mxu0 0.0
    %2312 = vmatpush1.msra.mxu0 0.0
    %2313 = vmatprep.subr.mxu0 0.0
    %2314 = vmatpush1.msra.mxu0 0.0
    %2315 = vmatprep.subr.mxu0 0.0
    %2316 = vmatpush1.msra.mxu0 0.0
    %2317 = vmatprep.subr.mxu0 0.0
    %2318 = vmatpush1.msra.mxu0 0.0
    %2319 = vmatprep.subr.mxu0 0.0
    %2320 = vmatpush1.msra.mxu0 0.0
    %2321 = vmatprep.subr.mxu0 0.0
    %2322 = vmatpush1.msra.mxu0 0.0
    %2323 = vmatprep.subr.mxu0 0.0
    %2324 = vmatpush1.msra.mxu0 0.0
    %2325 = vmatprep.subr.mxu0 0.0
    %2326 = vmatpush1.msra.mxu0 0.0
    %2327 = vmatprep.subr.mxu0 0.0
    %2328 = vmatpush1.msra.mxu0 0.0
    %2329 = vmatprep.subr.mxu0 0.0
    %2330 = vmatpush1.msra.mxu0 0.0
    %2331 = vmatprep.subr.mxu0 0.0
    %2332 = vmatpush1.msra.mxu0 0.0
    %2333 = vmatprep.subr.mxu0 0.0
    %2334 = vmatpush1.msra.mxu0 0.0
    %2335 = vmatprep.subr.mxu0 0.0
    %2336 = vmatpush1.msra.mxu0 0.0
    %2337 = vmatprep.subr.mxu0 0.0
    %2338 = vmatpush1.msra.mxu0 0.0
    %2339 = vmatprep.subr.mxu0 0.0
    %2340 = vmatpush1.msra.mxu0 0.0
    %2341 = vmatprep.subr.mxu0 0.0
    %2342 = vmatpush1.msra.mxu0 0.0
    %2343 = vmatprep.subr.mxu0 0.0
    %2344 = vmatpush1.msra.mxu0 0.0
    %2345 = vmatprep.subr.mxu0 0.0
    %2346 = vmatpush1.msra.mxu0 0.0
    %2347 = vmatprep.subr.mxu0 0.0
    %2348 = vmatpush1.msra.mxu0 0.0
    %2349 = vmatprep.subr.mxu0 0.0
    %2350 = vmatpush1.msra.mxu0 0.0
    %2351 = vmatprep.subr.mxu0 0.0
    %2352 = vmatpush1.msra.mxu0 0.0
    %2353 = vmatprep.subr.mxu0 0.0
    %2354 = vmatpush1.msra.mxu0 0.0
    %2355 = vmatprep.subr.mxu0 0.0
    %2356 = vmatpush1.msra.mxu0 0.0
    %2357 = vmatprep.subr.mxu0 0.0
    %2358 = vmatpush1.msra.mxu0 0.0
    %2359 = vmatprep.subr.mxu0 0.0
    %2360 = vmatpush1.msra.mxu0 0.0
    %2361 = vmatprep.subr.mxu0 0.0
    %2362 = vmatpush1.msra.mxu0 0.0
    %2363 = vmatprep.subr.mxu0 0.0
    %2364 = vmatpush1.msra.mxu0 0.0
    %2365 = vmatprep.mubr.f32.mxu0 0.0
    %2366 = vmatmul.mubr.f32.gmra.mrb[0].mxu0 %v2299
    %v2367 = vpop.f32.mrb[0].mxu0
    %v2368 = vadd.f32 0.0, %v2367
    %v2369 = vpop.f32.mrb[0].mxu0
    %2370 = vdwg.mxu0
    %2371 = vrot.lane.b32.xlu0 %v1709, 112
    %v2372 = vpop.permute.xlu0 %2371
    %2373 = vrot.lane.b32.xlu0 %v1709, 80
    %v2374 = vpop.permute.xlu0 %2373
    %v2375 = vsel %vm346, %v2372, 0
    %v2377 = vsel %vm346, %v2374, 0
    %2379 = vmatprep.subr.mxu0 0.0
    %2380 = vmatpush1.xpose.msra.mxu0 %v2377
    %2381 = vmatprep.subr.mxu0 0.0
    %2382 = vmatpush1.xpose.msra.mxu0 0.0
    %2383 = vmatprep.subr.mxu0 0.0
    %2384 = vmatpush1.xpose.msra.mxu0 0.0
    %2385 = vmatprep.subr.mxu0 0.0
    %2386 = vmatpush1.xpose.msra.mxu0 0.0
    %2387 = vmatprep.subr.mxu0 0.0
    %2388 = vmatpush1.xpose.msra.mxu0 0.0
    %2389 = vmatprep.subr.mxu0 0.0
    %2390 = vmatpush1.xpose.msra.mxu0 0.0
    %2391 = vmatprep.subr.mxu0 0.0
    %2392 = vmatpush1.xpose.msra.mxu0 0.0
    %2393 = vmatprep.subr.mxu0 0.0
    %2394 = vmatpush1.xpose.msra.mxu0 0.0
    %2395 = vmatprep.subr.mxu0 0.0
    %2396 = vmatpush1.xpose.msra.mxu0 0.0
    %2397 = vmatprep.subr.mxu0 0.0
    %2398 = vmatpush1.xpose.msra.mxu0 0.0
    %2399 = vmatprep.subr.mxu0 0.0
    %2400 = vmatpush1.xpose.msra.mxu0 0.0
    %2401 = vmatprep.subr.mxu0 0.0
    %2402 = vmatpush1.xpose.msra.mxu0 0.0
    %2403 = vmatprep.subr.mxu0 0.0
    %2404 = vmatpush1.xpose.msra.mxu0 0.0
    %2405 = vmatprep.subr.mxu0 0.0
    %2406 = vmatpush1.xpose.msra.mxu0 0.0
    %2407 = vmatprep.subr.mxu0 0.0
    %2408 = vmatpush1.xpose.msra.mxu0 0.0
    %2409 = vmatprep.subr.mxu0 0.0
    %2410 = vmatpush1.xpose.msra.mxu0 0.0
    %2411 = vmatprep.subr.mxu0 0.0
    %2412 = vmatpush1.xpose.msra.mxu0 0.0
    %2413 = vmatprep.subr.mxu0 0.0
    %2414 = vmatpush1.xpose.msra.mxu0 0.0
    %2415 = vmatprep.subr.mxu0 0.0
    %2416 = vmatpush1.xpose.msra.mxu0 0.0
    %2417 = vmatprep.subr.mxu0 0.0
    %2418 = vmatpush1.xpose.msra.mxu0 0.0
    %2419 = vmatprep.subr.mxu0 0.0
    %2420 = vmatpush1.xpose.msra.mxu0 0.0
    %2421 = vmatprep.subr.mxu0 0.0
    %2422 = vmatpush1.xpose.msra.mxu0 0.0
    %2423 = vmatprep.subr.mxu0 0.0
    %2424 = vmatpush1.xpose.msra.mxu0 0.0
    %2425 = vmatprep.subr.mxu0 0.0
    %2426 = vmatpush1.xpose.msra.mxu0 0.0
    %2427 = vmatprep.subr.mxu0 0.0
    %2428 = vmatpush1.xpose.msra.mxu0 0.0
    %2429 = vmatprep.subr.mxu0 0.0
    %2430 = vmatpush1.xpose.msra.mxu0 0.0
    %2431 = vmatprep.subr.mxu0 0.0
    %2432 = vmatpush1.xpose.msra.mxu0 0.0
    %2433 = vmatprep.subr.mxu0 0.0
    %2434 = vmatpush1.xpose.msra.mxu0 0.0
    %2435 = vmatprep.subr.mxu0 0.0
    %2436 = vmatpush1.xpose.msra.mxu0 0.0
    %2437 = vmatprep.subr.mxu0 0.0
    %2438 = vmatpush1.xpose.msra.mxu0 0.0
    %2439 = vmatprep.subr.mxu0 0.0
    %2440 = vmatpush1.xpose.msra.mxu0 0.0
    %2441 = vmatprep.subr.mxu0 0.0
    %2442 = vmatpush1.xpose.msra.mxu0 0.0
    %2443 = vmatprep.mubr.f32.mxu0 0.0
    %2444 = vmatmul.mubr.f32.gmra.mrb[0].mxu0 %v2375
    %v2445 = vpop.f32.mrb[0].mxu0
    %v2446 = vadd.f32 0.0, %v2445
    %v2447 = vpop.f32.mrb[0].mxu0
    %2448 = vdwg.mxu0
    %v2449 = vmul.f32 %v2446, 0.25
    %v2450 = vadd.f32 %v2449, %v916
    %v2451 = vsel %vm427, %v2450, -inf
    %2452 = vmax.xlane.f32.xlu0 %v2451
    %v2453 = vpop.xlane.xlu0 %2452
    %v2454 = vsub.f32 %v2450, %v2453
    %v2455 = vmul.f32 %v2454, 1.442695
    %v2456 = vpow.pop %v2455
    %v2457 = vsel %vm427, %v2456, 0.0
    %2458 = vadd.xlane.f32.xlu0 %v2457
    %v2459 = vpop.xlane.xlu0 %2458
    %v2460 = vrcp.pop %v2459
    %v2461 = vmul.f32 %v2456, %v2460
    %2462 = vrot.lane.b32.xlu0 %v1709, 48
    %v2463 = vpop.permute.xlu0 %2462
    %v2466 = vsel %vm427, %v2461, 0
    %2468 = vmatprep.subr.mxu0 0.0
    %2469 = vmatpush1.msra.mxu0 %v2463
    %2470 = vmatprep.subr.mxu0 0.0
    %2471 = vmatpush1.msra.mxu0 0.0
    %2472 = vmatprep.subr.mxu0 0.0
    %2473 = vmatpush1.msra.mxu0 0.0
    %2474 = vmatprep.subr.mxu0 0.0
    %2475 = vmatpush1.msra.mxu0 0.0
    %2476 = vmatprep.subr.mxu0 0.0
    %2477 = vmatpush1.msra.mxu0 0.0
    %2478 = vmatprep.subr.mxu0 0.0
    %2479 = vmatpush1.msra.mxu0 0.0
    %2480 = vmatprep.subr.mxu0 0.0
    %2481 = vmatpush1.msra.mxu0 0.0
    %2482 = vmatprep.subr.mxu0 0.0
    %2483 = vmatpush1.msra.mxu0 0.0
    %2484 = vmatprep.subr.mxu0 0.0
    %2485 = vmatpush1.msra.mxu0 0.0
    %2486 = vmatprep.subr.mxu0 0.0
    %2487 = vmatpush1.msra.mxu0 0.0
    %2488 = vmatprep.subr.mxu0 0.0
    %2489 = vmatpush1.msra.mxu0 0.0
    %2490 = vmatprep.subr.mxu0 0.0
    %2491 = vmatpush1.msra.mxu0 0.0
    %2492 = vmatprep.subr.mxu0 0.0
    %2493 = vmatpush1.msra.mxu0 0.0
    %2494 = vmatprep.subr.mxu0 0.0
    %2495 = vmatpush1.msra.mxu0 0.0
    %2496 = vmatprep.subr.mxu0 0.0
    %2497 = vmatpush1.msra.mxu0 0.0
    %2498 = vmatprep.subr.mxu0 0.0
    %2499 = vmatpush1.msra.mxu0 0.0
    %2500 = vmatprep.subr.mxu0 0.0
    %2501 = vmatpush1.msra.mxu0 0.0
    %2502 = vmatprep.subr.mxu0 0.0
    %2503 = vmatpush1.msra.mxu0 0.0
    %2504 = vmatprep.subr.mxu0 0.0
    %2505 = vmatpush1.msra.mxu0 0.0
    %2506 = vmatprep.subr.mxu0 0.0
    %2507 = vmatpush1.msra.mxu0 0.0
    %2508 = vmatprep.subr.mxu0 0.0
    %2509 = vmatpush1.msra.mxu0 0.0
    %2510 = vmatprep.subr.mxu0 0.0
    %2511 = vmatpush1.msra.mxu0 0.0
    %2512 = vmatprep.subr.mxu0 0.0
    %2513 = vmatpush1.msra.mxu0 0.0
    %2514 = vmatprep.subr.mxu0 0.0
    %2515 = vmatpush1.msra.mxu0 0.0
    %2516 = vmatprep.subr.mxu0 0.0
    %2517 = vmatpush1.msra.mxu0 0.0
    %2518 = vmatprep.subr.mxu0 0.0
    %2519 = vmatpush1.msra.mxu0 0.0
    %2520 = vmatprep.subr.mxu0 0.0
    %2521 = vmatpush1.msra.mxu0 0.0
    %2522 = vmatprep.subr.mxu0 0.0
    %2523 = vmatpush1.msra.mxu0 0.0
    %2524 = vmatprep.subr.mxu0 0.0
    %2525 = vmatpush1.msra.mxu0 0.0
    %2526 = vmatprep.subr.mxu0 0.0
    %2527 = vmatpush1.msra.mxu0 0.0
    %2528 = vmatprep.subr.mxu0 0.0
    %2529 = vmatpush1.msra.mxu0 0.0
    %2530 = vmatprep.subr.mxu0 0.0
    %2531 = vmatpush1.msra.mxu0 0.0
    %2532 = vmatprep.mubr.f32.mxu0 0.0
    %2533 = vmatmul.mubr.f32.gmra.mrb[0].mxu0 %v2466
    %v2534 = vpop.f32.mrb[0].mxu0
    %v2535 = vadd.f32 0.0, %v2534
    %v2536 = vpop.f32.mrb[0].mxu0
    %2537 = vdwg.mxu0
    %v2539 = vsel %vm346, %v2535, 0
    %2541 = vmatprep.subr.mxu0 0.0
    %2542 = vmatpush1.msra.mxu0 %v1715
    %2543 = vmatprep.subr.mxu0 0.0
    %2544 = vmatpush1.msra.mxu0 %v1716
    %2545 = vmatprep.subr.mxu0 0.0
    %2546 = vmatpush1.msra.mxu0 0.0
    %2547 = vmatprep.subr.mxu0 0.0
    %2548 = vmatpush1.msra.mxu0 0.0
    %2549 = vmatprep.subr.mxu0 0.0
    %2550 = vmatpush1.msra.mxu0 0.0
    %2551 = vmatprep.subr.mxu0 0.0
    %2552 = vmatpush1.msra.mxu0 0.0
    %2553 = vmatprep.subr.mxu0 0.0
    %2554 = vmatpush1.msra.mxu0 0.0
    %2555 = vmatprep.subr.mxu0 0.0
    %2556 = vmatpush1.msra.mxu0 0.0
    %2557 = vmatprep.subr.mxu0 0.0
    %2558 = vmatpush1.msra.mxu0 0.0
    %2559 = vmatprep.subr.mxu0 0.0
    %2560 = vmatpush1.msra.mxu0 0.0
    %2561 = vmatprep.subr.mxu0 0.0
    %2562 = vmatpush1.msra.mxu0 0.0
    %2563 = vmatprep.subr.mxu0 0.0
    %2564 = vmatpush1.msra.mxu0 0.0
    %2565 = vmatprep.subr.mxu0 0.0
    %2566 = vmatpush1.msra.mxu0 0.0
    %2567 = vmatprep.subr.mxu0 0.0
    %2568 = vmatpush1.msra.mxu0 0.0
    %2569 = vmatprep.subr.mxu0 0.0
    %2570 = vmatpush1.msra.mxu0 0.0
    %2571 = vmatprep.subr.mxu0 0.0
    %2572 = vmatpush1.msra.mxu0 0.0
    %2573 = vmatprep.subr.mxu0 0.0
    %2574 = vmatpush1.msra.mxu0 0.0
    %2575 = vmatprep.subr.mxu0 0.0
    %2576 = vmatpush1.msra.mxu0 0.0
    %2577 = vmatprep.subr.mxu0 0.0
    %2578 = vmatpush1.msra.mxu0 0.0
    %2579 = vmatprep.subr.mxu0 0.0
    %2580 = vmatpush1.msra.mxu0 0.0
    %2581 = vmatprep.subr.mxu0 0.0
    %2582 = vmatpush1.msra.mxu0 0.0
    %2583 = vmatprep.subr.mxu0 0.0
    %2584 = vmatpush1.msra.mxu0 0.0
    %2585 = vmatprep.subr.mxu0 0.0
    %2586 = vmatpush1.msra.mxu0 0.0
    %2587 = vmatprep.subr.mxu0 0.0
    %2588 = vmatpush1.msra.mxu0 0.0
    %2589 = vmatprep.subr.mxu0 0.0
    %2590 = vmatpush1.msra.mxu0 0.0
    %2591 = vmatprep.subr.mxu0 0.0
    %2592 = vmatpush1.msra.mxu0 0.0
    %2593 = vmatprep.subr.mxu0 0.0
    %2594 = vmatpush1.msra.mxu0 0.0
    %2595 = vmatprep.subr.mxu0 0.0
    %2596 = vmatpush1.msra.mxu0 0.0
    %2597 = vmatprep.subr.mxu0 0.0
    %2598 = vmatpush1.msra.mxu0 0.0
    %2599 = vmatprep.subr.mxu0 0.0
    %2600 = vmatpush1.msra.mxu0 0.0
    %2601 = vmatprep.subr.mxu0 0.0
    %2602 = vmatpush1.msra.mxu0 0.0
    %2603 = vmatprep.subr.mxu0 0.0
    %2604 = vmatpush1.msra.mxu0 0.0
    %2605 = vmatprep.mubr.f32.mxu0 0.0
    %2606 = vmatmul.mubr.f32.gmra.mrb[0].mxu0 %v2539
    %v2607 = vpop.f32.mrb[0].mxu0
    %v2608 = vadd.f32 0.0, %v2607
    %v2609 = vpop.f32.mrb[0].mxu0
    %2610 = vdwg.mxu0
    %v2612 = vsel %vm346, %v2368, 0
    %2614 = vmatprep.subr.mxu0 0.0
    %2615 = vmatpush1.msra.mxu0 %v1713
    %2616 = vmatprep.subr.mxu0 0.0
    %2617 = vmatpush1.msra.mxu0 %v1714
    %2618 = vmatprep.subr.mxu0 0.0
    %2619 = vmatpush1.msra.mxu0 0.0
    %2620 = vmatprep.subr.mxu0 0.0
    %2621 = vmatpush1.msra.mxu0 0.0
    %2622 = vmatprep.subr.mxu0 0.0
    %2623 = vmatpush1.msra.mxu0 0.0
    %2624 = vmatprep.subr.mxu0 0.0
    %2625 = vmatpush1.msra.mxu0 0.0
    %2626 = vmatprep.subr.mxu0 0.0
    %2627 = vmatpush1.msra.mxu0 0.0
    %2628 = vmatprep.subr.mxu0 0.0
    %2629 = vmatpush1.msra.mxu0 0.0
    %2630 = vmatprep.subr.mxu0 0.0
    %2631 = vmatpush1.msra.mxu0 0.0
    %2632 = vmatprep.subr.mxu0 0.0
    %2633 = vmatpush1.msra.mxu0 0.0
    %2634 = vmatprep.subr.mxu0 0.0
    %2635 = vmatpush1.msra.mxu0 0.0
    %2636 = vmatprep.subr.mxu0 0.0
    %2637 = vmatpush1.msra.mxu0 0.0
    %2638 = vmatprep.subr.mxu0 0.0
    %2639 = vmatpush1.msra.mxu0 0.0
    %2640 = vmatprep.subr.mxu0 0.0
    %2641 = vmatpush1.msra.mxu0 0.0
    %2642 = vmatprep.subr.mxu0 0.0
    %2643 = vmatpush1.msra.mxu0 0.0
    %2644 = vmatprep.subr.mxu0 0.0
    %2645 = vmatpush1.msra.mxu0 0.0
    %2646 = vmatprep.subr.mxu0 0.0
    %2647 = vmatpush1.msra.mxu0 0.0
    %2648 = vmatprep.subr.mxu0 0.0
    %2649 = vmatpush1.msra.mxu0 0.0
    %2650 = vmatprep.subr.mxu0 0.0
    %2651 = vmatpush1.msra.mxu0 0.0
    %2652 = vmatprep.subr.mxu0 0.0
    %2653 = vmatpush1.msra.mxu0 0.0
    %2654 = vmatprep.subr.mxu0 0.0
    %2655 = vmatpush1.msra.mxu0 0.0
    %2656 = vmatprep.subr.mxu0 0.0
    %2657 = vmatpush1.msra.mxu0 0.0
    %2658 = vmatprep.subr.mxu0 0.0
    %2659 = vmatpush1.msra.mxu0 0.0
    %2660 = vmatprep.subr.mxu0 0.0
    %2661 = vmatpush1.msra.mxu0 0.0
    %2662 = vmatprep.subr.mxu0 0.0
    %2663 = vmatpush1.msra.mxu0 0.0
    %2664 = vmatprep.subr.mxu0 0.0
    %2665 = vmatpush1.msra.mxu0 0.0
    %2666 = vmatprep.subr.mxu0 0.0
    %2667 = vmatpush1.msra.mxu0 0.0
    %2668 = vmatprep.subr.mxu0 0.0
    %2669 = vmatpush1.msra.mxu0 0.0
    %2670 = vmatprep.subr.mxu0 0.0
    %2671 = vmatpush1.msra.mxu0 0.0
    %2672 = vmatprep.subr.mxu0 0.0
    %2673 = vmatpush1.msra.mxu0 0.0
    %2674 = vmatprep.subr.mxu0 0.0
    %2675 = vmatpush1.msra.mxu0 0.0
    %2676 = vmatprep.subr.mxu0 0.0
    %2677 = vmatpush1.msra.mxu0 0.0
    %2678 = vmatprep.mubr.f32.mxu0 0.0
    %2679 = vmatmul.mubr.f32.gmra.mrb[0].mxu0 %v2612
    %v2680 = vpop.f32.mrb[0].mxu0
    %v2681 = vadd.f32 %v2608, %v2680
    %v2682 = vpop.f32.mrb[0].mxu0
    %2683 = vdwg.mxu0
    %v2684 = vadd.f32 %v2681, %v2202
    %v2685 = vadd.f32 %v2204, %v1616
    %v2686 = vadd.f32 %v2684, %v1617
    %s2687 = scalar_lea.vmem %s12, 1
    %v2688 = vld [vmem:[%s2687] sm:$0x1]
    %s2689 = scalar_lea.vmem %s13, 1
    %v2690 = vld [vmem:[%s2689] sm:$0x1]
    %v2691 = vsel %vm201, %v2685, 0.0
    %2692 = vadd.xlane.f32.xlu0 %v2691
    %v2693 = vpop.xlane.xlu0 %2692
    %v2694 = vsel %vm201, %v2686, 0.0
    %2695 = vadd.xlane.f32.xlu0 %v2694
    %v2696 = vpop.xlane.xlu0 %2695
    %v2697 = vmul.f32 %v2693, %v208
    %v2698 = vmul.f32 %v2696, %v208
    %v2699 = vsub.f32 %v2685, %v2697
    %v2700 = vsub.f32 %v2686, %v2698
    %v2701 = vmul.f32 %v2699, %v2699
    %v2702 = vmul.f32 %v2700, %v2700
    %v2703 = vsel %vm201, %v2701, 0.0
    %2704 = vadd.xlane.f32.xlu0 %v2703
    %v2705 = vpop.xlane.xlu0 %2704
    %v2706 = vsel %vm201, %v2702, 0.0
    %2707 = vadd.xlane.f32.xlu0 %v2706
    %v2708 = vpop.xlane.xlu0 %2707
    %v2709 = vmul.f32 %v2705, %v208
    %v2710 = vmul.f32 %v2708, %v208
    %v2711 = vadd.f32 %v2709, 1e-12
    %v2712 = vadd.f32 %v2710, 1e-12
    %v2713 = vrsqrt.pop %v2711
    %v2714 = vrsqrt.pop %v2712
    %v2715 = vmul.f32 %v2699, %v2713
    %v2716 = vmul.f32 %v2700, %v2714
    %v2718 = vlaneseq
    %v2719 = vshrl.u32 %v2718, 7
    %v2720 = vsub.s32 0, %v2719
    %v2721 = vrot.slane %v2688, %v2720
    %v2723 = vmul.f32 %v2715, %v2721
    %v2724 = vmul.f32 %v2716, %v2721
    %v2726 = vlaneseq
    %v2727 = vshrl.u32 %v2726, 7
    %v2728 = vsub.s32 0, %v2727
    %v2729 = vrot.slane %v2690, %v2728
    %v2731 = vadd.f32 %v2723, %v2729
    %v2732 = vadd.f32 %v2724, %v2729
    %s2733 = scalar_lea.vmem %s14, 32
    %v2734 = vld [vmem:[%s2733] sm:$0xff]
    %v2735 = vld [vmem:[%s2733 + $0x8] sm:$0xff]
    %v2736 = vld [vmem:[%s2733 + $0x10] sm:$0xff]
    %v2737 = vld [vmem:[%s2733 + $0x18] sm:$0xff]
    %s2738 = scalar_lea.vmem %s15, 1
    %v2739 = vld [vmem:[%s2738] sm:$0x1]
    %v2741 = vlaneseq
    %v2742 = vshrl.u32 %v2741, 7
    %v2743 = vsub.s32 0, %v2742
    %v2744 = vrot.slane %v2739, %v2743
    %v2747 = vsel %vm201, %v2731, 0
    %v2750 = vsel %vm201, %v2732, 0
    %2752 = vmatprep.subr.mxu0 0.0
    %2753 = vmatpush1.msra.mxu0 %v2734
    %2754 = vmatprep.subr.mxu0 0.0
    %2755 = vmatpush1.msra.mxu0 %v2735
    %2756 = vmatprep.subr.mxu0 0.0
    %2757 = vmatpush1.msra.mxu0 %v2736
    %2758 = vmatprep.subr.mxu0 0.0
    %2759 = vmatpush1.msra.mxu0 %v2737
    %2760 = vmatprep.subr.mxu0 0.0
    %2761 = vmatpush1.msra.mxu0 0.0
    %2762 = vmatprep.subr.mxu0 0.0
    %2763 = vmatpush1.msra.mxu0 0.0
    %2764 = vmatprep.subr.mxu0 0.0
    %2765 = vmatpush1.msra.mxu0 0.0
    %2766 = vmatprep.subr.mxu0 0.0
    %2767 = vmatpush1.msra.mxu0 0.0
    %2768 = vmatprep.subr.mxu0 0.0
    %2769 = vmatpush1.msra.mxu0 0.0
    %2770 = vmatprep.subr.mxu0 0.0
    %2771 = vmatpush1.msra.mxu0 0.0
    %2772 = vmatprep.subr.mxu0 0.0
    %2773 = vmatpush1.msra.mxu0 0.0
    %2774 = vmatprep.subr.mxu0 0.0
    %2775 = vmatpush1.msra.mxu0 0.0
    %2776 = vmatprep.subr.mxu0 0.0
    %2777 = vmatpush1.msra.mxu0 0.0
    %2778 = vmatprep.subr.mxu0 0.0
    %2779 = vmatpush1.msra.mxu0 0.0
    %2780 = vmatprep.subr.mxu0 0.0
    %2781 = vmatpush1.msra.mxu0 0.0
    %2782 = vmatprep.subr.mxu0 0.0
    %2783 = vmatpush1.msra.mxu0 0.0
    %2784 = vmatprep.subr.mxu0 0.0
    %2785 = vmatpush1.msra.mxu0 0.0
    %2786 = vmatprep.subr.mxu0 0.0
    %2787 = vmatpush1.msra.mxu0 0.0
    %2788 = vmatprep.subr.mxu0 0.0
    %2789 = vmatpush1.msra.mxu0 0.0
    %2790 = vmatprep.subr.mxu0 0.0
    %2791 = vmatpush1.msra.mxu0 0.0
    %2792 = vmatprep.subr.mxu0 0.0
    %2793 = vmatpush1.msra.mxu0 0.0
    %2794 = vmatprep.subr.mxu0 0.0
    %2795 = vmatpush1.msra.mxu0 0.0
    %2796 = vmatprep.subr.mxu0 0.0
    %2797 = vmatpush1.msra.mxu0 0.0
    %2798 = vmatprep.subr.mxu0 0.0
    %2799 = vmatpush1.msra.mxu0 0.0
    %2800 = vmatprep.subr.mxu0 0.0
    %2801 = vmatpush1.msra.mxu0 0.0
    %2802 = vmatprep.subr.mxu0 0.0
    %2803 = vmatpush1.msra.mxu0 0.0
    %2804 = vmatprep.subr.mxu0 0.0
    %2805 = vmatpush1.msra.mxu0 0.0
    %2806 = vmatprep.subr.mxu0 0.0
    %2807 = vmatpush1.msra.mxu0 0.0
    %2808 = vmatprep.subr.mxu0 0.0
    %2809 = vmatpush1.msra.mxu0 0.0
    %2810 = vmatprep.subr.mxu0 0.0
    %2811 = vmatpush1.msra.mxu0 0.0
    %2812 = vmatprep.subr.mxu0 0.0
    %2813 = vmatpush1.msra.mxu0 0.0
    %2814 = vmatprep.subr.mxu0 0.0
    %2815 = vmatpush1.msra.mxu0 0.0
    %2816 = vmatprep.mubr.f32.mxu0 0.0
    %2817 = vmatmul.mubr.f32.gmra.mrb[0].mxu0 %v2747
    %v2818 = vpop.f32.mrb[0].mxu0
    %v2819 = vadd.f32 %v2744, %v2818
    %v2820 = vpop.f32.mrb[0].mxu0
    %2821 = vmatprep.mubr.f32.mxu0 0.0
    %2822 = vmatmul.mubr.f32.gmra.mrb[0].mxu0 %v2750
    %v2823 = vpop.f32.mrb[0].mxu0
    %v2824 = vadd.f32 %v2744, %v2823
    %v2825 = vpop.f32.mrb[0].mxu0
    %2826 = vdwg.mxu0
    %v2827 = vmul.f32 %v2819, 0.5
    %v2828 = vmul.f32 %v2824, 0.5
    %v2829 = vmul.f32 %v2819, 0.044715
    %v2830 = vmul.f32 %v2824, 0.044715
    %v2831 = vmul.f32 %v2829, %v2819
    %v2832 = vmul.f32 %v2830, %v2824
    %v2833 = vmul.f32 %v2831, %v2819
    %v2834 = vmul.f32 %v2832, %v2824
    %v2835 = vadd.f32 %v2819, %v2833
    %v2836 = vadd.f32 %v2824, %v2834
    %v2837 = vmul.f32 %v2835, 0.7978846
    %v2838 = vmul.f32 %v2836, 0.7978846
    %v2839 = vtanh.pop %v2837
    %v2840 = vtanh.pop %v2838
    %v2841 = vadd.f32 %v2839, 1.0
    %v2842 = vadd.f32 %v2840, 1.0
    %v2843 = vmul.f32 %v2827, %v2841
    %v2844 = vmul.f32 %v2828, %v2842
    %s2845 = scalar_lea.vmem %s16, 64
    %v2846 = vld [vmem:[%s2845] sm:$0xff]
    %v2847 = vld [vmem:[%s2845 + $0x8] sm:$0xff]
    %v2848 = vld [vmem:[%s2845 + $0x10] sm:$0xff]
    %v2849 = vld [vmem:[%s2845 + $0x18] sm:$0xff]
    %v2850 = vld [vmem:[%s2845 + $0x20] sm:$0xff]
    %v2851 = vld [vmem:[%s2845 + $0x28] sm:$0xff]
    %v2852 = vld [vmem:[%s2845 + $0x30] sm:$0xff]
    %v2853 = vld [vmem:[%s2845 + $0x38] sm:$0xff]
    %s2854 = scalar_lea.vmem %s17, 1
    %v2855 = vld [vmem:[%s2854] sm:$0x1]
    %v2857 = vlaneseq
    %v2858 = vshrl.u32 %v2857, 7
    %v2859 = vsub.s32 0, %v2858
    %v2860 = vrot.slane %v2855, %v2859
    %v2863 = vsel %vm1490, %v2843, 0
    %v2866 = vsel %vm1490, %v2844, 0
    %2868 = vmatprep.subr.mxu0 0.0
    %2869 = vmatpush1.msra.mxu0 %v2846
    %2870 = vmatprep.subr.mxu0 0.0
    %2871 = vmatpush1.msra.mxu0 %v2847
    %2872 = vmatprep.subr.mxu0 0.0
    %2873 = vmatpush1.msra.mxu0 %v2848
    %2874 = vmatprep.subr.mxu0 0.0
    %2875 = vmatpush1.msra.mxu0 %v2849
    %2876 = vmatprep.subr.mxu0 0.0
    %2877 = vmatpush1.msra.mxu0 %v2850
    %2878 = vmatprep.subr.mxu0 0.0
    %2879 = vmatpush1.msra.mxu0 %v2851
    %2880 = vmatprep.subr.mxu0 0.0
    %2881 = vmatpush1.msra.mxu0 %v2852
    %2882 = vmatprep.subr.mxu0 0.0
    %2883 = vmatpush1.msra.mxu0 %v2853
    %2884 = vmatprep.subr.mxu0 0.0
    %2885 = vmatpush1.msra.mxu0 0.0
    %2886 = vmatprep.subr.mxu0 0.0
    %2887 = vmatpush1.msra.mxu0 0.0
    %2888 = vmatprep.subr.mxu0 0.0
    %2889 = vmatpush1.msra.mxu0 0.0
    %2890 = vmatprep.subr.mxu0 0.0
    %2891 = vmatpush1.msra.mxu0 0.0
    %2892 = vmatprep.subr.mxu0 0.0
    %2893 = vmatpush1.msra.mxu0 0.0
    %2894 = vmatprep.subr.mxu0 0.0
    %2895 = vmatpush1.msra.mxu0 0.0
    %2896 = vmatprep.subr.mxu0 0.0
    %2897 = vmatpush1.msra.mxu0 0.0
    %2898 = vmatprep.subr.mxu0 0.0
    %2899 = vmatpush1.msra.mxu0 0.0
    %2900 = vmatprep.subr.mxu0 0.0
    %2901 = vmatpush1.msra.mxu0 0.0
    %2902 = vmatprep.subr.mxu0 0.0
    %2903 = vmatpush1.msra.mxu0 0.0
    %2904 = vmatprep.subr.mxu0 0.0
    %2905 = vmatpush1.msra.mxu0 0.0
    %2906 = vmatprep.subr.mxu0 0.0
    %2907 = vmatpush1.msra.mxu0 0.0
    %2908 = vmatprep.subr.mxu0 0.0
    %2909 = vmatpush1.msra.mxu0 0.0
    %2910 = vmatprep.subr.mxu0 0.0
    %2911 = vmatpush1.msra.mxu0 0.0
    %2912 = vmatprep.subr.mxu0 0.0
    %2913 = vmatpush1.msra.mxu0 0.0
    %2914 = vmatprep.subr.mxu0 0.0
    %2915 = vmatpush1.msra.mxu0 0.0
    %2916 = vmatprep.subr.mxu0 0.0
    %2917 = vmatpush1.msra.mxu0 0.0
    %2918 = vmatprep.subr.mxu0 0.0
    %2919 = vmatpush1.msra.mxu0 0.0
    %2920 = vmatprep.subr.mxu0 0.0
    %2921 = vmatpush1.msra.mxu0 0.0
    %2922 = vmatprep.subr.mxu0 0.0
    %2923 = vmatpush1.msra.mxu0 0.0
    %2924 = vmatprep.subr.mxu0 0.0
    %2925 = vmatpush1.msra.mxu0 0.0
    %2926 = vmatprep.subr.mxu0 0.0
    %2927 = vmatpush1.msra.mxu0 0.0
    %2928 = vmatprep.subr.mxu0 0.0
    %2929 = vmatpush1.msra.mxu0 0.0
    %2930 = vmatprep.subr.mxu0 0.0
    %2931 = vmatpush1.msra.mxu0 0.0
    %2932 = vmatprep.mubr.f32.mxu0 0.0
    %2933 = vmatmul.mubr.f32.gmra.mrb[0].mxu0 %v2863
    %v2934 = vpop.f32.mrb[0].mxu0
    %v2935 = vadd.f32 %v2860, %v2934
    %v2936 = vpop.f32.mrb[0].mxu0
    %2937 = vmatprep.mubr.f32.mxu0 0.0
    %2938 = vmatmul.mubr.f32.gmra.mrb[0].mxu0 %v2866
    %v2939 = vpop.f32.mrb[0].mxu0
    %v2940 = vadd.f32 %v2860, %v2939
    %v2941 = vpop.f32.mrb[0].mxu0
    %2942 = vdwg.mxu0
    %v2943 = vadd.f32 %v2935, %v2731
    %v2944 = vadd.f32 %v2940, %v2732
    %s2945 = scalar_lea.vmem %s18, 1
    %v2946 = vld [vmem:[%s2945] sm:$0x1]
    %s2947 = scalar_lea.vmem %s19, 1
    %v2948 = vld [vmem:[%s2947] sm:$0x1]
    %v2949 = vsel %vm201, %v2943, 0.0
    %2950 = vadd.xlane.f32.xlu0 %v2949
    %v2951 = vpop.xlane.xlu0 %2950
    %v2952 = vsel %vm201, %v2944, 0.0
    %2953 = vadd.xlane.f32.xlu0 %v2952
    %v2954 = vpop.xlane.xlu0 %2953
    %v2955 = vmul.f32 %v2951, %v208
    %v2956 = vmul.f32 %v2954, %v208
    %v2957 = vsub.f32 %v2943, %v2955
    %v2958 = vsub.f32 %v2944, %v2956
    %v2959 = vmul.f32 %v2957, %v2957
    %v2960 = vmul.f32 %v2958, %v2958
    %v2961 = vsel %vm201, %v2959, 0.0
    %2962 = vadd.xlane.f32.xlu0 %v2961
    %v2963 = vpop.xlane.xlu0 %2962
    %v2964 = vsel %vm201, %v2960, 0.0
    %2965 = vadd.xlane.f32.xlu0 %v2964
    %v2966 = vpop.xlane.xlu0 %2965
    %v2967 = vmul.f32 %v2963, %v208
    %v2968 = vmul.f32 %v2966, %v208
    %v2969 = vadd.f32 %v2967, 1e-12
    %v2970 = vadd.f32 %v2968, 1e-12
    %v2971 = vrsqrt.pop %v2969
    %v2972 = vrsqrt.pop %v2970
    %v2973 = vmul.f32 %v2957, %v2971
    %v2974 = vmul.f32 %v2958, %v2972
    %v2976 = vlaneseq
    %v2977 = vshrl.u32 %v2976, 7
    %v2978 = vsub.s32 0, %v2977
    %v2979 = vrot.slane %v2946, %v2978
    %v2981 = vmul.f32 %v2973, %v2979
    %v2982 = vmul.f32 %v2974, %v2979
    %v2984 = vlaneseq
    %v2985 = vshrl.u32 %v2984, 7
    %v2986 = vsub.s32 0, %v2985
    %v2987 = vrot.slane %v2948, %v2986
    %v2989 = vadd.f32 %v2981, %v2987
    %v2990 = vadd.f32 %v2982, %v2987
    %v2992 = vrot.slane %v2990, 7
    %vm2994 = vcmask 1040384
    %v2995 = vsel %vm2994, %v2989, %v2992
    %v2996 = vld [vmem:[%s20] sm:$0xff]
    %v2997 = vld [vmem:[%s20 + $0x8] sm:$0xff]
    %v2998 = vld [vmem:[%s20 + $0x10] sm:$0xff]
    %v2999 = vld [vmem:[%s20 + $0x18] sm:$0xff]
    %v3000 = vld [vmem:[%s21] sm:$0x1]
    %v3002 = vlaneseq
    %v3003 = vshrl.u32 %v3002, 7
    %v3004 = vsub.s32 0, %v3003
    %v3005 = vrot.slane %v3000, %v3004
    %v3008 = vsel %vm201, %v2995, 0
    %3010 = vmatprep.subr.mxu0 0.0
    %3011 = vmatpush1.msra.mxu0 %v2996
    %3012 = vmatprep.subr.mxu0 0.0
    %3013 = vmatpush1.msra.mxu0 %v2997
    %3014 = vmatprep.subr.mxu0 0.0
    %3015 = vmatpush1.msra.mxu0 %v2998
    %3016 = vmatprep.subr.mxu0 0.0
    %3017 = vmatpush1.msra.mxu0 %v2999
    %3018 = vmatprep.subr.mxu0 0.0
    %3019 = vmatpush1.msra.mxu0 0.0
    %3020 = vmatprep.subr.mxu0 0.0
    %3021 = vmatpush1.msra.mxu0 0.0
    %3022 = vmatprep.subr.mxu0 0.0
    %3023 = vmatpush1.msra.mxu0 0.0
    %3024 = vmatprep.subr.mxu0 0.0
    %3025 = vmatpush1.msra.mxu0 0.0
    %3026 = vmatprep.subr.mxu0 0.0
    %3027 = vmatpush1.msra.mxu0 0.0
    %3028 = vmatprep.subr.mxu0 0.0
    %3029 = vmatpush1.msra.mxu0 0.0
    %3030 = vmatprep.subr.mxu0 0.0
    %3031 = vmatpush1.msra.mxu0 0.0
    %3032 = vmatprep.subr.mxu0 0.0
    %3033 = vmatpush1.msra.mxu0 0.0
    %3034 = vmatprep.subr.mxu0 0.0
    %3035 = vmatpush1.msra.mxu0 0.0
    %3036 = vmatprep.subr.mxu0 0.0
    %3037 = vmatpush1.msra.mxu0 0.0
    %3038 = vmatprep.subr.mxu0 0.0
    %3039 = vmatpush1.msra.mxu0 0.0
    %3040 = vmatprep.subr.mxu0 0.0
    %3041 = vmatpush1.msra.mxu0 0.0
    %3042 = vmatprep.subr.mxu0 0.0
    %3043 = vmatpush1.msra.mxu0 0.0
    %3044 = vmatprep.subr.mxu0 0.0
    %3045 = vmatpush1.msra.mxu0 0.0
    %3046 = vmatprep.subr.mxu0 0.0
    %3047 = vmatpush1.msra.mxu0 0.0
    %3048 = vmatprep.subr.mxu0 0.0
    %3049 = vmatpush1.msra.mxu0 0.0
    %3050 = vmatprep.subr.mxu0 0.0
    %3051 = vmatpush1.msra.mxu0 0.0
    %3052 = vmatprep.subr.mxu0 0.0
    %3053 = vmatpush1.msra.mxu0 0.0
    %3054 = vmatprep.subr.mxu0 0.0
    %3055 = vmatpush1.msra.mxu0 0.0
    %3056 = vmatprep.subr.mxu0 0.0
    %3057 = vmatpush1.msra.mxu0 0.0
    %3058 = vmatprep.subr.mxu0 0.0
    %3059 = vmatpush1.msra.mxu0 0.0
    %3060 = vmatprep.subr.mxu0 0.0
    %3061 = vmatpush1.msra.mxu0 0.0
    %3062 = vmatprep.subr.mxu0 0.0
    %3063 = vmatpush1.msra.mxu0 0.0
    %3064 = vmatprep.subr.mxu0 0.0
    %3065 = vmatpush1.msra.mxu0 0.0
    %3066 = vmatprep.subr.mxu0 0.0
    %3067 = vmatpush1.msra.mxu0 0.0
    %3068 = vmatprep.subr.mxu0 0.0
    %3069 = vmatpush1.msra.mxu0 0.0
    %3070 = vmatprep.subr.mxu0 0.0
    %3071 = vmatpush1.msra.mxu0 0.0
    %3072 = vmatprep.subr.mxu0 0.0
    %3073 = vmatpush1.msra.mxu0 0.0
    %3074 = vmatprep.mubr.f32.mxu0 0.0
    %3075 = vmatmul.mubr.f32.gmra.mrb[0].mxu0 %v3008
    %v3076 = vpop.f32.mrb[0].mxu0
    %v3077 = vadd.f32 %v3005, %v3076
    %v3078 = vpop.f32.mrb[0].mxu0
    %3079 = vdwg.mxu0
    %v3080 = vtanh.pop %v3077
    %v3081 = vld [vmem:[%s22] sm:$0xff]
    %v3082 = vld [vmem:[%s22 + $0x8] sm:$0xff]
    %v3083 = vld [vmem:[%s22 + $0x10] sm:$0xff]
    %v3084 = vld [vmem:[%s22 + $0x18] sm:$0xff]
    %v3085 = vld [vmem:[%s23] sm:$0x1]
    %v3087 = vlaneseq
    %v3088 = vshrl.u32 %v3087, 7
    %v3089 = vsub.s32 0, %v3088
    %v3090 = vrot.slane %v3085, %v3089
    %v3093 = vsel %vm201, %v3080, 0
    %3095 = vmatprep.subr.mxu0 0.0
    %3096 = vmatpush1.msra.mxu0 %v3081
    %3097 = vmatprep.subr.mxu0 0.0
    %3098 = vmatpush1.msra.mxu0 %v3082
    %3099 = vmatprep.subr.mxu0 0.0
    %3100 = vmatpush1.msra.mxu0 %v3083
    %3101 = vmatprep.subr.mxu0 0.0
    %3102 = vmatpush1.msra.mxu0 %v3084
    %3103 = vmatprep.subr.mxu0 0.0
    %3104 = vmatpush1.msra.mxu0 0.0
    %3105 = vmatprep.subr.mxu0 0.0
    %3106 = vmatpush1.msra.mxu0 0.0
    %3107 = vmatprep.subr.mxu0 0.0
    %3108 = vmatpush1.msra.mxu0 0.0
    %3109 = vmatprep.subr.mxu0 0.0
    %3110 = vmatpush1.msra.mxu0 0.0
    %3111 = vmatprep.subr.mxu0 0.0
    %3112 = vmatpush1.msra.mxu0 0.0
    %3113 = vmatprep.subr.mxu0 0.0
    %3114 = vmatpush1.msra.mxu0 0.0
    %3115 = vmatprep.subr.mxu0 0.0
    %3116 = vmatpush1.msra.mxu0 0.0
    %3117 = vmatprep.subr.mxu0 0.0
    %3118 = vmatpush1.msra.mxu0 0.0
    %3119 = vmatprep.subr.mxu0 0.0
    %3120 = vmatpush1.msra.mxu0 0.0
    %3121 = vmatprep.subr.mxu0 0.0
    %3122 = vmatpush1.msra.mxu0 0.0
    %3123 = vmatprep.subr.mxu0 0.0
    %3124 = vmatpush1.msra.mxu0 0.0
    %3125 = vmatprep.subr.mxu0 0.0
    %3126 = vmatpush1.msra.mxu0 0.0
    %3127 = vmatprep.subr.mxu0 0.0
    %3128 = vmatpush1.msra.mxu0 0.0
    %3129 = vmatprep.subr.mxu0 0.0
    %3130 = vmatpush1.msra.mxu0 0.0
    %3131 = vmatprep.subr.mxu0 0.0
    %3132 = vmatpush1.msra.mxu0 0.0
    %3133 = vmatprep.subr.mxu0 0.0
    %3134 = vmatpush1.msra.mxu0 0.0
    %3135 = vmatprep.subr.mxu0 0.0
    %3136 = vmatpush1.msra.mxu0 0.0
    %3137 = vmatprep.subr.mxu0 0.0
    %3138 = vmatpush1.msra.mxu0 0.0
    %3139 = vmatprep.subr.mxu0 0.0
    %3140 = vmatpush1.msra.mxu0 0.0
    %3141 = vmatprep.subr.mxu0 0.0
    %3142 = vmatpush1.msra.mxu0 0.0
    %3143 = vmatprep.subr.mxu0 0.0
    %3144 = vmatpush1.msra.mxu0 0.0
    %3145 = vmatprep.subr.mxu0 0.0
    %3146 = vmatpush1.msra.mxu0 0.0
    %3147 = vmatprep.subr.mxu0 0.0
    %3148 = vmatpush1.msra.mxu0 0.0
    %3149 = vmatprep.subr.mxu0 0.0
    %3150 = vmatpush1.msra.mxu0 0.0
    %3151 = vmatprep.subr.mxu0 0.0
    %3152 = vmatpush1.msra.mxu0 0.0
    %3153 = vmatprep.subr.mxu0 0.0
    %3154 = vmatpush1.msra.mxu0 0.0
    %3155 = vmatprep.subr.mxu0 0.0
    %3156 = vmatpush1.msra.mxu0 0.0
    %3157 = vmatprep.subr.mxu0 0.0
    %3158 = vmatpush1.msra.mxu0 0.0
    %3159 = vmatprep.mubr.f32.mxu0 0.0
    %3160 = vmatmul.mubr.f32.gmra.mrb[0].mxu0 %v3093
    %v3161 = vpop.f32.mrb[0].mxu0
    %v3162 = vadd.f32 %v3090, %v3161
    %v3163 = vpop.f32.mrb[0].mxu0
    %3164 = vdwg.mxu0
    %3165 = vst [vmem:[#allocation2] sm:$0x3] %v3162
    %v3166 = vld [vmem:[%s1] sm:$0x3]
    %vm3167 = vcmask 1041408
    %v3168 = vsel %vm3167, %v3162, -inf
    %3169 = vmax.xlane.f32.xlu0 %v3168
    %v3170 = vpop.xlane.xlu0 %3169
    %v3171 = vsub.f32 %v3162, %v3170
    %v3172 = vmul.f32 %v3171, 1.442695
    %v3173 = vpow.pop %v3172
    %v3174 = vsel %vm3167, %v3173, 0.0
    %3175 = vadd.xlane.f32.xlu0 %v3174
    %v3176 = vpop.xlane.xlu0 %3175
    %v3177 = vlog2.pop %v3176
    %v3178 = vmul.f32 %v3177, 0.6931472
    %v3179 = vadd.f32 %v3178, %v3170
    %v3180 = vsub.f32 %v3162, %v3179
    %3181 = vset.pattern.permute.xlu0 0
    %3182 = vperm.xlu0 %3181, %v3166
    %v3183 = vpop.permute.xlu0 %3182
    %vm3184 = vcmp.eq.s32.totalorder %v3183, %v84
    %v3185 = vsel %vm3184, 1, 0
    %v3186 = vcvt.s32.f32 %v3185
    %v3187 = vmul.f32 %v3186, %v3180
    %v3188 = vsel %vm3167, %v3187, 0.0
    %3189 = vadd.xlane.f32.xlu0 %v3188
    %v3190 = vpop.xlane.xlu0 %3189
    %v3191 = vsub.f32 0.0, %v3190
    %vm3192 = vcmask 1024
    %v3193 = vsel %vm3192, %v3191, 0.0
    %3194 = vadd.xlane.f32.xlu0 %v3193
    %v3195 = vpop.xlane.xlu0 %3194
    %v3196 = vrot.slane %v3195, 4
    %v3197 = vadd.f32 %v3195, %v3196
    %v3198 = vrot.slane %v3197, 2
    %v3199 = vadd.f32 %v3197, %v3198
    %v3200 = vrot.slane %v3199, 1
    %v3201 = vadd.f32 %v3199, %v3200
    %s3202 = vtos %v3201
    %s3203 = smul.f32 %s3202, 0.5
    %s3204 = scalar_lea.smem [#allocation5], 0
    %3205 = sst [smem:[%s3204]] %s3203
    // Predicated region
    $region98: #{classifier_forward.1} parent=1 // pred_check
      _
    $region99: #{classifier_forward.1} parent=1 // pred_check_branch
      %3207 = sbr.rel (0) target = $region101
    $region100: #{classifier_forward.1} parent=1 // pred_region
      %s3209 = ssub.s32 32, 32
      %3210 = vsyncadd [#allocation3], %s3209
      %s3212 = sshll.u32 [#allocation2], 4
      %s3213 = int_to_ptr.vmem [resolvable:$true] %s3212
      %3215 = dma.vmem_to_hbm [thread:$0]  %s3213, 32, %s24, [#allocation3]
    $region101: #{classifier_forward.1} parent=1 // pred_fallthru
      _
    // Predicated region
    $region102: #{classifier_forward.1} parent=1 // pred_check
      _
    $region103: #{classifier_forward.1} parent=1 // pred_check_branch
      %3217 = sbr.rel (0) target = $region105
    $region104: #{classifier_forward.1} parent=1 // pred_region
      %s3219 = ssub.s32 16, 16
      %3220 = vsyncadd [#allocation4], %s3219
      %3223 = dma.smem_to_hbm [#allocation5], 16, %s25, [#allocation4]
    $region105: #{classifier_forward.1} parent=1 // pred_fallthru
      _
    // Predicated region
    $region106: #{classifier_forward.1} parent=1 // pred_check
      _
    $region107: #{classifier_forward.1} parent=1 // pred_check_branch
      %3225 = sbr.rel (0) target = $region109
    $region108: #{classifier_forward.1} parent=1 // pred_region
      %3226 = dma.done [#allocation3], 32
    $region109: #{classifier_forward.1} parent=1 // pred_fallthru
      _
    // Predicated region
    $region110: #{classifier_forward.1} parent=1 // pred_check
      _
    $region111: #{classifier_forward.1} parent=1 // pred_check_branch
      %3228 = sbr.rel (0) target = $region113
    $region112: #{classifier_forward.1} parent=1 // pred_region
      %3229 = dma.done [#allocation4], 16
    $region113: #{classifier_forward.1} parent=1 // pred_fallthru
      _
    %3230 = sfence
    %3231 = vsyncpa [#allocation3], 1
    %3232 = vsyncpa [#allocation4], 1

</llo_original>
